<compile_context>
chip_gen: v7x
topology: tpu7x:2x2x1
jax: 0.10.0
libtpu: 0.0.40
codegen_flags: <defaults>
</compile_context>

<pallas_src>
import functools

import jax
import jax.numpy as jnp
import numpy as np
from jax.experimental import pallas as pl
from jax.experimental.pallas import tpu as pltpu


def _round_up(v, m):
    return (v + m - 1) // m * m


def _gru_chunk_kernel(
    # inputs
    x_ref,        # (B, T_c, Din) f32   current time chunk, batch-first
    w_i_ref,      # (Din, 3H)    bf16   fused input weights  [r | z | n]
    w_h_ref,      # (H, 3H)      bf16   fused hidden weights [r | z | n]
    b_x_ref,      # (1, 3H)      f32    [b_ir+b_hr | b_iz+b_hz | b_in]
    b_hn_ref,     # (1, H)       f32    b_hn (inside the r-gate, kept separate)
    # outputs
    y_ref,        # (B, T_c, H)  f32    GRU outputs for this chunk, batch-first
    # scratch
    h_ref,        # (B, H)       f32    persistent hidden state across chunks
    xt_ref,       # (T_c*B, Din) f32    time-major staging of the chunk input
    xg_ref,       # (T_c*B, 3H)  f32    hoisted input projections of the chunk
    yt_ref,       # (T_c, B, H)  f32    time-major staging of the chunk output
    *, unroll,
):
    B, T_c, _ = x_ref.shape
    H = h_ref.shape[-1]

    # First chunk: h_0 = zeros (PyTorch default).  h_ref persists across the
    # sequential ("arbitrary") time-chunk grid.
    @pl.when(pl.program_id(0) == 0)
    def _init_hidden():
        h_ref[...] = jnp.zeros_like(h_ref)

    # ---- Stage the chunk time-major (static loop, T_c is compile-time const).
    # Row t*B + b of xt holds x[b, chunk_start + t, :].
    for t in range(T_c):
        xt_ref[t * B:(t + 1) * B, :] = x_ref[:, t, :]

    # ---- Hoisted input projection for the whole chunk: one wide bf16 MXU
    # matmul with the pre-combined biases folded in once (f32 accumulation).
    xg_ref[...] = (
        jnp.dot(xt_ref[...].astype(jnp.bfloat16), w_i_ref[...],
                preferred_element_type=jnp.float32)
        + b_x_ref[...]
    )

    w_h = w_h_ref[...]            # (H, 3H) bf16, hoisted out of the loop
    b_hn = b_hn_ref[...]          # (1, H)  f32

    def step(t, h):
        row = pl.multiple_of(t * B, B)
        xg = xg_ref[pl.ds(row, B), :]                                      # (B, 3H)
        hg = jnp.dot(h.astype(jnp.bfloat16), w_h,
                     preferred_element_type=jnp.float32)                   # (B, 3H)

        # PyTorch GRU gate equations (gate order r, z, n); r/z sigmoid fused.
        rz = jax.nn.sigmoid(xg[:, :2 * H] + hg[:, :2 * H])
        r = rz[:, :H]
        z = rz[:, H:]
        n = jnp.tanh(xg[:, 2 * H:] + r * (hg[:, 2 * H:] + b_hn))
        h_new = (1.0 - z) * n + z * h

        yt_ref[t] = h_new
        return h_new

    h_ref[...] = jax.lax.fori_loop(0, T_c, step, h_ref[...], unroll=unroll)

    # ---- Drain the time-major staging into the batch-first output block
    # (static loop over B, stores stay contiguous and lane-dense in H).
    for b in range(B):
        y_ref[b] = yt_ref[:, b, :]


def _pick_time_chunk(T, B, Din, H, budget_bytes=8 << 20):
    """Largest multiple-of-8 chunk whose streamed buffers fit a small budget."""
    din_p = _round_up(max(Din, 1), 128)
    h_p = _round_up(max(H, 1), 128)
    # per-time-step bytes: x block + y block (double-buffered) + xt/xg/yt scratch
    per_step = B * (2 * din_p + 2 * h_p + din_p + 3 * h_p + h_p) * 4
    tc = (budget_bytes // max(per_step, 1)) // 8 * 8
    tc = int(max(8, min(64, tc)))           # cap: bounded static-loop code size
    return min(tc, _round_up(T, 8))


def _vmem_limit_bytes(B, T_c, Din, H):
    """Generous (2x) estimate of the kernel's VMEM footprint, clamped."""
    din_p = _round_up(Din, 128)
    h_p = _round_up(H, 128)
    g_p = 3 * h_p
    total = (
        2 * B * T_c * din_p * 4            # x blocks, double-buffered
        + 2 * B * T_c * h_p * 4            # y blocks, double-buffered
        + 2 * (din_p * g_p + h_p * g_p) * 2  # bf16 weights (assume 2 copies)
        + 2 * (g_p + h_p) * 4              # biases
        + B * h_p * 4                      # h scratch
        + T_c * B * din_p * 4              # xt scratch
        + T_c * B * g_p * 4                # xg scratch
        + T_c * B * h_p * 4                # yt scratch
    )
    return int(min(64 * 1024 * 1024, max(16 * 1024 * 1024, 2 * total)))


def encoder_forward(x, params, *, time_chunk=None, interpret=False):
    """Encoder.forward: x (B, T, J, D) -> GRU outputs (B, T, H), batch-first."""
    B, T = x.shape[0], x.shape[1]
    x_flat = x.reshape(B, T, -1).astype(jnp.float32)       # x.view(B, T, -1)
    Din = x_flat.shape[-1]
    H = params["w_h"].shape[0]

    if time_chunk is None:
        T_c = _pick_time_chunk(T, B, Din, H)
    else:
        T_c = max(8, (int(time_chunk) // 8) * 8)
    n_chunks = pl.cdiv(T, T_c)
    T_pad = n_chunks * T_c
    if T_pad != T:
        # Zero-pad the tail; the recurrence is causal so outputs for t < T are
        # unaffected and the padded rows are sliced off below.
        x_flat = jnp.pad(x_flat, ((0, 0), (0, T_pad - T), (0, 0)))

    # bf16 weights (MXU-native, halves resident weight VMEM + per-step vld).
    w_i = params["w_i"].astype(jnp.bfloat16)
    w_h = params["w_h"].astype(jnp.bfloat16)
    b_ih = params["b_ih"].astype(jnp.float32)
    b_hh = params["b_hh"].astype(jnp.float32)
    # Pre-combine biases (b_hn must stay separate: it sits inside the r-gate).
    b_x = jnp.concatenate([b_ih[:2 * H] + b_hh[:2 * H], b_ih[2 * H:]])[None, :]  # (1, 3H)
    b_hn = b_hh[2 * H:][None, :]                                                 # (1, H)

    kernel = functools.partial(_gru_chunk_kernel, unroll=min(8, T_c))

    y = pl.pallas_call(
        kernel,
        out_shape=jax.ShapeDtypeStruct((B, T_pad, H), jnp.float32),
        grid=(n_chunks,),
        in_specs=[
            pl.BlockSpec((B, T_c, Din), lambda t: (0, t, 0)),   # streamed chunk
            pl.BlockSpec((Din, 3 * H), lambda t: (0, 0)),       # resident
            pl.BlockSpec((H, 3 * H), lambda t: (0, 0)),         # resident
            pl.BlockSpec((1, 3 * H), lambda t: (0, 0)),         # resident
            pl.BlockSpec((1, H), lambda t: (0, 0)),             # resident
        ],
        out_specs=pl.BlockSpec((B, T_c, H), lambda t: (0, t, 0)),
        scratch_shapes=[
            pltpu.VMEM((B, H), jnp.float32),              # persistent hidden state
            pltpu.VMEM((T_c * B, Din), jnp.float32),      # time-major x staging
            pltpu.VMEM((T_c * B, 3 * H), jnp.float32),    # hoisted input projections
            pltpu.VMEM((T_c, B, H), jnp.float32),         # time-major y staging
        ],
        compiler_params=pltpu.CompilerParams(
            dimension_semantics=("arbitrary",),           # serial recurrence
            vmem_limit_bytes=_vmem_limit_bytes(B, T_c, Din, H),
        ),
        interpret=interpret,
    )(x_flat, w_i, w_h, b_x, b_hn)

    return y[:, :T, :] if T_pad != T else y


def encoder_forward_ref(x, params, *, match_kernel_dtypes=True):
    """Pure-JAX reference (lax.scan).

    match_kernel_dtypes=True mirrors the kernel's bf16 matmul operands with
    f32 accumulation; False is the exact f32 PyTorch-equivalent math.
    """
    B, T = x.shape[0], x.shape[1]
    x_flat = x.reshape(B, T, -1).astype(jnp.float32)
    H = params["w_h"].shape[0]
    w_i, w_h = params["w_i"], params["w_h"]
    if match_kernel_dtypes:
        w_i = w_i.astype(jnp.bfloat16)
        w_h = w_h.astype(jnp.bfloat16)
    b_ih = params["b_ih"].astype(jnp.float32)
    b_hh = params["b_hh"].astype(jnp.float32)

    def step(h, x_t):
        xt = x_t.astype(w_i.dtype)
        hh = h.astype(w_h.dtype)
        gi = jnp.dot(xt, w_i, preferred_element_type=jnp.float32) + b_ih
        gh = jnp.dot(hh, w_h, preferred_element_type=jnp.float32) + b_hh
        r = jax.nn.sigmoid(gi[:, :H] + gh[:, :H])
        z = jax.nn.sigmoid(gi[:, H:2 * H] + gh[:, H:2 * H])
        n = jnp.tanh(gi[:, 2 * H:] + r * gh[:, 2 * H:])
        h_new = (1.0 - z) * n + z * h
        return h_new, h_new

    xs = jnp.transpose(x_flat, (1, 0, 2))                   # (T, B, Din)
    _, ys = jax.lax.scan(step, jnp.zeros((B, H), jnp.float32), xs)
    return jnp.transpose(ys, (1, 0, 2))                     # (B, T, H)


def init_params(key, input_size, hidden_size):
    """GRU params in fused layout (mirrors PyTorch init U(-1/sqrt(H), 1/sqrt(H)))."""
    k1, k2, k3, k4 = jax.random.split(key, 4)
    s = 1.0 / float(np.sqrt(hidden_size))
    u = lambda k, shape: jax.random.uniform(k, shape, jnp.float32, -s, s)
    return {
        "w_i": u(k1, (input_size, 3 * hidden_size)),   # weight_ih_l0.T, gates [r|z|n]
        "w_h": u(k2, (hidden_size, 3 * hidden_size)),  # weight_hh_l0.T
        "b_ih": u(k3, (3 * hidden_size,)),
        "b_hh": u(k4, (3 * hidden_size,)),
    }


if __name__ == "__main__":
    # Small shapes consistent with the module: num_joints=57, num_dim=2
    # (input_size = 114); hidden kept small but lane-aligned (module default 768).
    num_joints, num_dim = 57, 2
    hidden_size = 128
    batch, seq_len = 8, 20

    key = jax.random.PRNGKey(0)
    kx, kp = jax.random.split(key)
    x = jax.random.normal(kx, (batch, seq_len, num_joints, num_dim), jnp.float32)
    params = init_params(kp, num_joints * num_dim, hidden_size)

    # time_chunk=8 -> T padded to 24, grid of 3 chunks: exercises the persistent
    # hidden-state scratch across grid steps and the tail padding path.
    fwd = jax.jit(functools.partial(encoder_forward, time_chunk=8))
    y = jax.block_until_ready(fwd(x, params))
    assert y.shape == (batch, seq_len, hidden_size)

    # Reference mirroring the kernel's bf16-operand / f32-accumulate math.
    y_ref = jax.block_until_ready(
        encoder_forward_ref(x, params, match_kernel_dtypes=True))
    np.testing.assert_allclose(np.asarray(y), np.asarray(y_ref),
                               rtol=2e-3, atol=2e-3)

    # Sanity check against the exact f32 PyTorch-equivalent math (the only
    # deviation is bf16 quantization of the MXU operands).
    y_ref_f32 = jax.block_until_ready(
        encoder_forward_ref(x, params, match_kernel_dtypes=False))
    np.testing.assert_allclose(np.asarray(y), np.asarray(y_ref_f32),
                               rtol=3e-2, atol=3e-2)

    print("KERNEL_OK")
</pallas_src>

<mosaic_0001>
module attributes {stable_mosaic.version = 11 : i64} {
  func.func @_gru_chunk_kernel(%arg0: i32, %arg1: memref<8x8x114xf32, #tpu.memory_space<vmem>>, %arg2: memref<114x384xbf16, #tpu.memory_space<vmem>>, %arg3: memref<128x384xbf16, #tpu.memory_space<vmem>>, %arg4: memref<1x384xf32, #tpu.memory_space<vmem>>, %arg5: memref<1x128xf32, #tpu.memory_space<vmem>>, %arg6: memref<8x8x128xf32, #tpu.memory_space<vmem>>, %arg7: memref<8x128xf32, #tpu.memory_space<vmem>>, %arg8: memref<64x114xf32, #tpu.memory_space<vmem>>, %arg9: memref<64x384xf32, #tpu.memory_space<vmem>>, %arg10: memref<8x8x128xf32, #tpu.memory_space<vmem>>) attributes {dimension_semantics = [#tpu.dimension_semantics<arbitrary>], iteration_bounds = array<i64: 3>, scalar_prefetch = 0 : i64, scratch_operands = 4 : i64, tpu.core_type = #tpu.core_type<tc>, window_params = [{transform_indices = @transform_0, window_bounds = array<i64: 8, 8, 114>}, {pipeline_mode = #tpu.pipeline_mode<synchronous>, transform_indices = @transform_1, window_bounds = array<i64: 114, 384>}, {pipeline_mode = #tpu.pipeline_mode<synchronous>, transform_indices = @transform_2, window_bounds = array<i64: 128, 384>}, {pipeline_mode = #tpu.pipeline_mode<synchronous>, transform_indices = @transform_3, window_bounds = array<i64: 1, 384>}, {pipeline_mode = #tpu.pipeline_mode<synchronous>, transform_indices = @transform_4, window_bounds = array<i64: 1, 128>}, {transform_indices = @transform_5, window_bounds = array<i64: 8, 8, 128>}]} {
    %c0_i32 = arith.constant 0 : i32
    %0 = arith.cmpi eq, %arg0, %c0_i32 : i32
    %1 = arith.extui %0 : i1 to i32
    %c0_i32_0 = arith.constant 0 : i32
    %2 = arith.cmpi ne, %1, %c0_i32_0 : i32
    scf.if %2 {
      %cst_147 = arith.constant 0.000000e+00 : f32
      %335 = vector.broadcast %cst_147 : f32 to vector<8x128xf32>
      %c0_148 = arith.constant 0 : index
      %c0_149 = arith.constant 0 : index
      %336 = vector.load %arg7[%c0_148, %c0_149] : memref<8x128xf32, #tpu.memory_space<vmem>>, vector<8x128xf32>
      tpu.vector_store %arg7[%c0_148, %c0_149], %335 {strides = array<i32>} : memref<8x128xf32, #tpu.memory_space<vmem>>, vector<8x128xf32>,
    } else {
    }
    %c0 = arith.constant 0 : index
    %c0_1 = arith.constant 0 : index
    %c0_2 = arith.constant 0 : index
    %3 = vector.load %arg1[%c0, %c0_1, %c0_2] : memref<8x8x114xf32, #tpu.memory_space<vmem>>, vector<8x1x114xf32>
    %4 = vector.shape_cast %3 : vector<8x1x114xf32> to vector<8x114xf32>
    %c0_3 = arith.constant 0 : index
    %c0_4 = arith.constant 0 : index
    %5 = vector.load %arg8[%c0_3, %c0_4] : memref<64x114xf32, #tpu.memory_space<vmem>>, vector<8x114xf32>
    tpu.vector_store %arg8[%c0_3, %c0_4], %4 {strides = array<i32>} : memref<64x114xf32, #tpu.memory_space<vmem>>, vector<8x114xf32>,
    %c0_5 = arith.constant 0 : index
    %c1 = arith.constant 1 : index
    %c0_6 = arith.constant 0 : index
    %6 = vector.load %arg1[%c0_5, %c1, %c0_6] : memref<8x8x114xf32, #tpu.memory_space<vmem>>, vector<8x1x114xf32>
    %7 = vector.shape_cast %6 : vector<8x1x114xf32> to vector<8x114xf32>
    %c8 = arith.constant 8 : index
    %c0_7 = arith.constant 0 : index
    %8 = vector.load %arg8[%c8, %c0_7] : memref<64x114xf32, #tpu.memory_space<vmem>>, vector<8x114xf32>
    tpu.vector_store %arg8[%c8, %c0_7], %7 {strides = array<i32>} : memref<64x114xf32, #tpu.memory_space<vmem>>, vector<8x114xf32>,
    %c0_8 = arith.constant 0 : index
    %c2 = arith.constant 2 : index
    %c0_9 = arith.constant 0 : index
    %9 = vector.load %arg1[%c0_8, %c2, %c0_9] : memref<8x8x114xf32, #tpu.memory_space<vmem>>, vector<8x1x114xf32>
    %10 = vector.shape_cast %9 : vector<8x1x114xf32> to vector<8x114xf32>
    %c16 = arith.constant 16 : index
    %c0_10 = arith.constant 0 : index
    %11 = vector.load %arg8[%c16, %c0_10] : memref<64x114xf32, #tpu.memory_space<vmem>>, vector<8x114xf32>
    tpu.vector_store %arg8[%c16, %c0_10], %10 {strides = array<i32>} : memref<64x114xf32, #tpu.memory_space<vmem>>, vector<8x114xf32>,
    %c0_11 = arith.constant 0 : index
    %c3 = arith.constant 3 : index
    %c0_12 = arith.constant 0 : index
    %12 = vector.load %arg1[%c0_11, %c3, %c0_12] : memref<8x8x114xf32, #tpu.memory_space<vmem>>, vector<8x1x114xf32>
    %13 = vector.shape_cast %12 : vector<8x1x114xf32> to vector<8x114xf32>
    %c24 = arith.constant 24 : index
    %c0_13 = arith.constant 0 : index
    %14 = vector.load %arg8[%c24, %c0_13] : memref<64x114xf32, #tpu.memory_space<vmem>>, vector<8x114xf32>
    tpu.vector_store %arg8[%c24, %c0_13], %13 {strides = array<i32>} : memref<64x114xf32, #tpu.memory_space<vmem>>, vector<8x114xf32>,
    %c0_14 = arith.constant 0 : index
    %c4 = arith.constant 4 : index
    %c0_15 = arith.constant 0 : index
    %15 = vector.load %arg1[%c0_14, %c4, %c0_15] : memref<8x8x114xf32, #tpu.memory_space<vmem>>, vector<8x1x114xf32>
    %16 = vector.shape_cast %15 : vector<8x1x114xf32> to vector<8x114xf32>
    %c32 = arith.constant 32 : index
    %c0_16 = arith.constant 0 : index
    %17 = vector.load %arg8[%c32, %c0_16] : memref<64x114xf32, #tpu.memory_space<vmem>>, vector<8x114xf32>
    tpu.vector_store %arg8[%c32, %c0_16], %16 {strides = array<i32>} : memref<64x114xf32, #tpu.memory_space<vmem>>, vector<8x114xf32>,
    %c0_17 = arith.constant 0 : index
    %c5 = arith.constant 5 : index
    %c0_18 = arith.constant 0 : index
    %18 = vector.load %arg1[%c0_17, %c5, %c0_18] : memref<8x8x114xf32, #tpu.memory_space<vmem>>, vector<8x1x114xf32>
    %19 = vector.shape_cast %18 : vector<8x1x114xf32> to vector<8x114xf32>
    %c40 = arith.constant 40 : index
    %c0_19 = arith.constant 0 : index
    %20 = vector.load %arg8[%c40, %c0_19] : memref<64x114xf32, #tpu.memory_space<vmem>>, vector<8x114xf32>
    tpu.vector_store %arg8[%c40, %c0_19], %19 {strides = array<i32>} : memref<64x114xf32, #tpu.memory_space<vmem>>, vector<8x114xf32>,
    %c0_20 = arith.constant 0 : index
    %c6 = arith.constant 6 : index
    %c0_21 = arith.constant 0 : index
    %21 = vector.load %arg1[%c0_20, %c6, %c0_21] : memref<8x8x114xf32, #tpu.memory_space<vmem>>, vector<8x1x114xf32>
    %22 = vector.shape_cast %21 : vector<8x1x114xf32> to vector<8x114xf32>
    %c48 = arith.constant 48 : index
    %c0_22 = arith.constant 0 : index
    %23 = vector.load %arg8[%c48, %c0_22] : memref<64x114xf32, #tpu.memory_space<vmem>>, vector<8x114xf32>
    tpu.vector_store %arg8[%c48, %c0_22], %22 {strides = array<i32>} : memref<64x114xf32, #tpu.memory_space<vmem>>, vector<8x114xf32>,
    %c0_23 = arith.constant 0 : index
    %c7 = arith.constant 7 : index
    %c0_24 = arith.constant 0 : index
    %24 = vector.load %arg1[%c0_23, %c7, %c0_24] : memref<8x8x114xf32, #tpu.memory_space<vmem>>, vector<8x1x114xf32>
    %25 = vector.shape_cast %24 : vector<8x1x114xf32> to vector<8x114xf32>
    %c56 = arith.constant 56 : index
    %c0_25 = arith.constant 0 : index
    %26 = vector.load %arg8[%c56, %c0_25] : memref<64x114xf32, #tpu.memory_space<vmem>>, vector<8x114xf32>
    tpu.vector_store %arg8[%c56, %c0_25], %25 {strides = array<i32>} : memref<64x114xf32, #tpu.memory_space<vmem>>, vector<8x114xf32>,
    %c0_26 = arith.constant 0 : index
    %c0_27 = arith.constant 0 : index
    %27 = vector.load %arg8[%c0_26, %c0_27] : memref<64x114xf32, #tpu.memory_space<vmem>>, vector<64x114xf32>
    %28 = arith.truncf %27 : vector<64x114xf32> to vector<64x114xbf16>
    %c0_28 = arith.constant 0 : index
    %c0_29 = arith.constant 0 : index
    %29 = vector.load %arg2[%c0_28, %c0_29] : memref<114x384xbf16, #tpu.memory_space<vmem>>, vector<114x384xbf16>
    %cst = arith.constant dense<0.000000e+00> : vector<64x384xf32>
    %30 = tpu.matmul %28, %29, %cst {dimension_numbers = #tpu.dot_dimension_numbers<[1], [0], [0], [1], [0, 0, 1, 1], [], []>} : vector<64x114xbf16>, vector<114x384xbf16>, vector<64x384xf32> -> vector<64x384xf32>
    %c0_30 = arith.constant 0 : index
    %c0_31 = arith.constant 0 : index
    %31 = vector.load %arg4[%c0_30, %c0_31] : memref<1x384xf32, #tpu.memory_space<vmem>>, vector<1x384xf32>
    %32 = vector.broadcast %31 : vector<1x384xf32> to vector<64x384xf32>
    %33 = arith.addf %30, %32 : vector<64x384xf32>
    %c0_32 = arith.constant 0 : index
    %c0_33 = arith.constant 0 : index
    %34 = vector.load %arg9[%c0_32, %c0_33] : memref<64x384xf32, #tpu.memory_space<vmem>>, vector<64x384xf32>
    tpu.vector_store %arg9[%c0_32, %c0_33], %33 {strides = array<i32>} : memref<64x384xf32, #tpu.memory_space<vmem>>, vector<64x384xf32>,
    %c0_34 = arith.constant 0 : index
    %c0_35 = arith.constant 0 : index
    %35 = vector.load %arg3[%c0_34, %c0_35] : memref<128x384xbf16, #tpu.memory_space<vmem>>, vector<128x384xbf16>
    %c0_36 = arith.constant 0 : index
    %c0_37 = arith.constant 0 : index
    %36 = vector.load %arg5[%c0_36, %c0_37] : memref<1x128xf32, #tpu.memory_space<vmem>>, vector<1x128xf32>
    %c0_38 = arith.constant 0 : index
    %c0_39 = arith.constant 0 : index
    %37 = vector.load %arg7[%c0_38, %c0_39] : memref<8x128xf32, #tpu.memory_space<vmem>>, vector<8x128xf32>
    %c0_i32_40 = arith.constant 0 : i32
    %c8_i32 = arith.constant 8 : i32
    %38 = arith.muli %c0_i32_40, %c8_i32 : i32
    %39 = tpu.assume_multiple %38, 8 : i32
    %40 = arith.index_cast %39 : i32 to index
    %c0_41 = arith.constant 0 : index
    %41 = vector.load %arg9[%40, %c0_41] : memref<64x384xf32, #tpu.memory_space<vmem>>, vector<8x384xf32>
    %42 = arith.truncf %37 : vector<8x128xf32> to vector<8x128xbf16>
    %cst_42 = arith.constant dense<0.000000e+00> : vector<8x384xf32>
    %43 = tpu.matmul %42, %35, %cst_42 {dimension_numbers = #tpu.dot_dimension_numbers<[1], [0], [0], [1], [0, 0, 1, 1], [], []>} : vector<8x128xbf16>, vector<128x384xbf16>, vector<8x384xf32> -> vector<8x384xf32>
    %44 = vector.extract_strided_slice %41 {offsets = [0, 0], sizes = [8, 256], strides = [1, 1]} : vector<8x384xf32> to vector<8x256xf32>
    %45 = vector.extract_strided_slice %43 {offsets = [0, 0], sizes = [8, 256], strides = [1, 1]} : vector<8x384xf32> to vector<8x256xf32>
    %46 = arith.addf %44, %45 : vector<8x256xf32>
    %47 = arith.negf %46 : vector<8x256xf32>
    %48 = math.exp %47 : vector<8x256xf32>
    %cst_43 = arith.constant 1.000000e+00 : f32
    %49 = vector.broadcast %cst_43 : f32 to vector<8x256xf32>
    %50 = arith.addf %49, %48 : vector<8x256xf32>
    %51 = arith.divf %49, %50 : vector<8x256xf32>
    %52 = vector.extract_strided_slice %51 {offsets = [0, 0], sizes = [8, 128], strides = [1, 1]} : vector<8x256xf32> to vector<8x128xf32>
    %53 = vector.extract_strided_slice %51 {offsets = [0, 128], sizes = [8, 128], strides = [1, 1]} : vector<8x256xf32> to vector<8x128xf32>
    %54 = vector.extract_strided_slice %41 {offsets = [0, 256], sizes = [8, 128], strides = [1, 1]} : vector<8x384xf32> to vector<8x128xf32>
    %55 = vector.extract_strided_slice %43 {offsets = [0, 256], sizes = [8, 128], strides = [1, 1]} : vector<8x384xf32> to vector<8x128xf32>
    %56 = vector.broadcast %36 : vector<1x128xf32> to vector<8x128xf32>
    %57 = arith.addf %55, %56 : vector<8x128xf32>
    %58 = arith.mulf %52, %57 : vector<8x128xf32>
    %59 = arith.addf %54, %58 : vector<8x128xf32>
    %60 = math.tanh %59 : vector<8x128xf32>
    %cst_44 = arith.constant 1.000000e+00 : f32
    %61 = vector.broadcast %cst_44 : f32 to vector<8x128xf32>
    %62 = arith.subf %61, %53 : vector<8x128xf32>
    %63 = arith.mulf %62, %60 : vector<8x128xf32>
    %64 = arith.mulf %53, %37 : vector<8x128xf32>
    %65 = arith.addf %63, %64 : vector<8x128xf32>
    %66 = arith.index_cast %c0_i32_40 : i32 to index
    %c0_45 = arith.constant 0 : index
    %c0_46 = arith.constant 0 : index
    %67 = vector.load %arg10[%66, %c0_45, %c0_46] : memref<8x8x128xf32, #tpu.memory_space<vmem>>, vector<1x8x128xf32>
    %68 = vector.shape_cast %67 : vector<1x8x128xf32> to vector<8x128xf32>
    %69 = vector.shape_cast %65 : vector<8x128xf32> to vector<1x8x128xf32>
    tpu.vector_store %arg10[%66, %c0_45, %c0_46], %69 {strides = array<i32>} : memref<8x8x128xf32, #tpu.memory_space<vmem>>, vector<1x8x128xf32>,
    %c1_i32 = arith.constant 1 : i32
    %c8_i32_47 = arith.constant 8 : i32
    %70 = arith.muli %c1_i32, %c8_i32_47 : i32
    %71 = tpu.assume_multiple %70, 8 : i32
    %72 = arith.index_cast %71 : i32 to index
    %c0_48 = arith.constant 0 : index
    %73 = vector.load %arg9[%72, %c0_48] : memref<64x384xf32, #tpu.memory_space<vmem>>, vector<8x384xf32>
    %74 = arith.truncf %65 : vector<8x128xf32> to vector<8x128xbf16>
    %cst_49 = arith.constant dense<0.000000e+00> : vector<8x384xf32>
    %75 = tpu.matmul %74, %35, %cst_49 {dimension_numbers = #tpu.dot_dimension_numbers<[1], [0], [0], [1], [0, 0, 1, 1], [], []>} : vector<8x128xbf16>, vector<128x384xbf16>, vector<8x384xf32> -> vector<8x384xf32>
    %76 = vector.extract_strided_slice %73 {offsets = [0, 0], sizes = [8, 256], strides = [1, 1]} : vector<8x384xf32> to vector<8x256xf32>
    %77 = vector.extract_strided_slice %75 {offsets = [0, 0], sizes = [8, 256], strides = [1, 1]} : vector<8x384xf32> to vector<8x256xf32>
    %78 = arith.addf %76, %77 : vector<8x256xf32>
    %79 = arith.negf %78 : vector<8x256xf32>
    %80 = math.exp %79 : vector<8x256xf32>
    %cst_50 = arith.constant 1.000000e+00 : f32
    %81 = vector.broadcast %cst_50 : f32 to vector<8x256xf32>
    %82 = arith.addf %81, %80 : vector<8x256xf32>
    %83 = arith.divf %81, %82 : vector<8x256xf32>
    %84 = vector.extract_strided_slice %83 {offsets = [0, 0], sizes = [8, 128], strides = [1, 1]} : vector<8x256xf32> to vector<8x128xf32>
    %85 = vector.extract_strided_slice %83 {offsets = [0, 128], sizes = [8, 128], strides = [1, 1]} : vector<8x256xf32> to vector<8x128xf32>
    %86 = vector.extract_strided_slice %73 {offsets = [0, 256], sizes = [8, 128], strides = [1, 1]} : vector<8x384xf32> to vector<8x128xf32>
    %87 = vector.extract_strided_slice %75 {offsets = [0, 256], sizes = [8, 128], strides = [1, 1]} : vector<8x384xf32> to vector<8x128xf32>
    %88 = vector.broadcast %36 : vector<1x128xf32> to vector<8x128xf32>
    %89 = arith.addf %87, %88 : vector<8x128xf32>
    %90 = arith.mulf %84, %89 : vector<8x128xf32>
    %91 = arith.addf %86, %90 : vector<8x128xf32>
    %92 = math.tanh %91 : vector<8x128xf32>
    %cst_51 = arith.constant 1.000000e+00 : f32
    %93 = vector.broadcast %cst_51 : f32 to vector<8x128xf32>
    %94 = arith.subf %93, %85 : vector<8x128xf32>
    %95 = arith.mulf %94, %92 : vector<8x128xf32>
    %96 = arith.mulf %85, %65 : vector<8x128xf32>
    %97 = arith.addf %95, %96 : vector<8x128xf32>
    %98 = arith.index_cast %c1_i32 : i32 to index
    %c0_52 = arith.constant 0 : index
    %c0_53 = arith.constant 0 : index
    %99 = vector.load %arg10[%98, %c0_52, %c0_53] : memref<8x8x128xf32, #tpu.memory_space<vmem>>, vector<1x8x128xf32>
    %100 = vector.shape_cast %99 : vector<1x8x128xf32> to vector<8x128xf32>
    %101 = vector.shape_cast %97 : vector<8x128xf32> to vector<1x8x128xf32>
    tpu.vector_store %arg10[%98, %c0_52, %c0_53], %101 {strides = array<i32>} : memref<8x8x128xf32, #tpu.memory_space<vmem>>, vector<1x8x128xf32>,
    %c2_i32 = arith.constant 2 : i32
    %c8_i32_54 = arith.constant 8 : i32
    %102 = arith.muli %c2_i32, %c8_i32_54 : i32
    %103 = tpu.assume_multiple %102, 8 : i32
    %104 = arith.index_cast %103 : i32 to index
    %c0_55 = arith.constant 0 : index
    %105 = vector.load %arg9[%104, %c0_55] : memref<64x384xf32, #tpu.memory_space<vmem>>, vector<8x384xf32>
    %106 = arith.truncf %97 : vector<8x128xf32> to vector<8x128xbf16>
    %cst_56 = arith.constant dense<0.000000e+00> : vector<8x384xf32>
    %107 = tpu.matmul %106, %35, %cst_56 {dimension_numbers = #tpu.dot_dimension_numbers<[1], [0], [0], [1], [0, 0, 1, 1], [], []>} : vector<8x128xbf16>, vector<128x384xbf16>, vector<8x384xf32> -> vector<8x384xf32>
    %108 = vector.extract_strided_slice %105 {offsets = [0, 0], sizes = [8, 256], strides = [1, 1]} : vector<8x384xf32> to vector<8x256xf32>
    %109 = vector.extract_strided_slice %107 {offsets = [0, 0], sizes = [8, 256], strides = [1, 1]} : vector<8x384xf32> to vector<8x256xf32>
    %110 = arith.addf %108, %109 : vector<8x256xf32>
    %111 = arith.negf %110 : vector<8x256xf32>
    %112 = math.exp %111 : vector<8x256xf32>
    %cst_57 = arith.constant 1.000000e+00 : f32
    %113 = vector.broadcast %cst_57 : f32 to vector<8x256xf32>
    %114 = arith.addf %113, %112 : vector<8x256xf32>
    %115 = arith.divf %113, %114 : vector<8x256xf32>
    %116 = vector.extract_strided_slice %115 {offsets = [0, 0], sizes = [8, 128], strides = [1, 1]} : vector<8x256xf32> to vector<8x128xf32>
    %117 = vector.extract_strided_slice %115 {offsets = [0, 128], sizes = [8, 128], strides = [1, 1]} : vector<8x256xf32> to vector<8x128xf32>
    %118 = vector.extract_strided_slice %105 {offsets = [0, 256], sizes = [8, 128], strides = [1, 1]} : vector<8x384xf32> to vector<8x128xf32>
    %119 = vector.extract_strided_slice %107 {offsets = [0, 256], sizes = [8, 128], strides = [1, 1]} : vector<8x384xf32> to vector<8x128xf32>
    %120 = vector.broadcast %36 : vector<1x128xf32> to vector<8x128xf32>
    %121 = arith.addf %119, %120 : vector<8x128xf32>
    %122 = arith.mulf %116, %121 : vector<8x128xf32>
    %123 = arith.addf %118, %122 : vector<8x128xf32>
    %124 = math.tanh %123 : vector<8x128xf32>
    %cst_58 = arith.constant 1.000000e+00 : f32
    %125 = vector.broadcast %cst_58 : f32 to vector<8x128xf32>
    %126 = arith.subf %125, %117 : vector<8x128xf32>
    %127 = arith.mulf %126, %124 : vector<8x128xf32>
    %128 = arith.mulf %117, %97 : vector<8x128xf32>
    %129 = arith.addf %127, %128 : vector<8x128xf32>
    %130 = arith.index_cast %c2_i32 : i32 to index
    %c0_59 = arith.constant 0 : index
    %c0_60 = arith.constant 0 : index
    %131 = vector.load %arg10[%130, %c0_59, %c0_60] : memref<8x8x128xf32, #tpu.memory_space<vmem>>, vector<1x8x128xf32>
    %132 = vector.shape_cast %131 : vector<1x8x128xf32> to vector<8x128xf32>
    %133 = vector.shape_cast %129 : vector<8x128xf32> to vector<1x8x128xf32>
    tpu.vector_store %arg10[%130, %c0_59, %c0_60], %133 {strides = array<i32>} : memref<8x8x128xf32, #tpu.memory_space<vmem>>, vector<1x8x128xf32>,
    %c3_i32 = arith.constant 3 : i32
    %c8_i32_61 = arith.constant 8 : i32
    %134 = arith.muli %c3_i32, %c8_i32_61 : i32
    %135 = tpu.assume_multiple %134, 8 : i32
    %136 = arith.index_cast %135 : i32 to index
    %c0_62 = arith.constant 0 : index
    %137 = vector.load %arg9[%136, %c0_62] : memref<64x384xf32, #tpu.memory_space<vmem>>, vector<8x384xf32>
    %138 = arith.truncf %129 : vector<8x128xf32> to vector<8x128xbf16>
    %cst_63 = arith.constant dense<0.000000e+00> : vector<8x384xf32>
    %139 = tpu.matmul %138, %35, %cst_63 {dimension_numbers = #tpu.dot_dimension_numbers<[1], [0], [0], [1], [0, 0, 1, 1], [], []>} : vector<8x128xbf16>, vector<128x384xbf16>, vector<8x384xf32> -> vector<8x384xf32>
    %140 = vector.extract_strided_slice %137 {offsets = [0, 0], sizes = [8, 256], strides = [1, 1]} : vector<8x384xf32> to vector<8x256xf32>
    %141 = vector.extract_strided_slice %139 {offsets = [0, 0], sizes = [8, 256], strides = [1, 1]} : vector<8x384xf32> to vector<8x256xf32>
    %142 = arith.addf %140, %141 : vector<8x256xf32>
    %143 = arith.negf %142 : vector<8x256xf32>
    %144 = math.exp %143 : vector<8x256xf32>
    %cst_64 = arith.constant 1.000000e+00 : f32
    %145 = vector.broadcast %cst_64 : f32 to vector<8x256xf32>
    %146 = arith.addf %145, %144 : vector<8x256xf32>
    %147 = arith.divf %145, %146 : vector<8x256xf32>
    %148 = vector.extract_strided_slice %147 {offsets = [0, 0], sizes = [8, 128], strides = [1, 1]} : vector<8x256xf32> to vector<8x128xf32>
    %149 = vector.extract_strided_slice %147 {offsets = [0, 128], sizes = [8, 128], strides = [1, 1]} : vector<8x256xf32> to vector<8x128xf32>
    %150 = vector.extract_strided_slice %137 {offsets = [0, 256], sizes = [8, 128], strides = [1, 1]} : vector<8x384xf32> to vector<8x128xf32>
    %151 = vector.extract_strided_slice %139 {offsets = [0, 256], sizes = [8, 128], strides = [1, 1]} : vector<8x384xf32> to vector<8x128xf32>
    %152 = vector.broadcast %36 : vector<1x128xf32> to vector<8x128xf32>
    %153 = arith.addf %151, %152 : vector<8x128xf32>
    %154 = arith.mulf %148, %153 : vector<8x128xf32>
    %155 = arith.addf %150, %154 : vector<8x128xf32>
    %156 = math.tanh %155 : vector<8x128xf32>
    %cst_65 = arith.constant 1.000000e+00 : f32
    %157 = vector.broadcast %cst_65 : f32 to vector<8x128xf32>
    %158 = arith.subf %157, %149 : vector<8x128xf32>
    %159 = arith.mulf %158, %156 : vector<8x128xf32>
    %160 = arith.mulf %149, %129 : vector<8x128xf32>
    %161 = arith.addf %159, %160 : vector<8x128xf32>
    %162 = arith.index_cast %c3_i32 : i32 to index
    %c0_66 = arith.constant 0 : index
    %c0_67 = arith.constant 0 : index
    %163 = vector.load %arg10[%162, %c0_66, %c0_67] : memref<8x8x128xf32, #tpu.memory_space<vmem>>, vector<1x8x128xf32>
    %164 = vector.shape_cast %163 : vector<1x8x128xf32> to vector<8x128xf32>
    %165 = vector.shape_cast %161 : vector<8x128xf32> to vector<1x8x128xf32>
    tpu.vector_store %arg10[%162, %c0_66, %c0_67], %165 {strides = array<i32>} : memref<8x8x128xf32, #tpu.memory_space<vmem>>, vector<1x8x128xf32>,
    %c4_i32 = arith.constant 4 : i32
    %c8_i32_68 = arith.constant 8 : i32
    %166 = arith.muli %c4_i32, %c8_i32_68 : i32
    %167 = tpu.assume_multiple %166, 8 : i32
    %168 = arith.index_cast %167 : i32 to index
    %c0_69 = arith.constant 0 : index
    %169 = vector.load %arg9[%168, %c0_69] : memref<64x384xf32, #tpu.memory_space<vmem>>, vector<8x384xf32>
    %170 = arith.truncf %161 : vector<8x128xf32> to vector<8x128xbf16>
    %cst_70 = arith.constant dense<0.000000e+00> : vector<8x384xf32>
    %171 = tpu.matmul %170, %35, %cst_70 {dimension_numbers = #tpu.dot_dimension_numbers<[1], [0], [0], [1], [0, 0, 1, 1], [], []>} : vector<8x128xbf16>, vector<128x384xbf16>, vector<8x384xf32> -> vector<8x384xf32>
    %172 = vector.extract_strided_slice %169 {offsets = [0, 0], sizes = [8, 256], strides = [1, 1]} : vector<8x384xf32> to vector<8x256xf32>
    %173 = vector.extract_strided_slice %171 {offsets = [0, 0], sizes = [8, 256], strides = [1, 1]} : vector<8x384xf32> to vector<8x256xf32>
    %174 = arith.addf %172, %173 : vector<8x256xf32>
    %175 = arith.negf %174 : vector<8x256xf32>
    %176 = math.exp %175 : vector<8x256xf32>
    %cst_71 = arith.constant 1.000000e+00 : f32
    %177 = vector.broadcast %cst_71 : f32 to vector<8x256xf32>
    %178 = arith.addf %177, %176 : vector<8x256xf32>
    %179 = arith.divf %177, %178 : vector<8x256xf32>
    %180 = vector.extract_strided_slice %179 {offsets = [0, 0], sizes = [8, 128], strides = [1, 1]} : vector<8x256xf32> to vector<8x128xf32>
    %181 = vector.extract_strided_slice %179 {offsets = [0, 128], sizes = [8, 128], strides = [1, 1]} : vector<8x256xf32> to vector<8x128xf32>
    %182 = vector.extract_strided_slice %169 {offsets = [0, 256], sizes = [8, 128], strides = [1, 1]} : vector<8x384xf32> to vector<8x128xf32>
    %183 = vector.extract_strided_slice %171 {offsets = [0, 256], sizes = [8, 128], strides = [1, 1]} : vector<8x384xf32> to vector<8x128xf32>
    %184 = vector.broadcast %36 : vector<1x128xf32> to vector<8x128xf32>
    %185 = arith.addf %183, %184 : vector<8x128xf32>
    %186 = arith.mulf %180, %185 : vector<8x128xf32>
    %187 = arith.addf %182, %186 : vector<8x128xf32>
    %188 = math.tanh %187 : vector<8x128xf32>
    %cst_72 = arith.constant 1.000000e+00 : f32
    %189 = vector.broadcast %cst_72 : f32 to vector<8x128xf32>
    %190 = arith.subf %189, %181 : vector<8x128xf32>
    %191 = arith.mulf %190, %188 : vector<8x128xf32>
    %192 = arith.mulf %181, %161 : vector<8x128xf32>
    %193 = arith.addf %191, %192 : vector<8x128xf32>
    %194 = arith.index_cast %c4_i32 : i32 to index
    %c0_73 = arith.constant 0 : index
    %c0_74 = arith.constant 0 : index
    %195 = vector.load %arg10[%194, %c0_73, %c0_74] : memref<8x8x128xf32, #tpu.memory_space<vmem>>, vector<1x8x128xf32>
    %196 = vector.shape_cast %195 : vector<1x8x128xf32> to vector<8x128xf32>
    %197 = vector.shape_cast %193 : vector<8x128xf32> to vector<1x8x128xf32>
    tpu.vector_store %arg10[%194, %c0_73, %c0_74], %197 {strides = array<i32>} : memref<8x8x128xf32, #tpu.memory_space<vmem>>, vector<1x8x128xf32>,
    %c5_i32 = arith.constant 5 : i32
    %c8_i32_75 = arith.constant 8 : i32
    %198 = arith.muli %c5_i32, %c8_i32_75 : i32
    %199 = tpu.assume_multiple %198, 8 : i32
    %200 = arith.index_cast %199 : i32 to index
    %c0_76 = arith.constant 0 : index
    %201 = vector.load %arg9[%200, %c0_76] : memref<64x384xf32, #tpu.memory_space<vmem>>, vector<8x384xf32>
    %202 = arith.truncf %193 : vector<8x128xf32> to vector<8x128xbf16>
    %cst_77 = arith.constant dense<0.000000e+00> : vector<8x384xf32>
    %203 = tpu.matmul %202, %35, %cst_77 {dimension_numbers = #tpu.dot_dimension_numbers<[1], [0], [0], [1], [0, 0, 1, 1], [], []>} : vector<8x128xbf16>, vector<128x384xbf16>, vector<8x384xf32> -> vector<8x384xf32>
    %204 = vector.extract_strided_slice %201 {offsets = [0, 0], sizes = [8, 256], strides = [1, 1]} : vector<8x384xf32> to vector<8x256xf32>
    %205 = vector.extract_strided_slice %203 {offsets = [0, 0], sizes = [8, 256], strides = [1, 1]} : vector<8x384xf32> to vector<8x256xf32>
    %206 = arith.addf %204, %205 : vector<8x256xf32>
    %207 = arith.negf %206 : vector<8x256xf32>
    %208 = math.exp %207 : vector<8x256xf32>
    %cst_78 = arith.constant 1.000000e+00 : f32
    %209 = vector.broadcast %cst_78 : f32 to vector<8x256xf32>
    %210 = arith.addf %209, %208 : vector<8x256xf32>
    %211 = arith.divf %209, %210 : vector<8x256xf32>
    %212 = vector.extract_strided_slice %211 {offsets = [0, 0], sizes = [8, 128], strides = [1, 1]} : vector<8x256xf32> to vector<8x128xf32>
    %213 = vector.extract_strided_slice %211 {offsets = [0, 128], sizes = [8, 128], strides = [1, 1]} : vector<8x256xf32> to vector<8x128xf32>
    %214 = vector.extract_strided_slice %201 {offsets = [0, 256], sizes = [8, 128], strides = [1, 1]} : vector<8x384xf32> to vector<8x128xf32>
    %215 = vector.extract_strided_slice %203 {offsets = [0, 256], sizes = [8, 128], strides = [1, 1]} : vector<8x384xf32> to vector<8x128xf32>
    %216 = vector.broadcast %36 : vector<1x128xf32> to vector<8x128xf32>
    %217 = arith.addf %215, %216 : vector<8x128xf32>
    %218 = arith.mulf %212, %217 : vector<8x128xf32>
    %219 = arith.addf %214, %218 : vector<8x128xf32>
    %220 = math.tanh %219 : vector<8x128xf32>
    %cst_79 = arith.constant 1.000000e+00 : f32
    %221 = vector.broadcast %cst_79 : f32 to vector<8x128xf32>
    %222 = arith.subf %221, %213 : vector<8x128xf32>
    %223 = arith.mulf %222, %220 : vector<8x128xf32>
    %224 = arith.mulf %213, %193 : vector<8x128xf32>
    %225 = arith.addf %223, %224 : vector<8x128xf32>
    %226 = arith.index_cast %c5_i32 : i32 to index
    %c0_80 = arith.constant 0 : index
    %c0_81 = arith.constant 0 : index
    %227 = vector.load %arg10[%226, %c0_80, %c0_81] : memref<8x8x128xf32, #tpu.memory_space<vmem>>, vector<1x8x128xf32>
    %228 = vector.shape_cast %227 : vector<1x8x128xf32> to vector<8x128xf32>
    %229 = vector.shape_cast %225 : vector<8x128xf32> to vector<1x8x128xf32>
    tpu.vector_store %arg10[%226, %c0_80, %c0_81], %229 {strides = array<i32>} : memref<8x8x128xf32, #tpu.memory_space<vmem>>, vector<1x8x128xf32>,
    %c6_i32 = arith.constant 6 : i32
    %c8_i32_82 = arith.constant 8 : i32
    %230 = arith.muli %c6_i32, %c8_i32_82 : i32
    %231 = tpu.assume_multiple %230, 8 : i32
    %232 = arith.index_cast %231 : i32 to index
    %c0_83 = arith.constant 0 : index
    %233 = vector.load %arg9[%232, %c0_83] : memref<64x384xf32, #tpu.memory_space<vmem>>, vector<8x384xf32>
    %234 = arith.truncf %225 : vector<8x128xf32> to vector<8x128xbf16>
    %cst_84 = arith.constant dense<0.000000e+00> : vector<8x384xf32>
    %235 = tpu.matmul %234, %35, %cst_84 {dimension_numbers = #tpu.dot_dimension_numbers<[1], [0], [0], [1], [0, 0, 1, 1], [], []>} : vector<8x128xbf16>, vector<128x384xbf16>, vector<8x384xf32> -> vector<8x384xf32>
    %236 = vector.extract_strided_slice %233 {offsets = [0, 0], sizes = [8, 256], strides = [1, 1]} : vector<8x384xf32> to vector<8x256xf32>
    %237 = vector.extract_strided_slice %235 {offsets = [0, 0], sizes = [8, 256], strides = [1, 1]} : vector<8x384xf32> to vector<8x256xf32>
    %238 = arith.addf %236, %237 : vector<8x256xf32>
    %239 = arith.negf %238 : vector<8x256xf32>
    %240 = math.exp %239 : vector<8x256xf32>
    %cst_85 = arith.constant 1.000000e+00 : f32
    %241 = vector.broadcast %cst_85 : f32 to vector<8x256xf32>
    %242 = arith.addf %241, %240 : vector<8x256xf32>
    %243 = arith.divf %241, %242 : vector<8x256xf32>
    %244 = vector.extract_strided_slice %243 {offsets = [0, 0], sizes = [8, 128], strides = [1, 1]} : vector<8x256xf32> to vector<8x128xf32>
    %245 = vector.extract_strided_slice %243 {offsets = [0, 128], sizes = [8, 128], strides = [1, 1]} : vector<8x256xf32> to vector<8x128xf32>
    %246 = vector.extract_strided_slice %233 {offsets = [0, 256], sizes = [8, 128], strides = [1, 1]} : vector<8x384xf32> to vector<8x128xf32>
    %247 = vector.extract_strided_slice %235 {offsets = [0, 256], sizes = [8, 128], strides = [1, 1]} : vector<8x384xf32> to vector<8x128xf32>
    %248 = vector.broadcast %36 : vector<1x128xf32> to vector<8x128xf32>
    %249 = arith.addf %247, %248 : vector<8x128xf32>
    %250 = arith.mulf %244, %249 : vector<8x128xf32>
    %251 = arith.addf %246, %250 : vector<8x128xf32>
    %252 = math.tanh %251 : vector<8x128xf32>
    %cst_86 = arith.constant 1.000000e+00 : f32
    %253 = vector.broadcast %cst_86 : f32 to vector<8x128xf32>
    %254 = arith.subf %253, %245 : vector<8x128xf32>
    %255 = arith.mulf %254, %252 : vector<8x128xf32>
    %256 = arith.mulf %245, %225 : vector<8x128xf32>
    %257 = arith.addf %255, %256 : vector<8x128xf32>
    %258 = arith.index_cast %c6_i32 : i32 to index
    %c0_87 = arith.constant 0 : index
    %c0_88 = arith.constant 0 : index
    %259 = vector.load %arg10[%258, %c0_87, %c0_88] : memref<8x8x128xf32, #tpu.memory_space<vmem>>, vector<1x8x128xf32>
    %260 = vector.shape_cast %259 : vector<1x8x128xf32> to vector<8x128xf32>
    %261 = vector.shape_cast %257 : vector<8x128xf32> to vector<1x8x128xf32>
    tpu.vector_store %arg10[%258, %c0_87, %c0_88], %261 {strides = array<i32>} : memref<8x8x128xf32, #tpu.memory_space<vmem>>, vector<1x8x128xf32>,
    %c7_i32 = arith.constant 7 : i32
    %c8_i32_89 = arith.constant 8 : i32
    %262 = arith.muli %c7_i32, %c8_i32_89 : i32
    %263 = tpu.assume_multiple %262, 8 : i32
    %264 = arith.index_cast %263 : i32 to index
    %c0_90 = arith.constant 0 : index
    %265 = vector.load %arg9[%264, %c0_90] : memref<64x384xf32, #tpu.memory_space<vmem>>, vector<8x384xf32>
    %266 = arith.truncf %257 : vector<8x128xf32> to vector<8x128xbf16>
    %cst_91 = arith.constant dense<0.000000e+00> : vector<8x384xf32>
    %267 = tpu.matmul %266, %35, %cst_91 {dimension_numbers = #tpu.dot_dimension_numbers<[1], [0], [0], [1], [0, 0, 1, 1], [], []>} : vector<8x128xbf16>, vector<128x384xbf16>, vector<8x384xf32> -> vector<8x384xf32>
    %268 = vector.extract_strided_slice %265 {offsets = [0, 0], sizes = [8, 256], strides = [1, 1]} : vector<8x384xf32> to vector<8x256xf32>
    %269 = vector.extract_strided_slice %267 {offsets = [0, 0], sizes = [8, 256], strides = [1, 1]} : vector<8x384xf32> to vector<8x256xf32>
    %270 = arith.addf %268, %269 : vector<8x256xf32>
    %271 = arith.negf %270 : vector<8x256xf32>
    %272 = math.exp %271 : vector<8x256xf32>
    %cst_92 = arith.constant 1.000000e+00 : f32
    %273 = vector.broadcast %cst_92 : f32 to vector<8x256xf32>
    %274 = arith.addf %273, %272 : vector<8x256xf32>
    %275 = arith.divf %273, %274 : vector<8x256xf32>
    %276 = vector.extract_strided_slice %275 {offsets = [0, 0], sizes = [8, 128], strides = [1, 1]} : vector<8x256xf32> to vector<8x128xf32>
    %277 = vector.extract_strided_slice %275 {offsets = [0, 128], sizes = [8, 128], strides = [1, 1]} : vector<8x256xf32> to vector<8x128xf32>
    %278 = vector.extract_strided_slice %265 {offsets = [0, 256], sizes = [8, 128], strides = [1, 1]} : vector<8x384xf32> to vector<8x128xf32>
    %279 = vector.extract_strided_slice %267 {offsets = [0, 256], sizes = [8, 128], strides = [1, 1]} : vector<8x384xf32> to vector<8x128xf32>
    %280 = vector.broadcast %36 : vector<1x128xf32> to vector<8x128xf32>
    %281 = arith.addf %279, %280 : vector<8x128xf32>
    %282 = arith.mulf %276, %281 : vector<8x128xf32>
    %283 = arith.addf %278, %282 : vector<8x128xf32>
    %284 = math.tanh %283 : vector<8x128xf32>
    %cst_93 = arith.constant 1.000000e+00 : f32
    %285 = vector.broadcast %cst_93 : f32 to vector<8x128xf32>
    %286 = arith.subf %285, %277 : vector<8x128xf32>
    %287 = arith.mulf %286, %284 : vector<8x128xf32>
    %288 = arith.mulf %277, %257 : vector<8x128xf32>
    %289 = arith.addf %287, %288 : vector<8x128xf32>
    %290 = arith.index_cast %c7_i32 : i32 to index
    %c0_94 = arith.constant 0 : index
    %c0_95 = arith.constant 0 : index
    %291 = vector.load %arg10[%290, %c0_94, %c0_95] : memref<8x8x128xf32, #tpu.memory_space<vmem>>, vector<1x8x128xf32>
    %292 = vector.shape_cast %291 : vector<1x8x128xf32> to vector<8x128xf32>
    %293 = vector.shape_cast %289 : vector<8x128xf32> to vector<1x8x128xf32>
    tpu.vector_store %arg10[%290, %c0_94, %c0_95], %293 {strides = array<i32>} : memref<8x8x128xf32, #tpu.memory_space<vmem>>, vector<1x8x128xf32>,
    %c8_i32_96 = arith.constant 8 : i32
    %c0_97 = arith.constant 0 : index
    %c0_98 = arith.constant 0 : index
    %294 = vector.load %arg7[%c0_97, %c0_98] : memref<8x128xf32, #tpu.memory_space<vmem>>, vector<8x128xf32>
    tpu.vector_store %arg7[%c0_97, %c0_98], %289 {strides = array<i32>} : memref<8x128xf32, #tpu.memory_space<vmem>>, vector<8x128xf32>,
    %c0_99 = arith.constant 0 : index
    %c0_100 = arith.constant 0 : index
    %c0_101 = arith.constant 0 : index
    %295 = vector.load %arg10[%c0_99, %c0_100, %c0_101] : memref<8x8x128xf32, #tpu.memory_space<vmem>>, vector<8x1x128xf32>
    %296 = vector.shape_cast %295 : vector<8x1x128xf32> to vector<8x128xf32>
    %c0_102 = arith.constant 0 : index
    %c0_103 = arith.constant 0 : index
    %c0_104 = arith.constant 0 : index
    %297 = vector.load %arg6[%c0_102, %c0_103, %c0_104] : memref<8x8x128xf32, #tpu.memory_space<vmem>>, vector<1x8x128xf32>
    %298 = vector.shape_cast %297 : vector<1x8x128xf32> to vector<8x128xf32>
    %299 = vector.shape_cast %296 : vector<8x128xf32> to vector<1x8x128xf32>
    tpu.vector_store %arg6[%c0_102, %c0_103, %c0_104], %299 {strides = array<i32>} : memref<8x8x128xf32, #tpu.memory_space<vmem>>, vector<1x8x128xf32>,
    %c0_105 = arith.constant 0 : index
    %c1_106 = arith.constant 1 : index
    %c0_107 = arith.constant 0 : index
    %300 = vector.load %arg10[%c0_105, %c1_106, %c0_107] : memref<8x8x128xf32, #tpu.memory_space<vmem>>, vector<8x1x128xf32>
    %301 = vector.shape_cast %300 : vector<8x1x128xf32> to vector<8x128xf32>
    %c1_108 = arith.constant 1 : index
    %c0_109 = arith.constant 0 : index
    %c0_110 = arith.constant 0 : index
    %302 = vector.load %arg6[%c1_108, %c0_109, %c0_110] : memref<8x8x128xf32, #tpu.memory_space<vmem>>, vector<1x8x128xf32>
    %303 = vector.shape_cast %302 : vector<1x8x128xf32> to vector<8x128xf32>
    %304 = vector.shape_cast %301 : vector<8x128xf32> to vector<1x8x128xf32>
    tpu.vector_store %arg6[%c1_108, %c0_109, %c0_110], %304 {strides = array<i32>} : memref<8x8x128xf32, #tpu.memory_space<vmem>>, vector<1x8x128xf32>,
    %c0_111 = arith.constant 0 : index
    %c2_112 = arith.constant 2 : index
    %c0_113 = arith.constant 0 : index
    %305 = vector.load %arg10[%c0_111, %c2_112, %c0_113] : memref<8x8x128xf32, #tpu.memory_space<vmem>>, vector<8x1x128xf32>
    %306 = vector.shape_cast %305 : vector<8x1x128xf32> to vector<8x128xf32>
    %c2_114 = arith.constant 2 : index
    %c0_115 = arith.constant 0 : index
    %c0_116 = arith.constant 0 : index
    %307 = vector.load %arg6[%c2_114, %c0_115, %c0_116] : memref<8x8x128xf32, #tpu.memory_space<vmem>>, vector<1x8x128xf32>
    %308 = vector.shape_cast %307 : vector<1x8x128xf32> to vector<8x128xf32>
    %309 = vector.shape_cast %306 : vector<8x128xf32> to vector<1x8x128xf32>
    tpu.vector_store %arg6[%c2_114, %c0_115, %c0_116], %309 {strides = array<i32>} : memref<8x8x128xf32, #tpu.memory_space<vmem>>, vector<1x8x128xf32>,
    %c0_117 = arith.constant 0 : index
    %c3_118 = arith.constant 3 : index
    %c0_119 = arith.constant 0 : index
    %310 = vector.load %arg10[%c0_117, %c3_118, %c0_119] : memref<8x8x128xf32, #tpu.memory_space<vmem>>, vector<8x1x128xf32>
    %311 = vector.shape_cast %310 : vector<8x1x128xf32> to vector<8x128xf32>
    %c3_120 = arith.constant 3 : index
    %c0_121 = arith.constant 0 : index
    %c0_122 = arith.constant 0 : index
    %312 = vector.load %arg6[%c3_120, %c0_121, %c0_122] : memref<8x8x128xf32, #tpu.memory_space<vmem>>, vector<1x8x128xf32>
    %313 = vector.shape_cast %312 : vector<1x8x128xf32> to vector<8x128xf32>
    %314 = vector.shape_cast %311 : vector<8x128xf32> to vector<1x8x128xf32>
    tpu.vector_store %arg6[%c3_120, %c0_121, %c0_122], %314 {strides = array<i32>} : memref<8x8x128xf32, #tpu.memory_space<vmem>>, vector<1x8x128xf32>,
    %c0_123 = arith.constant 0 : index
    %c4_124 = arith.constant 4 : index
    %c0_125 = arith.constant 0 : index
    %315 = vector.load %arg10[%c0_123, %c4_124, %c0_125] : memref<8x8x128xf32, #tpu.memory_space<vmem>>, vector<8x1x128xf32>
    %316 = vector.shape_cast %315 : vector<8x1x128xf32> to vector<8x128xf32>
    %c4_126 = arith.constant 4 : index
    %c0_127 = arith.constant 0 : index
    %c0_128 = arith.constant 0 : index
    %317 = vector.load %arg6[%c4_126, %c0_127, %c0_128] : memref<8x8x128xf32, #tpu.memory_space<vmem>>, vector<1x8x128xf32>
    %318 = vector.shape_cast %317 : vector<1x8x128xf32> to vector<8x128xf32>
    %319 = vector.shape_cast %316 : vector<8x128xf32> to vector<1x8x128xf32>
    tpu.vector_store %arg6[%c4_126, %c0_127, %c0_128], %319 {strides = array<i32>} : memref<8x8x128xf32, #tpu.memory_space<vmem>>, vector<1x8x128xf32>,
    %c0_129 = arith.constant 0 : index
    %c5_130 = arith.constant 5 : index
    %c0_131 = arith.constant 0 : index
    %320 = vector.load %arg10[%c0_129, %c5_130, %c0_131] : memref<8x8x128xf32, #tpu.memory_space<vmem>>, vector<8x1x128xf32>
    %321 = vector.shape_cast %320 : vector<8x1x128xf32> to vector<8x128xf32>
    %c5_132 = arith.constant 5 : index
    %c0_133 = arith.constant 0 : index
    %c0_134 = arith.constant 0 : index
    %322 = vector.load %arg6[%c5_132, %c0_133, %c0_134] : memref<8x8x128xf32, #tpu.memory_space<vmem>>, vector<1x8x128xf32>
    %323 = vector.shape_cast %322 : vector<1x8x128xf32> to vector<8x128xf32>
    %324 = vector.shape_cast %321 : vector<8x128xf32> to vector<1x8x128xf32>
    tpu.vector_store %arg6[%c5_132, %c0_133, %c0_134], %324 {strides = array<i32>} : memref<8x8x128xf32, #tpu.memory_space<vmem>>, vector<1x8x128xf32>,
    %c0_135 = arith.constant 0 : index
    %c6_136 = arith.constant 6 : index
    %c0_137 = arith.constant 0 : index
    %325 = vector.load %arg10[%c0_135, %c6_136, %c0_137] : memref<8x8x128xf32, #tpu.memory_space<vmem>>, vector<8x1x128xf32>
    %326 = vector.shape_cast %325 : vector<8x1x128xf32> to vector<8x128xf32>
    %c6_138 = arith.constant 6 : index
    %c0_139 = arith.constant 0 : index
    %c0_140 = arith.constant 0 : index
    %327 = vector.load %arg6[%c6_138, %c0_139, %c0_140] : memref<8x8x128xf32, #tpu.memory_space<vmem>>, vector<1x8x128xf32>
    %328 = vector.shape_cast %327 : vector<1x8x128xf32> to vector<8x128xf32>
    %329 = vector.shape_cast %326 : vector<8x128xf32> to vector<1x8x128xf32>
    tpu.vector_store %arg6[%c6_138, %c0_139, %c0_140], %329 {strides = array<i32>} : memref<8x8x128xf32, #tpu.memory_space<vmem>>, vector<1x8x128xf32>,
    %c0_141 = arith.constant 0 : index
    %c7_142 = arith.constant 7 : index
    %c0_143 = arith.constant 0 : index
    %330 = vector.load %arg10[%c0_141, %c7_142, %c0_143] : memref<8x8x128xf32, #tpu.memory_space<vmem>>, vector<8x1x128xf32>
    %331 = vector.shape_cast %330 : vector<8x1x128xf32> to vector<8x128xf32>
    %c7_144 = arith.constant 7 : index
    %c0_145 = arith.constant 0 : index
    %c0_146 = arith.constant 0 : index
    %332 = vector.load %arg6[%c7_144, %c0_145, %c0_146] : memref<8x8x128xf32, #tpu.memory_space<vmem>>, vector<1x8x128xf32>
    %333 = vector.shape_cast %332 : vector<1x8x128xf32> to vector<8x128xf32>
    %334 = vector.shape_cast %331 : vector<8x128xf32> to vector<1x8x128xf32>
    tpu.vector_store %arg6[%c7_144, %c0_145, %c0_146], %334 {strides = array<i32>} : memref<8x8x128xf32, #tpu.memory_space<vmem>>, vector<1x8x128xf32>,
    return
  }
  func.func @transform_0(%arg0: i32) -> (i32, i32, i32) {
    %c0_i32 = arith.constant 0 : i32
    %c0_i32_0 = arith.constant 0 : i32
    %c0_i32_1 = arith.constant 0 : i32
    return %c0_i32, %arg0, %c0_i32_0 : i32, i32, i32
  }
  func.func @transform_1(%arg0: i32) -> (i32, i32) {
    %c0_i32 = arith.constant 0 : i32
    %c0_i32_0 = arith.constant 0 : i32
    %c0_i32_1 = arith.constant 0 : i32
    return %c0_i32, %c0_i32_0 : i32, i32
  }
  func.func @transform_2(%arg0: i32) -> (i32, i32) {
    %c0_i32 = arith.constant 0 : i32
    %c0_i32_0 = arith.constant 0 : i32
    %c0_i32_1 = arith.constant 0 : i32
    return %c0_i32, %c0_i32_0 : i32, i32
  }
  func.func @transform_3(%arg0: i32) -> (i32, i32) {
    %c0_i32 = arith.constant 0 : i32
    %c0_i32_0 = arith.constant 0 : i32
    %c0_i32_1 = arith.constant 0 : i32
    return %c0_i32, %c0_i32_0 : i32, i32
  }
  func.func @transform_4(%arg0: i32) -> (i32, i32) {
    %c0_i32 = arith.constant 0 : i32
    %c0_i32_0 = arith.constant 0 : i32
    %c0_i32_1 = arith.constant 0 : i32
    return %c0_i32, %c0_i32_0 : i32, i32
  }
  func.func @transform_5(%arg0: i32) -> (i32, i32, i32) {
    %c0_i32 = arith.constant 0 : i32
    %c0_i32_0 = arith.constant 0 : i32
    %c0_i32_1 = arith.constant 0 : i32
    return %c0_i32, %arg0, %c0_i32_0 : i32, i32, i32
  }
}

</mosaic_0001>

<llo_original>
// kernel: encoder_forward.1
$region0: #{encoder_forward.1}
  #allocation0 [shape = 'u32[]', space=smem, size = 0x4, offset = 0x4, fixed_abs, tag = 'smem constant byte address 0x4 - core index']
  #allocation1 [shape = 'u32[144,128]{1,0:T(1,128)}', space=vmem, size = 0x12000, scoped, tag = 'internal scratch']
  #allocation2 [shape = 'f32[8,128]{1,0:T(8,128)}', space=vmem, size = 0x1000, scoped, tag = 'scratch operand']
  #allocation3 [shape = 'f32[64,114]{1,0:T(8,128)}', space=vmem, size = 0x8000, scoped, tag = 'scratch operand']
  #allocation4 [shape = 'f32[64,384]{1,0:T(8,128)}', space=vmem, size = 0x18000, scoped, tag = 'scratch operand']
  #allocation5 [shape = 'f32[8,8,128]{2,1,0:T(8,128)}', space=vmem, size = 0x8000, scoped, tag = 'scratch operand']
  %s0 = inlined_call_operand.vmem [shape: f32[8,24,114], index: 0, kind: input, shape index: {}]
  %s1 = inlined_call_operand.vmem [shape: bf16[114,384], index: 1, kind: input, shape index: {}]
  %s2 = inlined_call_operand.vmem [shape: bf16[128,384], index: 2, kind: input, shape index: {}]
  %s3 = inlined_call_operand.vmem [shape: f32[1,384], index: 3, kind: input, shape index: {}]
  %s4 = inlined_call_operand.vmem [shape: f32[1,128], index: 4, kind: input, shape index: {}]
  %s5 = inlined_call_operand.vmem [shape: f32[8,24,128], index: 5, kind: output, shape index: {}]
  %s6 = sld [smem:[#allocation0]]
  $region129: #{encoder_forward.1} parent=0
    _
  %s8 = ssub.s32 1, %s6
  %s9 = scalar_select 0, %s8, %s6
  $region1: #{encoder_forward.1} parent=0
    #allocation6 [shape = 'u8[65536]{0}', space=vmem, size = 0x10000, scoped, tag = 'input window, operand 0']
    #allocation7 [shape = 'u8[65536]{0}', space=vmem, size = 0x10000, scoped, tag = 'output window, operand 0']
    loop: start=0, step=1, limit=5
    $region2: #{encoder_forward.1} parent=1 // loop_pre_header
      _
    $region3: #{encoder_forward.1} parent=1 // loop_header
      %s11 = sphi 0, %s15
      %p12 = scmp.ge.s32.totalorder %s11, 5
      %s21 = sphi 0, %s23
      %s24 = sphi 0, %s21
      %s25 = sphi 0, %s24
      %s41 = sphi 0, %s25
      %s45 = sphi 0, %s45
      %s47 = sphi 0, %s45
      %s48 = sphi 0, %s47
      %s62 = sphi 0, %s48
      %s66 = sphi 0, %s66
      %s68 = sphi 0, %s66
      %s69 = sphi 0, %s68
      %s83 = sphi 0, %s69
      %s87 = sphi 0, %s87
      %s89 = sphi 0, %s87
      %s90 = sphi 0, %s89
      %s104 = sphi 0, %s90
      %s108 = sphi 0, %s108
      %s110 = sphi 0, %s108
      %s111 = sphi 0, %s110
      %s125 = sphi 0, %s111
      %s131 = sphi 0, %s133
      %s134 = sphi 0, %s131
      %s135 = sphi 0, %s134
      %s151 = sphi 0, %s135
    $region4: #{encoder_forward.1} parent=1 // loop_header_branch
      %14 = sbr.rel (%p12) target = $region8
    $region5: #{encoder_forward.1} parent=1 // loop_body
      %s16 = ssub.s32 %s11, 1
      %s17 = ssub.s32 %s11, 2
      %s18 = sadd.s32 %s11, 1
      %s19 = ssub.s32 %s11, %s18
      %p20 = scmp.eq.s32.totalorder %s19, 0
      %s22 = sadd.s32 %s21, 1
      %s23 = scalar_select %p20, %s21, %s22
      %p26 = pneg %p20
      %p27 = scmp.eq.s32.totalorder %s11, 2
      %p28 = por %p26, %p27
      %p29 = scmp.ne.s32.totalorder %s21, %s24
      %p30 = scmp.eq.s32.totalorder %s11, 0
      %p31 = por %p29, %p30
      %p32 = scmp.ne.s32.totalorder %s21, %s24
      %p33 = scmp.eq.s32.totalorder %s16, 2
      %p34 = por %p32, %p33
      %p35 = scmp.ne.s32.totalorder %s24, %s25
      %p36 = scmp.eq.s32.totalorder %s16, 0
      %p37 = por %p35, %p36
      %p38 = scmp.ne.s32.totalorder %s24, %s25
      %p39 = scmp.eq.s32.totalorder %s17, 2
      %p40 = por %p38, %p39
      %p42 = scmp.ne.s32.totalorder %s25, %s41
      %p43 = scmp.eq.s32.totalorder %s17, 0
      %p44 = por %p42, %p43
      %s46 = sadd.s32 %s45, 1
      %p49 = scmp.eq.s32.totalorder %s11, 2
      %p50 = scmp.ne.s32.totalorder %s45, %s47
      %p51 = scmp.eq.s32.totalorder %s11, 0
      %p52 = por %p50, %p51
      %p53 = scmp.ne.s32.totalorder %s45, %s47
      %p54 = scmp.eq.s32.totalorder %s16, 2
      %p55 = por %p53, %p54
      %p56 = scmp.ne.s32.totalorder %s47, %s48
      %p57 = scmp.eq.s32.totalorder %s16, 0
      %p58 = por %p56, %p57
      %p59 = scmp.ne.s32.totalorder %s47, %s48
      %p60 = scmp.eq.s32.totalorder %s17, 2
      %p61 = por %p59, %p60
      %p63 = scmp.ne.s32.totalorder %s48, %s62
      %p64 = scmp.eq.s32.totalorder %s17, 0
      %p65 = por %p63, %p64
      %s67 = sadd.s32 %s66, 1
      %p70 = scmp.eq.s32.totalorder %s11, 2
      %p71 = scmp.ne.s32.totalorder %s66, %s68
      %p72 = scmp.eq.s32.totalorder %s11, 0
      %p73 = por %p71, %p72
      %p74 = scmp.ne.s32.totalorder %s66, %s68
      %p75 = scmp.eq.s32.totalorder %s16, 2
      %p76 = por %p74, %p75
      %p77 = scmp.ne.s32.totalorder %s68, %s69
      %p78 = scmp.eq.s32.totalorder %s16, 0
      %p79 = por %p77, %p78
      %p80 = scmp.ne.s32.totalorder %s68, %s69
      %p81 = scmp.eq.s32.totalorder %s17, 2
      %p82 = por %p80, %p81
      %p84 = scmp.ne.s32.totalorder %s69, %s83
      %p85 = scmp.eq.s32.totalorder %s17, 0
      %p86 = por %p84, %p85
      %s88 = sadd.s32 %s87, 1
      %p91 = scmp.eq.s32.totalorder %s11, 2
      %p92 = scmp.ne.s32.totalorder %s87, %s89
      %p93 = scmp.eq.s32.totalorder %s11, 0
      %p94 = por %p92, %p93
      %p95 = scmp.ne.s32.totalorder %s87, %s89
      %p96 = scmp.eq.s32.totalorder %s16, 2
      %p97 = por %p95, %p96
      %p98 = scmp.ne.s32.totalorder %s89, %s90
      %p99 = scmp.eq.s32.totalorder %s16, 0
      %p100 = por %p98, %p99
      %p101 = scmp.ne.s32.totalorder %s89, %s90
      %p102 = scmp.eq.s32.totalorder %s17, 2
      %p103 = por %p101, %p102
      %p105 = scmp.ne.s32.totalorder %s90, %s104
      %p106 = scmp.eq.s32.totalorder %s17, 0
      %p107 = por %p105, %p106
      %s109 = sadd.s32 %s108, 1
      %p112 = scmp.eq.s32.totalorder %s11, 2
      %p113 = scmp.ne.s32.totalorder %s108, %s110
      %p114 = scmp.eq.s32.totalorder %s11, 0
      %p115 = por %p113, %p114
      %p116 = scmp.ne.s32.totalorder %s108, %s110
      %p117 = scmp.eq.s32.totalorder %s16, 2
      %p118 = por %p116, %p117
      %p119 = scmp.ne.s32.totalorder %s110, %s111
      %p120 = scmp.eq.s32.totalorder %s16, 0
      %p121 = por %p119, %p120
      %p122 = scmp.ne.s32.totalorder %s110, %s111
      %p123 = scmp.eq.s32.totalorder %s17, 2
      %p124 = por %p122, %p123
      %p126 = scmp.ne.s32.totalorder %s111, %s125
      %p127 = scmp.eq.s32.totalorder %s17, 0
      %p128 = por %p126, %p127
      %s129 = ssub.s32 %s11, %s18
      %p130 = scmp.eq.s32.totalorder %s129, 0
      %s132 = sadd.s32 %s131, 1
      %s133 = scalar_select %p130, %s131, %s132
      %p136 = pneg %p130
      %p137 = scmp.eq.s32.totalorder %s11, 2
      %p138 = por %p136, %p137
      %p139 = scmp.ne.s32.totalorder %s131, %s134
      %p140 = scmp.eq.s32.totalorder %s11, 0
      %p141 = por %p139, %p140
      %p142 = scmp.ne.s32.totalorder %s131, %s134
      %p143 = scmp.eq.s32.totalorder %s16, 2
      %p144 = por %p142, %p143
      %p145 = scmp.ne.s32.totalorder %s134, %s135
      %p146 = scmp.eq.s32.totalorder %s16, 0
      %p147 = por %p145, %p146
      %p148 = scmp.ne.s32.totalorder %s134, %s135
      %p149 = scmp.eq.s32.totalorder %s17, 2
      %p150 = por %p148, %p149
      %p152 = scmp.ne.s32.totalorder %s135, %s151
      %p153 = scmp.eq.s32.totalorder %s17, 0
      %p154 = por %p152, %p153
      %p155 = scmp.le.s32.totalorder 1, %s11
      %p156 = scmp.lt.s32.totalorder %s11, 4
      %p157 = pnand %p155, %p156
      %p158 = pneg %p157
      // Predicated region
      $region9: #{encoder_forward.1} parent=5 // pred_check
        _
      $region10: #{encoder_forward.1} parent=5 // pred_check_branch
        %160 = sbr.rel (%p157) target = $region12
      $region11: #{encoder_forward.1} parent=5 // pred_region
        %s161 = ssub.s32 %s11, 1
        // Predicated region
        $region13: #{encoder_forward.1} parent=11 // pred_check
          %p162 = pneg %p58
        $region14: #{encoder_forward.1} parent=11 // pred_check_branch
          %164 = sbr.rel (%p162) target = $region16
        $region15: #{encoder_forward.1} parent=11 // pred_region
          _
        $region16: #{encoder_forward.1} parent=11 // pred_fallthru
          _
        // Predicated region
        $region17: #{encoder_forward.1} parent=11 // pred_check
          %p165 = pneg %p79
        $region18: #{encoder_forward.1} parent=11 // pred_check_branch
          %167 = sbr.rel (%p165) target = $region20
        $region19: #{encoder_forward.1} parent=11 // pred_region
          _
        $region20: #{encoder_forward.1} parent=11 // pred_fallthru
          _
        // Predicated region
        $region21: #{encoder_forward.1} parent=11 // pred_check
          %p168 = pneg %p100
        $region22: #{encoder_forward.1} parent=11 // pred_check_branch
          %170 = sbr.rel (%p168) target = $region24
        $region23: #{encoder_forward.1} parent=11 // pred_region
          _
        $region24: #{encoder_forward.1} parent=11 // pred_fallthru
          _
        // Predicated region
        $region25: #{encoder_forward.1} parent=11 // pred_check
          %p171 = pneg %p121
        $region26: #{encoder_forward.1} parent=11 // pred_check_branch
          %173 = sbr.rel (%p171) target = $region28
        $region27: #{encoder_forward.1} parent=11 // pred_region
          _
        $region28: #{encoder_forward.1} parent=11 // pred_fallthru
          _
      $region12: #{encoder_forward.1} parent=5 // pred_fallthru
        _
      %p174 = scmp.lt.s32.totalorder %s11, 3
      // Predicated region
      $region29: #{encoder_forward.1} parent=5 // pred_check
        %p175 = pneg %p174
      $region30: #{encoder_forward.1} parent=5 // pred_check_branch
        %177 = sbr.rel (%p175) target = $region32
      $region31: #{encoder_forward.1} parent=5 // pred_region
        // Predicated region
        $region33: #{encoder_forward.1} parent=31 // pred_check
          %p178 = pneg %p31
        $region34: #{encoder_forward.1} parent=31 // pred_check_branch
          %180 = sbr.rel (%p178) target = $region36
        $region35: #{encoder_forward.1} parent=31 // pred_region
          %s181 = sand.u32 %s21, 1
          %s182 = sand.u32 %s21, 1
          %s183 = smul.addr %s182, 64
          %s184 = scalar_lea.vmem [#allocation6], %s183
          %s185 = smul.addr %s11, 8
          %s186 = scalar_lea.vmem %s0, %s185
          // Predicated region
          $region37: #{encoder_forward.1} parent=35 // pred_check
            _
          $region38: #{encoder_forward.1} parent=35 // pred_check_branch
            %188 = sbr.rel (0) target = $region40
          $region39: #{encoder_forward.1} parent=35 // pred_region
            // Predicated region
            $region41: #{encoder_forward.1} parent=39 // pred_check
              _
            $region42: #{encoder_forward.1} parent=39 // pred_check_branch
              %190 = sbr.rel (0) target = $region44
            $region43: #{encoder_forward.1} parent=39 // pred_region
              // Predicated region
              $region56: #{encoder_forward.1} parent=43 // pred_check
                _
              $region57: #{encoder_forward.1} parent=43 // pred_check_branch
                %219 = sbr.rel (0) target = $region59
              $region58: #{encoder_forward.1} parent=43 // pred_region
                loop: start=0, step=1, limit=1
                $region60: #{encoder_forward.1} parent=58 // loop_pre_header
                  _
                $region61: #{encoder_forward.1} parent=58 // loop_header
                  %s221 = sphi 0, %s225
                  %p222 = scmp.ge.s32.totalorder %s221, 1
                  %s226 = sphi %s186, %s186
                  %s227 = sphi %s184, %s184
                $region62: #{encoder_forward.1} parent=58 // loop_header_branch
                  %224 = sbr.rel (%p222) target = $region66
                $region63: #{encoder_forward.1} parent=58 // loop_body
                  %v228 = vld [vmem:[%s226] sm:$0xff]
                  %229 = vst [vmem:[%s227] sm:$0xff] %v228
                  %v230 = vld [vmem:[%s226 + $0x18] sm:$0xff]
                  %231 = vst [vmem:[%s227 + $0x8] sm:$0xff] %v230
                  %v232 = vld [vmem:[%s226 + $0x30] sm:$0xff]
                  %233 = vst [vmem:[%s227 + $0x10] sm:$0xff] %v232
                  %v234 = vld [vmem:[%s226 + $0x48] sm:$0xff]
                  %235 = vst [vmem:[%s227 + $0x18] sm:$0xff] %v234
                  %v236 = vld [vmem:[%s226 + $0x60] sm:$0xff]
                  %237 = vst [vmem:[%s227 + $0x20] sm:$0xff] %v236
                  %v238 = vld [vmem:[%s226 + $0x78] sm:$0xff]
                  %239 = vst [vmem:[%s227 + $0x28] sm:$0xff] %v238
                  %v240 = vld [vmem:[%s226 + $0x90] sm:$0xff]
                  %241 = vst [vmem:[%s227 + $0x30] sm:$0xff] %v240
                  %v242 = vld [vmem:[%s226 + $0xa8] sm:$0xff]
                  %243 = vst [vmem:[%s227 + $0x38] sm:$0xff] %v242
                $region64: #{encoder_forward.1} parent=58 // loop_footer
                  %s225 = sadd.s32 1, %s221
                $region65: #{encoder_forward.1} parent=58 // loop_footer_branch
                  %220 = sbr.rel target = $region61
                $region66: #{encoder_forward.1} parent=58 // loop_exit
                  _
              $region59: #{encoder_forward.1} parent=43 // pred_fallthru
                _
              // Predicated region
              $region67: #{encoder_forward.1} parent=43 // pred_check
                _
              $region68: #{encoder_forward.1} parent=43 // pred_check_branch
                %245 = sbr.rel target = $region70
              $region69: #{encoder_forward.1} parent=43 // pred_region
                _
              $region70: #{encoder_forward.1} parent=43 // pred_fallthru
                _
            $region44: #{encoder_forward.1} parent=39 // pred_fallthru
              _
            // Predicated region
            $region45: #{encoder_forward.1} parent=39 // pred_check
              _
            $region46: #{encoder_forward.1} parent=39 // pred_check_branch
              %192 = sbr.rel target = $region48
            $region47: #{encoder_forward.1} parent=39 // pred_region
              loop: start=0, step=1, limit=1
              $region49: #{encoder_forward.1} parent=47 // loop_pre_header
                _
              $region50: #{encoder_forward.1} parent=47 // loop_header
                %s195 = sphi 0, %s199
                %p196 = scmp.ge.s32.totalorder %s195, 1
                %s200 = sphi %s186, %s186
                %s201 = sphi %s184, %s184
              $region51: #{encoder_forward.1} parent=47 // loop_header_branch
                %198 = sbr.rel (%p196) target = $region55
              $region52: #{encoder_forward.1} parent=47 // loop_body
                %v202 = vld [vmem:[%s200] sm:$0xff]
                %203 = vst [vmem:[%s201] sm:$0xff] %v202
                %v204 = vld [vmem:[%s200 + $0x18] sm:$0xff]
                %205 = vst [vmem:[%s201 + $0x8] sm:$0xff] %v204
                %v206 = vld [vmem:[%s200 + $0x30] sm:$0xff]
                %207 = vst [vmem:[%s201 + $0x10] sm:$0xff] %v206
                %v208 = vld [vmem:[%s200 + $0x48] sm:$0xff]
                %209 = vst [vmem:[%s201 + $0x18] sm:$0xff] %v208
                %v210 = vld [vmem:[%s200 + $0x60] sm:$0xff]
                %211 = vst [vmem:[%s201 + $0x20] sm:$0xff] %v210
                %v212 = vld [vmem:[%s200 + $0x78] sm:$0xff]
                %213 = vst [vmem:[%s201 + $0x28] sm:$0xff] %v212
                %v214 = vld [vmem:[%s200 + $0x90] sm:$0xff]
                %215 = vst [vmem:[%s201 + $0x30] sm:$0xff] %v214
                %v216 = vld [vmem:[%s200 + $0xa8] sm:$0xff]
                %217 = vst [vmem:[%s201 + $0x38] sm:$0xff] %v216
              $region53: #{encoder_forward.1} parent=47 // loop_footer
                %s199 = sadd.s32 1, %s195
              $region54: #{encoder_forward.1} parent=47 // loop_footer_branch
                %194 = sbr.rel target = $region50
              $region55: #{encoder_forward.1} parent=47 // loop_exit
                _
            $region48: #{encoder_forward.1} parent=39 // pred_fallthru
              _
          $region40: #{encoder_forward.1} parent=35 // pred_fallthru
            _
          %246 = vnop
        $region36: #{encoder_forward.1} parent=31 // pred_fallthru
          _
      $region32: #{encoder_forward.1} parent=5 // pred_fallthru
        _
      %p247 = scmp.le.s32.totalorder 1, %s11
      %p248 = scmp.lt.s32.totalorder %s11, 4
      %p249 = pnand %p247, %p248
      %p250 = pneg %p249
      // Predicated region
      $region71: #{encoder_forward.1} parent=5 // pred_check
        _
      $region72: #{encoder_forward.1} parent=5 // pred_check_branch
        %252 = sbr.rel (%p249) target = $region74
      $region73: #{encoder_forward.1} parent=5 // pred_region
        %s253 = ssub.s32 %s11, 1
        %s254 = sand.u32 %s24, 1
        %s255 = sand.u32 %s24, 1
        %s256 = smul.addr %s255, 64
        %s257 = scalar_lea.vmem [#allocation6], %s256
        // Predicated region
        $region75: #{encoder_forward.1} parent=73 // pred_check
          %p258 = pneg %p37
        $region76: #{encoder_forward.1} parent=73 // pred_check_branch
          %260 = sbr.rel (%p258) target = $region78
        $region77: #{encoder_forward.1} parent=73 // pred_region
          _
        $region78: #{encoder_forward.1} parent=73 // pred_fallthru
          _
        %s261 = sand.u32 %s24, 1
        %s262 = sand.u32 %s24, 1
        %s263 = smul.addr %s262, 64
        %s264 = scalar_lea.vmem [#allocation6], %s263
        %p265 = pneg %p37
        %p266 = pneg %p34
        %p267 = pneg %p58
        %p268 = pneg %p55
        %p269 = pneg %p79
        %p270 = pneg %p76
        %p271 = pneg %p100
        %p272 = pneg %p97
        %p273 = pneg %p121
        %p274 = pneg %p118
        %p275 = pneg %p147
        %p276 = pneg %p144
        %s277 = sand.u32 %s134, 1
        %s278 = sand.u32 %s134, 1
        %s279 = smul.addr %s278, 64
        %s280 = scalar_lea.vmem [#allocation7], %s279
        %p282 = scmp.eq.s32.totalorder %s16, 0
        // Predicated region
        $region79: #{encoder_forward.1} parent=73 // pred_check
          %p283 = pneg %p282
        $region80: #{encoder_forward.1} parent=73 // pred_check_branch
          %285 = sbr.rel (%p283) target = $region82
        $region81: #{encoder_forward.1} parent=73 // pred_region
          %286 = vst [vmem:[#allocation2] sm:$0xff] 0.0
        $region82: #{encoder_forward.1} parent=73 // pred_fallthru
          _
        %v287 = vld [vmem:[%s257] sm:$0x1]
        %v288 = vld [vmem:[%s257 + $0x8] sm:$0x1]
        %v289 = vld [vmem:[%s257 + $0x10] sm:$0x1]
        %v290 = vld [vmem:[%s257 + $0x18] sm:$0x1]
        %v291 = vld [vmem:[%s257 + $0x20] sm:$0x1]
        %v292 = vld [vmem:[%s257 + $0x28] sm:$0x1]
        %v293 = vld [vmem:[%s257 + $0x30] sm:$0x1]
        %v294 = vld [vmem:[%s257 + $0x38] sm:$0x1]
        %v303 = vrot.slane %v288, 7
        %vm304 = vcmask 1041409
        %v305 = vsel %vm304, %v303, %v287
        %v306 = vrot.slane %v289, 6
        %vm307 = vcmask 1042434
        %v308 = vsel %vm307, %v306, %v305
        %v309 = vrot.slane %v290, 5
        %vm310 = vcmask 1043459
        %v311 = vsel %vm310, %v309, %v308
        %v312 = vrot.slane %v291, 4
        %vm313 = vcmask 1044484
        %v314 = vsel %vm313, %v312, %v311
        %v315 = vrot.slane %v292, 3
        %vm316 = vcmask 1045509
        %v317 = vsel %vm316, %v315, %v314
        %v318 = vrot.slane %v293, 2
        %vm319 = vcmask 1046534
        %v320 = vsel %vm319, %v318, %v317
        %v321 = vrot.slane %v294, 1
        %vm322 = vcmask 1047559
        %v323 = vsel %vm322, %v321, %v320
        %vm325 = vcmask 932864
        %326 = vst.msk [vmem:[#allocation3] sm:$0xff] %vm325, %v323
        %v327 = vld [vmem:[%s257 + $0x1] sm:$0x1]
        %v328 = vld [vmem:[%s257 + $0x9] sm:$0x1]
        %v329 = vld [vmem:[%s257 + $0x11] sm:$0x1]
        %v330 = vld [vmem:[%s257 + $0x19] sm:$0x1]
        %v331 = vld [vmem:[%s257 + $0x21] sm:$0x1]
        %v332 = vld [vmem:[%s257 + $0x29] sm:$0x1]
        %v333 = vld [vmem:[%s257 + $0x31] sm:$0x1]
        %v334 = vld [vmem:[%s257 + $0x39] sm:$0x1]
        %v343 = vrot.slane %v328, 7
        %v344 = vsel %vm304, %v343, %v327
        %v345 = vrot.slane %v329, 6
        %v346 = vsel %vm307, %v345, %v344
        %v347 = vrot.slane %v330, 5
        %v348 = vsel %vm310, %v347, %v346
        %v349 = vrot.slane %v331, 4
        %v350 = vsel %vm313, %v349, %v348
        %v351 = vrot.slane %v332, 3
        %v352 = vsel %vm316, %v351, %v350
        %v353 = vrot.slane %v333, 2
        %v354 = vsel %vm319, %v353, %v352
        %v355 = vrot.slane %v334, 1
        %v356 = vsel %vm322, %v355, %v354
        %358 = vst.msk [vmem:[#allocation3 + $0x8] sm:$0xff] %vm325, %v356
        %v359 = vld [vmem:[%s257 + $0x2] sm:$0x1]
        %v360 = vld [vmem:[%s257 + $0xa] sm:$0x1]
        %v361 = vld [vmem:[%s257 + $0x12] sm:$0x1]
        %v362 = vld [vmem:[%s257 + $0x1a] sm:$0x1]
        %v363 = vld [vmem:[%s257 + $0x22] sm:$0x1]
        %v364 = vld [vmem:[%s257 + $0x2a] sm:$0x1]
        %v365 = vld [vmem:[%s257 + $0x32] sm:$0x1]
        %v366 = vld [vmem:[%s257 + $0x3a] sm:$0x1]
        %v375 = vrot.slane %v360, 7
        %v376 = vsel %vm304, %v375, %v359
        %v377 = vrot.slane %v361, 6
        %v378 = vsel %vm307, %v377, %v376
        %v379 = vrot.slane %v362, 5
        %v380 = vsel %vm310, %v379, %v378
        %v381 = vrot.slane %v363, 4
        %v382 = vsel %vm313, %v381, %v380
        %v383 = vrot.slane %v364, 3
        %v384 = vsel %vm316, %v383, %v382
        %v385 = vrot.slane %v365, 2
        %v386 = vsel %vm319, %v385, %v384
        %v387 = vrot.slane %v366, 1
        %v388 = vsel %vm322, %v387, %v386
        %390 = vst.msk [vmem:[#allocation3 + $0x10] sm:$0xff] %vm325, %v388
        %v391 = vld [vmem:[%s257 + $0x3] sm:$0x1]
        %v392 = vld [vmem:[%s257 + $0xb] sm:$0x1]
        %v393 = vld [vmem:[%s257 + $0x13] sm:$0x1]
        %v394 = vld [vmem:[%s257 + $0x1b] sm:$0x1]
        %v395 = vld [vmem:[%s257 + $0x23] sm:$0x1]
        %v396 = vld [vmem:[%s257 + $0x2b] sm:$0x1]
        %v397 = vld [vmem:[%s257 + $0x33] sm:$0x1]
        %v398 = vld [vmem:[%s257 + $0x3b] sm:$0x1]
        %v407 = vrot.slane %v392, 7
        %v408 = vsel %vm304, %v407, %v391
        %v409 = vrot.slane %v393, 6
        %v410 = vsel %vm307, %v409, %v408
        %v411 = vrot.slane %v394, 5
        %v412 = vsel %vm310, %v411, %v410
        %v413 = vrot.slane %v395, 4
        %v414 = vsel %vm313, %v413, %v412
        %v415 = vrot.slane %v396, 3
        %v416 = vsel %vm316, %v415, %v414
        %v417 = vrot.slane %v397, 2
        %v418 = vsel %vm319, %v417, %v416
        %v419 = vrot.slane %v398, 1
        %v420 = vsel %vm322, %v419, %v418
        %422 = vst.msk [vmem:[#allocation3 + $0x18] sm:$0xff] %vm325, %v420
        %v423 = vld [vmem:[%s257 + $0x4] sm:$0x1]
        %v424 = vld [vmem:[%s257 + $0xc] sm:$0x1]
        %v425 = vld [vmem:[%s257 + $0x14] sm:$0x1]
        %v426 = vld [vmem:[%s257 + $0x1c] sm:$0x1]
        %v427 = vld [vmem:[%s257 + $0x24] sm:$0x1]
        %v428 = vld [vmem:[%s257 + $0x2c] sm:$0x1]
        %v429 = vld [vmem:[%s257 + $0x34] sm:$0x1]
        %v430 = vld [vmem:[%s257 + $0x3c] sm:$0x1]
        %v439 = vrot.slane %v424, 7
        %v440 = vsel %vm304, %v439, %v423
        %v441 = vrot.slane %v425, 6
        %v442 = vsel %vm307, %v441, %v440
        %v443 = vrot.slane %v426, 5
        %v444 = vsel %vm310, %v443, %v442
        %v445 = vrot.slane %v427, 4
        %v446 = vsel %vm313, %v445, %v444
        %v447 = vrot.slane %v428, 3
        %v448 = vsel %vm316, %v447, %v446
        %v449 = vrot.slane %v429, 2
        %v450 = vsel %vm319, %v449, %v448
        %v451 = vrot.slane %v430, 1
        %v452 = vsel %vm322, %v451, %v450
        %454 = vst.msk [vmem:[#allocation3 + $0x20] sm:$0xff] %vm325, %v452
        %v455 = vld [vmem:[%s257 + $0x5] sm:$0x1]
        %v456 = vld [vmem:[%s257 + $0xd] sm:$0x1]
        %v457 = vld [vmem:[%s257 + $0x15] sm:$0x1]
        %v458 = vld [vmem:[%s257 + $0x1d] sm:$0x1]
        %v459 = vld [vmem:[%s257 + $0x25] sm:$0x1]
        %v460 = vld [vmem:[%s257 + $0x2d] sm:$0x1]
        %v461 = vld [vmem:[%s257 + $0x35] sm:$0x1]
        %v462 = vld [vmem:[%s257 + $0x3d] sm:$0x1]
        %v471 = vrot.slane %v456, 7
        %v472 = vsel %vm304, %v471, %v455
        %v473 = vrot.slane %v457, 6
        %v474 = vsel %vm307, %v473, %v472
        %v475 = vrot.slane %v458, 5
        %v476 = vsel %vm310, %v475, %v474
        %v477 = vrot.slane %v459, 4
        %v478 = vsel %vm313, %v477, %v476
        %v479 = vrot.slane %v460, 3
        %v480 = vsel %vm316, %v479, %v478
        %v481 = vrot.slane %v461, 2
        %v482 = vsel %vm319, %v481, %v480
        %v483 = vrot.slane %v462, 1
        %v484 = vsel %vm322, %v483, %v482
        %486 = vst.msk [vmem:[#allocation3 + $0x28] sm:$0xff] %vm325, %v484
        %v487 = vld [vmem:[%s257 + $0x6] sm:$0x1]
        %v488 = vld [vmem:[%s257 + $0xe] sm:$0x1]
        %v489 = vld [vmem:[%s257 + $0x16] sm:$0x1]
        %v490 = vld [vmem:[%s257 + $0x1e] sm:$0x1]
        %v491 = vld [vmem:[%s257 + $0x26] sm:$0x1]
        %v492 = vld [vmem:[%s257 + $0x2e] sm:$0x1]
        %v493 = vld [vmem:[%s257 + $0x36] sm:$0x1]
        %v494 = vld [vmem:[%s257 + $0x3e] sm:$0x1]
        %v503 = vrot.slane %v488, 7
        %v504 = vsel %vm304, %v503, %v487
        %v505 = vrot.slane %v489, 6
        %v506 = vsel %vm307, %v505, %v504
        %v507 = vrot.slane %v490, 5
        %v508 = vsel %vm310, %v507, %v506
        %v509 = vrot.slane %v491, 4
        %v510 = vsel %vm313, %v509, %v508
        %v511 = vrot.slane %v492, 3
        %v512 = vsel %vm316, %v511, %v510
        %v513 = vrot.slane %v493, 2
        %v514 = vsel %vm319, %v513, %v512
        %v515 = vrot.slane %v494, 1
        %v516 = vsel %vm322, %v515, %v514
        %518 = vst.msk [vmem:[#allocation3 + $0x30] sm:$0xff] %vm325, %v516
        %v519 = vld [vmem:[%s257 + $0x7] sm:$0x1]
        %v520 = vld [vmem:[%s257 + $0xf] sm:$0x1]
        %v521 = vld [vmem:[%s257 + $0x17] sm:$0x1]
        %v522 = vld [vmem:[%s257 + $0x1f] sm:$0x1]
        %v523 = vld [vmem:[%s257 + $0x27] sm:$0x1]
        %v524 = vld [vmem:[%s257 + $0x2f] sm:$0x1]
        %v525 = vld [vmem:[%s257 + $0x37] sm:$0x1]
        %v526 = vld [vmem:[%s257 + $0x3f] sm:$0x1]
        %v535 = vrot.slane %v520, 7
        %v536 = vsel %vm304, %v535, %v519
        %v537 = vrot.slane %v521, 6
        %v538 = vsel %vm307, %v537, %v536
        %v539 = vrot.slane %v522, 5
        %v540 = vsel %vm310, %v539, %v538
        %v541 = vrot.slane %v523, 4
        %v542 = vsel %vm313, %v541, %v540
        %v543 = vrot.slane %v524, 3
        %v544 = vsel %vm316, %v543, %v542
        %v545 = vrot.slane %v525, 2
        %v546 = vsel %vm319, %v545, %v544
        %v547 = vrot.slane %v526, 1
        %v548 = vsel %vm322, %v547, %v546
        %550 = vst.msk [vmem:[#allocation3 + $0x38] sm:$0xff] %vm325, %v548
        %v551 = vld [vmem:[#allocation3] sm:$0xff]
        %v552 = vld [vmem:[#allocation3 + $0x8] sm:$0xff]
        %v553 = vld [vmem:[#allocation3 + $0x10] sm:$0xff]
        %v554 = vld [vmem:[#allocation3 + $0x18] sm:$0xff]
        %v555 = vld [vmem:[#allocation3 + $0x20] sm:$0xff]
        %v556 = vld [vmem:[#allocation3 + $0x28] sm:$0xff]
        %v557 = vld [vmem:[#allocation3 + $0x30] sm:$0xff]
        %v558 = vld [vmem:[#allocation3 + $0x38] sm:$0xff]
        %v559 = vpack.c.bf16 %v552, %v551
        %v560 = vpack.c.bf16 %v554, %v553
        %v561 = vpack.c.bf16 %v556, %v555
        %v562 = vpack.c.bf16 %v558, %v557
        %v563 = vld [vmem:[%s1] sm:$0xff]
        %v564 = vld [vmem:[%s1 + $0x8] sm:$0xf]
        %v565 = vld [vmem:[%s1 + $0xc] sm:$0xff]
        %v566 = vld [vmem:[%s1 + $0x14] sm:$0xf]
        %v567 = vld [vmem:[%s1 + $0x18] sm:$0xff]
        %v568 = vld [vmem:[%s1 + $0x20] sm:$0xf]
        %v569 = vld [vmem:[%s1 + $0x24] sm:$0xff]
        %v570 = vld [vmem:[%s1 + $0x2c] sm:$0xf]
        %v571 = vld [vmem:[%s1 + $0x30] sm:$0xff]
        %v572 = vld [vmem:[%s1 + $0x38] sm:$0xf]
        %v573 = vld [vmem:[%s1 + $0x3c] sm:$0xff]
        %v574 = vld [vmem:[%s1 + $0x44] sm:$0xf]
        %v575 = vld [vmem:[%s1 + $0x48] sm:$0xff]
        %v576 = vld [vmem:[%s1 + $0x50] sm:$0xf]
        %v577 = vld [vmem:[%s1 + $0x54] sm:$0xff]
        %v578 = vld [vmem:[%s1 + $0x5c] sm:$0xf]
        %v579 = vld [vmem:[%s1 + $0x60] sm:$0xff]
        %v580 = vld [vmem:[%s1 + $0x68] sm:$0xf]
        %v581 = vld [vmem:[%s1 + $0x6c] sm:$0xff]
        %v582 = vld [vmem:[%s1 + $0x74] sm:$0xf]
        %v583 = vld [vmem:[%s1 + $0x78] sm:$0xff]
        %v584 = vld [vmem:[%s1 + $0x80] sm:$0xf]
        %v585 = vld [vmem:[%s1 + $0x84] sm:$0xff]
        %v586 = vld [vmem:[%s1 + $0x8c] sm:$0xf]
        %v587 = vld [vmem:[%s1 + $0x90] sm:$0xff]
        %v588 = vld [vmem:[%s1 + $0x98] sm:$0xf]
        %v589 = vld [vmem:[%s1 + $0x9c] sm:$0xff]
        %v590 = vld [vmem:[%s1 + $0xa4] sm:$0xf]
        %v591 = vld [vmem:[%s1 + $0xa8] sm:$0x11]
        %v592 = vld [vmem:[%s1 + $0xb0] sm:$0x1]
        %v593 = vld [vmem:[%s3] sm:$0x7]
        %v595 = vlaneseq
        %v596 = vshrl.u32 %v595, 7
        %v597 = vsub.s32 0, %v596
        %v598 = vrot.slane %v593, %v597
        %v599 = vlaneseq
        %v600 = vshrl.u32 %v599, 7
        %v601 = vsub.s32 1, %v600
        %v602 = vrot.slane %v593, %v601
        %v603 = vlaneseq
        %v604 = vshrl.u32 %v603, 7
        %v605 = vsub.s32 2, %v604
        %v606 = vrot.slane %v593, %v605
        %v640 = vunpack.c.l.b16 %v563
        %v641 = vunpack.c.h.b16 %v563
        %v642 = vunpack.c.l.b16 %v564
        %v643 = vunpack.c.l.b16 %v565
        %v644 = vunpack.c.h.b16 %v565
        %v645 = vunpack.c.l.b16 %v566
        %v646 = vunpack.c.l.b16 %v567
        %v647 = vunpack.c.h.b16 %v567
        %v648 = vunpack.c.l.b16 %v568
        %v649 = vunpack.c.l.b16 %v569
        %v650 = vunpack.c.h.b16 %v569
        %v651 = vunpack.c.l.b16 %v570
        %v652 = vunpack.c.l.b16 %v571
        %v653 = vunpack.c.h.b16 %v571
        %v654 = vunpack.c.l.b16 %v572
        %v655 = vunpack.c.l.b16 %v573
        %v656 = vunpack.c.h.b16 %v573
        %v657 = vunpack.c.l.b16 %v574
        %v658 = vunpack.c.l.b16 %v575
        %v659 = vunpack.c.h.b16 %v575
        %v660 = vunpack.c.l.b16 %v576
        %v661 = vunpack.c.l.b16 %v577
        %v662 = vunpack.c.h.b16 %v577
        %v663 = vunpack.c.l.b16 %v578
        %v664 = vunpack.c.l.b16 %v579
        %v665 = vunpack.c.h.b16 %v579
        %v666 = vunpack.c.l.b16 %v580
        %v667 = vunpack.c.l.b16 %v581
        %v668 = vunpack.c.h.b16 %v581
        %v669 = vunpack.c.l.b16 %v582
        %v670 = vunpack.c.l.b16 %v583
        %v671 = vunpack.c.h.b16 %v583
        %v672 = vunpack.c.l.b16 %v584
        %v673 = vunpack.c.l.b16 %v585
        %v674 = vunpack.c.h.b16 %v585
        %v675 = vunpack.c.l.b16 %v586
        %v676 = vunpack.c.l.b16 %v587
        %v677 = vunpack.c.h.b16 %v587
        %v678 = vunpack.c.l.b16 %v588
        %v679 = vunpack.c.l.b16 %v589
        %v680 = vunpack.c.h.b16 %v589
        %v681 = vunpack.c.l.b16 %v590
        %v682 = vunpack.c.l.b16 %v591
        %v683 = vunpack.c.h.b16 %v591
        %v684 = vunpack.c.l.b16 %v592
        %v685 = vpack.c.b16 %v643, %v640
        %v686 = vpack.c.b16 %v644, %v641
        %v687 = vpack.c.b16 %v645, %v642
        %v688 = vpack.c.b16 %v649, %v646
        %v689 = vpack.c.b16 %v650, %v647
        %v690 = vpack.c.b16 %v651, %v648
        %v691 = vpack.c.b16 %v655, %v652
        %v692 = vpack.c.b16 %v656, %v653
        %v693 = vpack.c.b16 %v657, %v654
        %v694 = vpack.c.b16 %v661, %v658
        %v695 = vpack.c.b16 %v662, %v659
        %v696 = vpack.c.b16 %v663, %v660
        %v697 = vpack.c.b16 %v667, %v664
        %v698 = vpack.c.b16 %v668, %v665
        %v699 = vpack.c.b16 %v669, %v666
        %v700 = vpack.c.b16 %v673, %v670
        %v701 = vpack.c.b16 %v674, %v671
        %v702 = vpack.c.b16 %v675, %v672
        %v703 = vpack.c.b16 %v679, %v676
        %v704 = vpack.c.b16 %v680, %v677
        %v705 = vpack.c.b16 %v681, %v678
        %v706 = vpack.c.b16 %v682, %v682
        %v707 = vpack.c.b16 %v683, %v683
        %v708 = vpack.c.b16 %v684, %v684
        %v731 = vsel %vm325, %v559, 0
        %v734 = vsel %vm325, %v560, 0
        %v737 = vsel %vm325, %v561, 0
        %v740 = vsel %vm325, %v562, 0
        %vm742 = vcmask 1040384
        %v744 = vsel %vm742, %v706, 0
        %v747 = vsel %vm742, %v707, 0
        %v750 = vsel %vm742, %v708, 0
        %752 = vmatprep.subr.bf16.mxu0 %v686
        %753 = vmatpush1.bf16.msra.mxu0 %v685
        %754 = vmatprep.subr.bf16.mxu0 %v689
        %755 = vmatpush1.bf16.msra.mxu0 %v688
        %756 = vmatprep.subr.bf16.mxu0 %v692
        %757 = vmatpush1.bf16.msra.mxu0 %v691
        %758 = vmatprep.subr.bf16.mxu0 %v695
        %759 = vmatpush1.bf16.msra.mxu0 %v694
        %760 = vmatprep.subr.bf16.mxu0 %v698
        %761 = vmatpush1.bf16.msra.mxu0 %v697
        %762 = vmatprep.subr.bf16.mxu0 %v701
        %763 = vmatpush1.bf16.msra.mxu0 %v700
        %764 = vmatprep.subr.bf16.mxu0 %v704
        %765 = vmatpush1.bf16.msra.mxu0 %v703
        %766 = vmatprep.subr.bf16.mxu0 %v747
        %767 = vmatpush1.bf16.msra.mxu0 %v744
        %768 = vmatprep.subr.bf16.mxu0 0
        %769 = vmatpush1.bf16.msra.mxu0 0
        %770 = vmatprep.subr.bf16.mxu0 0
        %771 = vmatpush1.bf16.msra.mxu0 0
        %772 = vmatprep.subr.bf16.mxu0 0
        %773 = vmatpush1.bf16.msra.mxu0 0
        %774 = vmatprep.subr.bf16.mxu0 0
        %775 = vmatpush1.bf16.msra.mxu0 0
        %776 = vmatprep.subr.bf16.mxu0 0
        %777 = vmatpush1.bf16.msra.mxu0 0
        %778 = vmatprep.subr.bf16.mxu0 0
        %779 = vmatpush1.bf16.msra.mxu0 0
        %780 = vmatprep.subr.bf16.mxu0 0
        %781 = vmatpush1.bf16.msra.mxu0 0
        %782 = vmatprep.subr.bf16.mxu0 0
        %783 = vmatpush1.bf16.msra.mxu0 0
        %784 = vmatprep.mubr.bf16.mxu0 0
        %785 = vmatmul.mubr.bf16.gmra.mrb[0].mxu0 %v731
        %v786 = vpop.f32.mrb[0].mxu0
        %v787 = vadd.f32 %v598, %v786
        %v788 = vpop.f32.mrb[0].mxu0
        %v789 = vadd.f32 %v602, %v788
        %v790 = vpop.f32.mrb[0].mxu0
        %v791 = vadd.f32 %v598, %v790
        %v792 = vpop.f32.mrb[0].mxu0
        %v793 = vadd.f32 %v602, %v792
        %794 = vmatprep.mubr.bf16.mxu0 0
        %795 = vmatmul.mubr.bf16.gmra.mrb[0].mxu0 %v734
        %v796 = vpop.f32.mrb[0].mxu0
        %v797 = vadd.f32 %v598, %v796
        %v798 = vpop.f32.mrb[0].mxu0
        %v799 = vadd.f32 %v602, %v798
        %v800 = vpop.f32.mrb[0].mxu0
        %v801 = vadd.f32 %v598, %v800
        %v802 = vpop.f32.mrb[0].mxu0
        %v803 = vadd.f32 %v602, %v802
        %804 = vmatprep.mubr.bf16.mxu0 0
        %805 = vmatmul.mubr.bf16.gmra.mrb[0].mxu0 %v737
        %v806 = vpop.f32.mrb[0].mxu0
        %v807 = vadd.f32 %v598, %v806
        %v808 = vpop.f32.mrb[0].mxu0
        %v809 = vadd.f32 %v602, %v808
        %v810 = vpop.f32.mrb[0].mxu0
        %v811 = vadd.f32 %v598, %v810
        %v812 = vpop.f32.mrb[0].mxu0
        %v813 = vadd.f32 %v602, %v812
        %814 = vmatprep.mubr.bf16.mxu0 0
        %815 = vmatmul.mubr.bf16.gmra.mrb[0].mxu0 %v740
        %v816 = vpop.f32.mrb[0].mxu0
        %v817 = vadd.f32 %v598, %v816
        %v818 = vpop.f32.mrb[0].mxu0
        %v819 = vadd.f32 %v602, %v818
        %v820 = vpop.f32.mrb[0].mxu0
        %v821 = vadd.f32 %v598, %v820
        %v822 = vpop.f32.mrb[0].mxu0
        %v823 = vadd.f32 %v602, %v822
        %824 = vdwg.mxu0
        %825 = vmatprep.subr.bf16.mxu0 0
        %826 = vmatpush1.bf16.msra.mxu0 %v687
        %827 = vmatprep.subr.bf16.mxu0 0
        %828 = vmatpush1.bf16.msra.mxu0 %v690
        %829 = vmatprep.subr.bf16.mxu0 0
        %830 = vmatpush1.bf16.msra.mxu0 %v693
        %831 = vmatprep.subr.bf16.mxu0 0
        %832 = vmatpush1.bf16.msra.mxu0 %v696
        %833 = vmatprep.subr.bf16.mxu0 0
        %834 = vmatpush1.bf16.msra.mxu0 %v699
        %835 = vmatprep.subr.bf16.mxu0 0
        %836 = vmatpush1.bf16.msra.mxu0 %v702
        %837 = vmatprep.subr.bf16.mxu0 0
        %838 = vmatpush1.bf16.msra.mxu0 %v705
        %839 = vmatprep.subr.bf16.mxu0 0
        %840 = vmatpush1.bf16.msra.mxu0 %v750
        %841 = vmatprep.subr.bf16.mxu0 0
        %842 = vmatpush1.bf16.msra.mxu0 0
        %843 = vmatprep.subr.bf16.mxu0 0
        %844 = vmatpush1.bf16.msra.mxu0 0
        %845 = vmatprep.subr.bf16.mxu0 0
        %846 = vmatpush1.bf16.msra.mxu0 0
        %847 = vmatprep.subr.bf16.mxu0 0
        %848 = vmatpush1.bf16.msra.mxu0 0
        %849 = vmatprep.subr.bf16.mxu0 0
        %850 = vmatpush1.bf16.msra.mxu0 0
        %851 = vmatprep.subr.bf16.mxu0 0
        %852 = vmatpush1.bf16.msra.mxu0 0
        %853 = vmatprep.subr.bf16.mxu0 0
        %854 = vmatpush1.bf16.msra.mxu0 0
        %855 = vmatprep.subr.bf16.mxu0 0
        %856 = vmatpush1.bf16.msra.mxu0 0
        %857 = vmatprep.mubr.bf16.mxu0 0
        %858 = vmatmul.mubr.bf16.gmra.mrb[0].mxu0 %v731
        %v859 = vpop.f32.mrb[0].mxu0
        %v860 = vadd.f32 %v606, %v859
        %v861 = vpop.f32.mrb[0].mxu0
        %v862 = vpop.f32.mrb[0].mxu0
        %v863 = vadd.f32 %v606, %v862
        %v864 = vpop.f32.mrb[0].mxu0
        %865 = vmatprep.mubr.bf16.mxu0 0
        %866 = vmatmul.mubr.bf16.gmra.mrb[0].mxu0 %v734
        %v867 = vpop.f32.mrb[0].mxu0
        %v868 = vadd.f32 %v606, %v867
        %v869 = vpop.f32.mrb[0].mxu0
        %v870 = vpop.f32.mrb[0].mxu0
        %v871 = vadd.f32 %v606, %v870
        %v872 = vpop.f32.mrb[0].mxu0
        %873 = vmatprep.mubr.bf16.mxu0 0
        %874 = vmatmul.mubr.bf16.gmra.mrb[0].mxu0 %v737
        %v875 = vpop.f32.mrb[0].mxu0
        %v876 = vadd.f32 %v606, %v875
        %v877 = vpop.f32.mrb[0].mxu0
        %v878 = vpop.f32.mrb[0].mxu0
        %v879 = vadd.f32 %v606, %v878
        %v880 = vpop.f32.mrb[0].mxu0
        %881 = vmatprep.mubr.bf16.mxu0 0
        %882 = vmatmul.mubr.bf16.gmra.mrb[0].mxu0 %v740
        %v883 = vpop.f32.mrb[0].mxu0
        %v884 = vadd.f32 %v606, %v883
        %v885 = vpop.f32.mrb[0].mxu0
        %v886 = vpop.f32.mrb[0].mxu0
        %v887 = vadd.f32 %v606, %v886
        %v888 = vpop.f32.mrb[0].mxu0
        %889 = vdwg.mxu0
        %890 = vst [vmem:[#allocation4] sm:$0xff] %v787
        %891 = vst [vmem:[#allocation4 + $0x8] sm:$0xff] %v789
        %892 = vst [vmem:[#allocation4 + $0x10] sm:$0xff] %v860
        %893 = vst [vmem:[#allocation4 + $0x18] sm:$0xff] %v791
        %894 = vst [vmem:[#allocation4 + $0x20] sm:$0xff] %v793
        %895 = vst [vmem:[#allocation4 + $0x28] sm:$0xff] %v863
        %896 = vst [vmem:[#allocation4 + $0x30] sm:$0xff] %v797
        %897 = vst [vmem:[#allocation4 + $0x38] sm:$0xff] %v799
        %898 = vst [vmem:[#allocation4 + $0x40] sm:$0xff] %v868
        %899 = vst [vmem:[#allocation4 + $0x48] sm:$0xff] %v801
        %900 = vst [vmem:[#allocation4 + $0x50] sm:$0xff] %v803
        %901 = vst [vmem:[#allocation4 + $0x58] sm:$0xff] %v871
        %902 = vst [vmem:[#allocation4 + $0x60] sm:$0xff] %v807
        %903 = vst [vmem:[#allocation4 + $0x68] sm:$0xff] %v809
        %904 = vst [vmem:[#allocation4 + $0x70] sm:$0xff] %v876
        %905 = vst [vmem:[#allocation4 + $0x78] sm:$0xff] %v811
        %906 = vst [vmem:[#allocation4 + $0x80] sm:$0xff] %v813
        %907 = vst [vmem:[#allocation4 + $0x88] sm:$0xff] %v879
        %908 = vst [vmem:[#allocation4 + $0x90] sm:$0xff] %v817
        %909 = vst [vmem:[#allocation4 + $0x98] sm:$0xff] %v819
        %910 = vst [vmem:[#allocation4 + $0xa0] sm:$0xff] %v884
        %911 = vst [vmem:[#allocation4 + $0xa8] sm:$0xff] %v821
        %912 = vst [vmem:[#allocation4 + $0xb0] sm:$0xff] %v823
        %913 = vst [vmem:[#allocation4 + $0xb8] sm:$0xff] %v887
        %v914 = vld [vmem:[%s2] sm:$0xff]
        %v915 = vld [vmem:[%s2 + $0x8] sm:$0xf]
        %v916 = vld [vmem:[%s2 + $0xc] sm:$0xff]
        %v917 = vld [vmem:[%s2 + $0x14] sm:$0xf]
        %v918 = vld [vmem:[%s2 + $0x18] sm:$0xff]
        %v919 = vld [vmem:[%s2 + $0x20] sm:$0xf]
        %v920 = vld [vmem:[%s2 + $0x24] sm:$0xff]
        %v921 = vld [vmem:[%s2 + $0x2c] sm:$0xf]
        %v922 = vld [vmem:[%s2 + $0x30] sm:$0xff]
        %v923 = vld [vmem:[%s2 + $0x38] sm:$0xf]
        %v924 = vld [vmem:[%s2 + $0x3c] sm:$0xff]
        %v925 = vld [vmem:[%s2 + $0x44] sm:$0xf]
        %v926 = vld [vmem:[%s2 + $0x48] sm:$0xff]
        %v927 = vld [vmem:[%s2 + $0x50] sm:$0xf]
        %v928 = vld [vmem:[%s2 + $0x54] sm:$0xff]
        %v929 = vld [vmem:[%s2 + $0x5c] sm:$0xf]
        %v930 = vld [vmem:[%s2 + $0x60] sm:$0xff]
        %v931 = vld [vmem:[%s2 + $0x68] sm:$0xf]
        %v932 = vld [vmem:[%s2 + $0x6c] sm:$0xff]
        %v933 = vld [vmem:[%s2 + $0x74] sm:$0xf]
        %v934 = vld [vmem:[%s2 + $0x78] sm:$0xff]
        %v935 = vld [vmem:[%s2 + $0x80] sm:$0xf]
        %v936 = vld [vmem:[%s2 + $0x84] sm:$0xff]
        %v937 = vld [vmem:[%s2 + $0x8c] sm:$0xf]
        %v938 = vld [vmem:[%s2 + $0x90] sm:$0xff]
        %v939 = vld [vmem:[%s2 + $0x98] sm:$0xf]
        %v940 = vld [vmem:[%s2 + $0x9c] sm:$0xff]
        %v941 = vld [vmem:[%s2 + $0xa4] sm:$0xf]
        %v942 = vld [vmem:[%s2 + $0xa8] sm:$0xff]
        %v943 = vld [vmem:[%s2 + $0xb0] sm:$0xf]
        %v944 = vld [vmem:[%s2 + $0xb4] sm:$0xff]
        %v945 = vld [vmem:[%s2 + $0xbc] sm:$0xf]
        %v946 = vld [vmem:[%s4] sm:$0x1]
        %v947 = vld [vmem:[#allocation2] sm:$0xff]
        %s948 = smul.u32 0, 3
        %s949 = smul.addr %s948, 8
        %s950 = scalar_lea.vmem [#allocation4], %s949
        %v951 = vld [vmem:[%s950] sm:$0xff]
        %v952 = vld [vmem:[%s950 + $0x8] sm:$0xff]
        %v953 = vld [vmem:[%s950 + $0x10] sm:$0xff]
        %v954 = vpack.c.bf16 %v947, %v947
        %v987 = vunpack.c.l.b16 %v914
        %v988 = vunpack.c.h.b16 %v914
        %v989 = vunpack.c.l.b16 %v915
        %v990 = vunpack.c.l.b16 %v916
        %v991 = vunpack.c.h.b16 %v916
        %v992 = vunpack.c.l.b16 %v917
        %v993 = vunpack.c.l.b16 %v918
        %v994 = vunpack.c.h.b16 %v918
        %v995 = vunpack.c.l.b16 %v919
        %v996 = vunpack.c.l.b16 %v920
        %v997 = vunpack.c.h.b16 %v920
        %v998 = vunpack.c.l.b16 %v921
        %v999 = vunpack.c.l.b16 %v922
        %v1000 = vunpack.c.h.b16 %v922
        %v1001 = vunpack.c.l.b16 %v923
        %v1002 = vunpack.c.l.b16 %v924
        %v1003 = vunpack.c.h.b16 %v924
        %v1004 = vunpack.c.l.b16 %v925
        %v1005 = vunpack.c.l.b16 %v926
        %v1006 = vunpack.c.h.b16 %v926
        %v1007 = vunpack.c.l.b16 %v927
        %v1008 = vunpack.c.l.b16 %v928
        %v1009 = vunpack.c.h.b16 %v928
        %v1010 = vunpack.c.l.b16 %v929
        %v1011 = vunpack.c.l.b16 %v930
        %v1012 = vunpack.c.h.b16 %v930
        %v1013 = vunpack.c.l.b16 %v931
        %v1014 = vunpack.c.l.b16 %v932
        %v1015 = vunpack.c.h.b16 %v932
        %v1016 = vunpack.c.l.b16 %v933
        %v1017 = vunpack.c.l.b16 %v934
        %v1018 = vunpack.c.h.b16 %v934
        %v1019 = vunpack.c.l.b16 %v935
        %v1020 = vunpack.c.l.b16 %v936
        %v1021 = vunpack.c.h.b16 %v936
        %v1022 = vunpack.c.l.b16 %v937
        %v1023 = vunpack.c.l.b16 %v938
        %v1024 = vunpack.c.h.b16 %v938
        %v1025 = vunpack.c.l.b16 %v939
        %v1026 = vunpack.c.l.b16 %v940
        %v1027 = vunpack.c.h.b16 %v940
        %v1028 = vunpack.c.l.b16 %v941
        %v1029 = vunpack.c.l.b16 %v942
        %v1030 = vunpack.c.h.b16 %v942
        %v1031 = vunpack.c.l.b16 %v943
        %v1032 = vunpack.c.l.b16 %v944
        %v1033 = vunpack.c.h.b16 %v944
        %v1034 = vunpack.c.l.b16 %v945
        %v1035 = vpack.c.b16 %v990, %v987
        %v1036 = vpack.c.b16 %v991, %v988
        %v1037 = vpack.c.b16 %v992, %v989
        %v1038 = vpack.c.b16 %v996, %v993
        %v1039 = vpack.c.b16 %v997, %v994
        %v1040 = vpack.c.b16 %v998, %v995
        %v1041 = vpack.c.b16 %v1002, %v999
        %v1042 = vpack.c.b16 %v1003, %v1000
        %v1043 = vpack.c.b16 %v1004, %v1001
        %v1044 = vpack.c.b16 %v1008, %v1005
        %v1045 = vpack.c.b16 %v1009, %v1006
        %v1046 = vpack.c.b16 %v1010, %v1007
        %v1047 = vpack.c.b16 %v1014, %v1011
        %v1048 = vpack.c.b16 %v1015, %v1012
        %v1049 = vpack.c.b16 %v1016, %v1013
        %v1050 = vpack.c.b16 %v1020, %v1017
        %v1051 = vpack.c.b16 %v1021, %v1018
        %v1052 = vpack.c.b16 %v1022, %v1019
        %v1053 = vpack.c.b16 %v1026, %v1023
        %v1054 = vpack.c.b16 %v1027, %v1024
        %v1055 = vpack.c.b16 %v1028, %v1025
        %v1056 = vpack.c.b16 %v1032, %v1029
        %v1057 = vpack.c.b16 %v1033, %v1030
        %v1058 = vpack.c.b16 %v1034, %v1031
        %1083 = vmatprep.subr.bf16.mxu0 %v1036
        %1084 = vmatpush1.bf16.msra.mxu0 %v1035
        %1085 = vmatprep.subr.bf16.mxu0 %v1039
        %1086 = vmatpush1.bf16.msra.mxu0 %v1038
        %1087 = vmatprep.subr.bf16.mxu0 %v1042
        %1088 = vmatpush1.bf16.msra.mxu0 %v1041
        %1089 = vmatprep.subr.bf16.mxu0 %v1045
        %1090 = vmatpush1.bf16.msra.mxu0 %v1044
        %1091 = vmatprep.subr.bf16.mxu0 %v1048
        %1092 = vmatpush1.bf16.msra.mxu0 %v1047
        %1093 = vmatprep.subr.bf16.mxu0 %v1051
        %1094 = vmatpush1.bf16.msra.mxu0 %v1050
        %1095 = vmatprep.subr.bf16.mxu0 %v1054
        %1096 = vmatpush1.bf16.msra.mxu0 %v1053
        %1097 = vmatprep.subr.bf16.mxu0 %v1057
        %1098 = vmatpush1.bf16.msra.mxu0 %v1056
        %1099 = vmatprep.subr.bf16.mxu0 0
        %1100 = vmatpush1.bf16.msra.mxu0 0
        %1101 = vmatprep.subr.bf16.mxu0 0
        %1102 = vmatpush1.bf16.msra.mxu0 0
        %1103 = vmatprep.subr.bf16.mxu0 0
        %1104 = vmatpush1.bf16.msra.mxu0 0
        %1105 = vmatprep.subr.bf16.mxu0 0
        %1106 = vmatpush1.bf16.msra.mxu0 0
        %1107 = vmatprep.subr.bf16.mxu0 0
        %1108 = vmatpush1.bf16.msra.mxu0 0
        %1109 = vmatprep.subr.bf16.mxu0 0
        %1110 = vmatpush1.bf16.msra.mxu0 0
        %1111 = vmatprep.subr.bf16.mxu0 0
        %1112 = vmatpush1.bf16.msra.mxu0 0
        %1113 = vmatprep.subr.bf16.mxu0 0
        %1114 = vmatpush1.bf16.msra.mxu0 0
        %1115 = vmatprep.mubr.bf16.mxu0 0
        %1116 = vmatmul.mubr.bf16.gmra.mrb[0].mxu0 %v954
        %v1117 = vpop.f32.mrb[0].mxu0
        %v1118 = vadd.f32 0.0, %v1117
        %v1119 = vpop.f32.mrb[0].mxu0
        %v1120 = vadd.f32 0.0, %v1119
        %v1121 = vpop.f32.mrb[0].mxu0
        %v1122 = vpop.f32.mrb[0].mxu0
        %1123 = vdwg.mxu0
        %1124 = vmatprep.subr.bf16.mxu0 0
        %1125 = vmatpush1.bf16.msra.mxu0 %v1037
        %1126 = vmatprep.subr.bf16.mxu0 0
        %1127 = vmatpush1.bf16.msra.mxu0 %v1040
        %1128 = vmatprep.subr.bf16.mxu0 0
        %1129 = vmatpush1.bf16.msra.mxu0 %v1043
        %1130 = vmatprep.subr.bf16.mxu0 0
        %1131 = vmatpush1.bf16.msra.mxu0 %v1046
        %1132 = vmatprep.subr.bf16.mxu0 0
        %1133 = vmatpush1.bf16.msra.mxu0 %v1049
        %1134 = vmatprep.subr.bf16.mxu0 0
        %1135 = vmatpush1.bf16.msra.mxu0 %v1052
        %1136 = vmatprep.subr.bf16.mxu0 0
        %1137 = vmatpush1.bf16.msra.mxu0 %v1055
        %1138 = vmatprep.subr.bf16.mxu0 0
        %1139 = vmatpush1.bf16.msra.mxu0 %v1058
        %1140 = vmatprep.subr.bf16.mxu0 0
        %1141 = vmatpush1.bf16.msra.mxu0 0
        %1142 = vmatprep.subr.bf16.mxu0 0
        %1143 = vmatpush1.bf16.msra.mxu0 0
        %1144 = vmatprep.subr.bf16.mxu0 0
        %1145 = vmatpush1.bf16.msra.mxu0 0
        %1146 = vmatprep.subr.bf16.mxu0 0
        %1147 = vmatpush1.bf16.msra.mxu0 0
        %1148 = vmatprep.subr.bf16.mxu0 0
        %1149 = vmatpush1.bf16.msra.mxu0 0
        %1150 = vmatprep.subr.bf16.mxu0 0
        %1151 = vmatpush1.bf16.msra.mxu0 0
        %1152 = vmatprep.subr.bf16.mxu0 0
        %1153 = vmatpush1.bf16.msra.mxu0 0
        %1154 = vmatprep.subr.bf16.mxu0 0
        %1155 = vmatpush1.bf16.msra.mxu0 0
        %1156 = vmatprep.mubr.bf16.mxu0 0
        %1157 = vmatmul.mubr.bf16.gmra.mrb[0].mxu0 %v954
        %v1158 = vpop.f32.mrb[0].mxu0
        %v1159 = vadd.f32 0.0, %v1158
        %v1160 = vpop.f32.mrb[0].mxu0
        %v1161 = vpop.f32.mrb[0].mxu0
        %v1162 = vpop.f32.mrb[0].mxu0
        %1163 = vdwg.mxu0
        %v1164 = vadd.f32 %v951, %v1118
        %v1165 = vadd.f32 %v952, %v1120
        %v1166 = vxor.u32 %v1164, 2147483648
        %v1167 = vxor.u32 %v1165, 2147483648
        %v1168 = vmul.f32 %v1166, 1.442695
        %v1169 = vpow.pop %v1168
        %v1170 = vmul.f32 %v1167, 1.442695
        %v1171 = vpow.pop %v1170
        %v1172 = vadd.f32 %v1169, 1.0
        %v1173 = vadd.f32 %v1171, 1.0
        %v1174 = vrcp.pop %v1172
        %v1175 = vmul.f32 1.0, %v1174
        %v1176 = vrcp.pop %v1173
        %v1177 = vmul.f32 1.0, %v1176
        %v1179 = vlaneseq
        %v1180 = vshrl.u32 %v1179, 7
        %v1181 = vsub.s32 0, %v1180
        %v1182 = vrot.slane %v946, %v1181
        %v1184 = vadd.f32 %v1159, %v1182
        %v1185 = vmul.f32 %v1175, %v1184
        %v1186 = vadd.f32 %v953, %v1185
        %v1187 = vtanh.pop %v1186
        %v1188 = vsub.f32 1.0, %v1177
        %v1189 = vmul.f32 %v1188, %v1187
        %v1190 = vmul.f32 %v1177, %v947
        %v1191 = vadd.f32 %v1189, %v1190
        %1192 = vst [vmem:[#allocation5] sm:$0xff] %v1191
        %s1193 = smul.u32 1, 3
        %s1194 = smul.addr %s1193, 8
        %s1195 = scalar_lea.vmem [#allocation4], %s1194
        %v1196 = vld [vmem:[%s1195] sm:$0xff]
        %v1197 = vld [vmem:[%s1195 + $0x8] sm:$0xff]
        %v1198 = vld [vmem:[%s1195 + $0x10] sm:$0xff]
        %v1199 = vpack.c.bf16 %v1191, %v1191
        %1200 = vmatprep.subr.bf16.mxu0 %v1036
        %1201 = vmatpush1.bf16.msra.mxu0 %v1035
        %1202 = vmatprep.subr.bf16.mxu0 %v1039
        %1203 = vmatpush1.bf16.msra.mxu0 %v1038
        %1204 = vmatprep.subr.bf16.mxu0 %v1042
        %1205 = vmatpush1.bf16.msra.mxu0 %v1041
        %1206 = vmatprep.subr.bf16.mxu0 %v1045
        %1207 = vmatpush1.bf16.msra.mxu0 %v1044
        %1208 = vmatprep.subr.bf16.mxu0 %v1048
        %1209 = vmatpush1.bf16.msra.mxu0 %v1047
        %1210 = vmatprep.subr.bf16.mxu0 %v1051
        %1211 = vmatpush1.bf16.msra.mxu0 %v1050
        %1212 = vmatprep.subr.bf16.mxu0 %v1054
        %1213 = vmatpush1.bf16.msra.mxu0 %v1053
        %1214 = vmatprep.subr.bf16.mxu0 %v1057
        %1215 = vmatpush1.bf16.msra.mxu0 %v1056
        %1216 = vmatprep.subr.bf16.mxu0 0
        %1217 = vmatpush1.bf16.msra.mxu0 0
        %1218 = vmatprep.subr.bf16.mxu0 0
        %1219 = vmatpush1.bf16.msra.mxu0 0
        %1220 = vmatprep.subr.bf16.mxu0 0
        %1221 = vmatpush1.bf16.msra.mxu0 0
        %1222 = vmatprep.subr.bf16.mxu0 0
        %1223 = vmatpush1.bf16.msra.mxu0 0
        %1224 = vmatprep.subr.bf16.mxu0 0
        %1225 = vmatpush1.bf16.msra.mxu0 0
        %1226 = vmatprep.subr.bf16.mxu0 0
        %1227 = vmatpush1.bf16.msra.mxu0 0
        %1228 = vmatprep.subr.bf16.mxu0 0
        %1229 = vmatpush1.bf16.msra.mxu0 0
        %1230 = vmatprep.subr.bf16.mxu0 0
        %1231 = vmatpush1.bf16.msra.mxu0 0
        %1232 = vmatprep.mubr.bf16.mxu0 0
        %1233 = vmatmul.mubr.bf16.gmra.mrb[0].mxu0 %v1199
        %v1234 = vpop.f32.mrb[0].mxu0
        %v1235 = vadd.f32 0.0, %v1234
        %v1236 = vpop.f32.mrb[0].mxu0
        %v1237 = vadd.f32 0.0, %v1236
        %v1238 = vpop.f32.mrb[0].mxu0
        %v1239 = vpop.f32.mrb[0].mxu0
        %1240 = vdwg.mxu0
        %1241 = vmatprep.subr.bf16.mxu0 0
        %1242 = vmatpush1.bf16.msra.mxu0 %v1037
        %1243 = vmatprep.subr.bf16.mxu0 0
        %1244 = vmatpush1.bf16.msra.mxu0 %v1040
        %1245 = vmatprep.subr.bf16.mxu0 0
        %1246 = vmatpush1.bf16.msra.mxu0 %v1043
        %1247 = vmatprep.subr.bf16.mxu0 0
        %1248 = vmatpush1.bf16.msra.mxu0 %v1046
        %1249 = vmatprep.subr.bf16.mxu0 0
        %1250 = vmatpush1.bf16.msra.mxu0 %v1049
        %1251 = vmatprep.subr.bf16.mxu0 0
        %1252 = vmatpush1.bf16.msra.mxu0 %v1052
        %1253 = vmatprep.subr.bf16.mxu0 0
        %1254 = vmatpush1.bf16.msra.mxu0 %v1055
        %1255 = vmatprep.subr.bf16.mxu0 0
        %1256 = vmatpush1.bf16.msra.mxu0 %v1058
        %1257 = vmatprep.subr.bf16.mxu0 0
        %1258 = vmatpush1.bf16.msra.mxu0 0
        %1259 = vmatprep.subr.bf16.mxu0 0
        %1260 = vmatpush1.bf16.msra.mxu0 0
        %1261 = vmatprep.subr.bf16.mxu0 0
        %1262 = vmatpush1.bf16.msra.mxu0 0
        %1263 = vmatprep.subr.bf16.mxu0 0
        %1264 = vmatpush1.bf16.msra.mxu0 0
        %1265 = vmatprep.subr.bf16.mxu0 0
        %1266 = vmatpush1.bf16.msra.mxu0 0
        %1267 = vmatprep.subr.bf16.mxu0 0
        %1268 = vmatpush1.bf16.msra.mxu0 0
        %1269 = vmatprep.subr.bf16.mxu0 0
        %1270 = vmatpush1.bf16.msra.mxu0 0
        %1271 = vmatprep.subr.bf16.mxu0 0
        %1272 = vmatpush1.bf16.msra.mxu0 0
        %1273 = vmatprep.mubr.bf16.mxu0 0
        %1274 = vmatmul.mubr.bf16.gmra.mrb[0].mxu0 %v1199
        %v1275 = vpop.f32.mrb[0].mxu0
        %v1276 = vadd.f32 0.0, %v1275
        %v1277 = vpop.f32.mrb[0].mxu0
        %v1278 = vpop.f32.mrb[0].mxu0
        %v1279 = vpop.f32.mrb[0].mxu0
        %1280 = vdwg.mxu0
        %v1281 = vadd.f32 %v1196, %v1235
        %v1282 = vadd.f32 %v1197, %v1237
        %v1283 = vxor.u32 %v1281, 2147483648
        %v1284 = vxor.u32 %v1282, 2147483648
        %v1285 = vmul.f32 %v1283, 1.442695
        %v1286 = vpow.pop %v1285
        %v1287 = vmul.f32 %v1284, 1.442695
        %v1288 = vpow.pop %v1287
        %v1289 = vadd.f32 %v1286, 1.0
        %v1290 = vadd.f32 %v1288, 1.0
        %v1291 = vrcp.pop %v1289
        %v1292 = vmul.f32 1.0, %v1291
        %v1293 = vrcp.pop %v1290
        %v1294 = vmul.f32 1.0, %v1293
        %v1295 = vadd.f32 %v1276, %v1182
        %v1296 = vmul.f32 %v1292, %v1295
        %v1297 = vadd.f32 %v1198, %v1296
        %v1298 = vtanh.pop %v1297
        %v1299 = vsub.f32 1.0, %v1294
        %v1300 = vmul.f32 %v1299, %v1298
        %v1301 = vmul.f32 %v1294, %v1191
        %v1302 = vadd.f32 %v1300, %v1301
        %s1303 = scalar_lea.vmem [#allocation5], 8
        %1304 = vst [vmem:[%s1303] sm:$0xff] %v1302
        %s1305 = smul.u32 2, 3
        %s1306 = smul.addr %s1305, 8
        %s1307 = scalar_lea.vmem [#allocation4], %s1306
        %v1308 = vld [vmem:[%s1307] sm:$0xff]
        %v1309 = vld [vmem:[%s1307 + $0x8] sm:$0xff]
        %v1310 = vld [vmem:[%s1307 + $0x10] sm:$0xff]
        %v1311 = vpack.c.bf16 %v1302, %v1302
        %1312 = vmatprep.subr.bf16.mxu0 %v1036
        %1313 = vmatpush1.bf16.msra.mxu0 %v1035
        %1314 = vmatprep.subr.bf16.mxu0 %v1039
        %1315 = vmatpush1.bf16.msra.mxu0 %v1038
        %1316 = vmatprep.subr.bf16.mxu0 %v1042
        %1317 = vmatpush1.bf16.msra.mxu0 %v1041
        %1318 = vmatprep.subr.bf16.mxu0 %v1045
        %1319 = vmatpush1.bf16.msra.mxu0 %v1044
        %1320 = vmatprep.subr.bf16.mxu0 %v1048
        %1321 = vmatpush1.bf16.msra.mxu0 %v1047
        %1322 = vmatprep.subr.bf16.mxu0 %v1051
        %1323 = vmatpush1.bf16.msra.mxu0 %v1050
        %1324 = vmatprep.subr.bf16.mxu0 %v1054
        %1325 = vmatpush1.bf16.msra.mxu0 %v1053
        %1326 = vmatprep.subr.bf16.mxu0 %v1057
        %1327 = vmatpush1.bf16.msra.mxu0 %v1056
        %1328 = vmatprep.subr.bf16.mxu0 0
        %1329 = vmatpush1.bf16.msra.mxu0 0
        %1330 = vmatprep.subr.bf16.mxu0 0
        %1331 = vmatpush1.bf16.msra.mxu0 0
        %1332 = vmatprep.subr.bf16.mxu0 0
        %1333 = vmatpush1.bf16.msra.mxu0 0
        %1334 = vmatprep.subr.bf16.mxu0 0
        %1335 = vmatpush1.bf16.msra.mxu0 0
        %1336 = vmatprep.subr.bf16.mxu0 0
        %1337 = vmatpush1.bf16.msra.mxu0 0
        %1338 = vmatprep.subr.bf16.mxu0 0
        %1339 = vmatpush1.bf16.msra.mxu0 0
        %1340 = vmatprep.subr.bf16.mxu0 0
        %1341 = vmatpush1.bf16.msra.mxu0 0
        %1342 = vmatprep.subr.bf16.mxu0 0
        %1343 = vmatpush1.bf16.msra.mxu0 0
        %1344 = vmatprep.mubr.bf16.mxu0 0
        %1345 = vmatmul.mubr.bf16.gmra.mrb[0].mxu0 %v1311
        %v1346 = vpop.f32.mrb[0].mxu0
        %v1347 = vadd.f32 0.0, %v1346
        %v1348 = vpop.f32.mrb[0].mxu0
        %v1349 = vadd.f32 0.0, %v1348
        %v1350 = vpop.f32.mrb[0].mxu0
        %v1351 = vpop.f32.mrb[0].mxu0
        %1352 = vdwg.mxu0
        %1353 = vmatprep.subr.bf16.mxu0 0
        %1354 = vmatpush1.bf16.msra.mxu0 %v1037
        %1355 = vmatprep.subr.bf16.mxu0 0
        %1356 = vmatpush1.bf16.msra.mxu0 %v1040
        %1357 = vmatprep.subr.bf16.mxu0 0
        %1358 = vmatpush1.bf16.msra.mxu0 %v1043
        %1359 = vmatprep.subr.bf16.mxu0 0
        %1360 = vmatpush1.bf16.msra.mxu0 %v1046
        %1361 = vmatprep.subr.bf16.mxu0 0
        %1362 = vmatpush1.bf16.msra.mxu0 %v1049
        %1363 = vmatprep.subr.bf16.mxu0 0
        %1364 = vmatpush1.bf16.msra.mxu0 %v1052
        %1365 = vmatprep.subr.bf16.mxu0 0
        %1366 = vmatpush1.bf16.msra.mxu0 %v1055
        %1367 = vmatprep.subr.bf16.mxu0 0
        %1368 = vmatpush1.bf16.msra.mxu0 %v1058
        %1369 = vmatprep.subr.bf16.mxu0 0
        %1370 = vmatpush1.bf16.msra.mxu0 0
        %1371 = vmatprep.subr.bf16.mxu0 0
        %1372 = vmatpush1.bf16.msra.mxu0 0
        %1373 = vmatprep.subr.bf16.mxu0 0
        %1374 = vmatpush1.bf16.msra.mxu0 0
        %1375 = vmatprep.subr.bf16.mxu0 0
        %1376 = vmatpush1.bf16.msra.mxu0 0
        %1377 = vmatprep.subr.bf16.mxu0 0
        %1378 = vmatpush1.bf16.msra.mxu0 0
        %1379 = vmatprep.subr.bf16.mxu0 0
        %1380 = vmatpush1.bf16.msra.mxu0 0
        %1381 = vmatprep.subr.bf16.mxu0 0
        %1382 = vmatpush1.bf16.msra.mxu0 0
        %1383 = vmatprep.subr.bf16.mxu0 0
        %1384 = vmatpush1.bf16.msra.mxu0 0
        %1385 = vmatprep.mubr.bf16.mxu0 0
        %1386 = vmatmul.mubr.bf16.gmra.mrb[0].mxu0 %v1311
        %v1387 = vpop.f32.mrb[0].mxu0
        %v1388 = vadd.f32 0.0, %v1387
        %v1389 = vpop.f32.mrb[0].mxu0
        %v1390 = vpop.f32.mrb[0].mxu0
        %v1391 = vpop.f32.mrb[0].mxu0
        %1392 = vdwg.mxu0
        %v1393 = vadd.f32 %v1308, %v1347
        %v1394 = vadd.f32 %v1309, %v1349
        %v1395 = vxor.u32 %v1393, 2147483648
        %v1396 = vxor.u32 %v1394, 2147483648
        %v1397 = vmul.f32 %v1395, 1.442695
        %v1398 = vpow.pop %v1397
        %v1399 = vmul.f32 %v1396, 1.442695
        %v1400 = vpow.pop %v1399
        %v1401 = vadd.f32 %v1398, 1.0
        %v1402 = vadd.f32 %v1400, 1.0
        %v1403 = vrcp.pop %v1401
        %v1404 = vmul.f32 1.0, %v1403
        %v1405 = vrcp.pop %v1402
        %v1406 = vmul.f32 1.0, %v1405
        %v1407 = vadd.f32 %v1388, %v1182
        %v1408 = vmul.f32 %v1404, %v1407
        %v1409 = vadd.f32 %v1310, %v1408
        %v1410 = vtanh.pop %v1409
        %v1411 = vsub.f32 1.0, %v1406
        %v1412 = vmul.f32 %v1411, %v1410
        %v1413 = vmul.f32 %v1406, %v1302
        %v1414 = vadd.f32 %v1412, %v1413
        %s1415 = scalar_lea.vmem [#allocation5], 16
        %1416 = vst [vmem:[%s1415] sm:$0xff] %v1414
        %s1417 = smul.u32 3, 3
        %s1418 = smul.addr %s1417, 8
        %s1419 = scalar_lea.vmem [#allocation4], %s1418
        %v1420 = vld [vmem:[%s1419] sm:$0xff]
        %v1421 = vld [vmem:[%s1419 + $0x8] sm:$0xff]
        %v1422 = vld [vmem:[%s1419 + $0x10] sm:$0xff]
        %v1423 = vpack.c.bf16 %v1414, %v1414
        %1424 = vmatprep.subr.bf16.mxu0 %v1036
        %1425 = vmatpush1.bf16.msra.mxu0 %v1035
        %1426 = vmatprep.subr.bf16.mxu0 %v1039
        %1427 = vmatpush1.bf16.msra.mxu0 %v1038
        %1428 = vmatprep.subr.bf16.mxu0 %v1042
        %1429 = vmatpush1.bf16.msra.mxu0 %v1041
        %1430 = vmatprep.subr.bf16.mxu0 %v1045
        %1431 = vmatpush1.bf16.msra.mxu0 %v1044
        %1432 = vmatprep.subr.bf16.mxu0 %v1048
        %1433 = vmatpush1.bf16.msra.mxu0 %v1047
        %1434 = vmatprep.subr.bf16.mxu0 %v1051
        %1435 = vmatpush1.bf16.msra.mxu0 %v1050
        %1436 = vmatprep.subr.bf16.mxu0 %v1054
        %1437 = vmatpush1.bf16.msra.mxu0 %v1053
        %1438 = vmatprep.subr.bf16.mxu0 %v1057
        %1439 = vmatpush1.bf16.msra.mxu0 %v1056
        %1440 = vmatprep.subr.bf16.mxu0 0
        %1441 = vmatpush1.bf16.msra.mxu0 0
        %1442 = vmatprep.subr.bf16.mxu0 0
        %1443 = vmatpush1.bf16.msra.mxu0 0
        %1444 = vmatprep.subr.bf16.mxu0 0
        %1445 = vmatpush1.bf16.msra.mxu0 0
        %1446 = vmatprep.subr.bf16.mxu0 0
        %1447 = vmatpush1.bf16.msra.mxu0 0
        %1448 = vmatprep.subr.bf16.mxu0 0
        %1449 = vmatpush1.bf16.msra.mxu0 0
        %1450 = vmatprep.subr.bf16.mxu0 0
        %1451 = vmatpush1.bf16.msra.mxu0 0
        %1452 = vmatprep.subr.bf16.mxu0 0
        %1453 = vmatpush1.bf16.msra.mxu0 0
        %1454 = vmatprep.subr.bf16.mxu0 0
        %1455 = vmatpush1.bf16.msra.mxu0 0
        %1456 = vmatprep.mubr.bf16.mxu0 0
        %1457 = vmatmul.mubr.bf16.gmra.mrb[0].mxu0 %v1423
        %v1458 = vpop.f32.mrb[0].mxu0
        %v1459 = vadd.f32 0.0, %v1458
        %v1460 = vpop.f32.mrb[0].mxu0
        %v1461 = vadd.f32 0.0, %v1460
        %v1462 = vpop.f32.mrb[0].mxu0
        %v1463 = vpop.f32.mrb[0].mxu0
        %1464 = vdwg.mxu0
        %1465 = vmatprep.subr.bf16.mxu0 0
        %1466 = vmatpush1.bf16.msra.mxu0 %v1037
        %1467 = vmatprep.subr.bf16.mxu0 0
        %1468 = vmatpush1.bf16.msra.mxu0 %v1040
        %1469 = vmatprep.subr.bf16.mxu0 0
        %1470 = vmatpush1.bf16.msra.mxu0 %v1043
        %1471 = vmatprep.subr.bf16.mxu0 0
        %1472 = vmatpush1.bf16.msra.mxu0 %v1046
        %1473 = vmatprep.subr.bf16.mxu0 0
        %1474 = vmatpush1.bf16.msra.mxu0 %v1049
        %1475 = vmatprep.subr.bf16.mxu0 0
        %1476 = vmatpush1.bf16.msra.mxu0 %v1052
        %1477 = vmatprep.subr.bf16.mxu0 0
        %1478 = vmatpush1.bf16.msra.mxu0 %v1055
        %1479 = vmatprep.subr.bf16.mxu0 0
        %1480 = vmatpush1.bf16.msra.mxu0 %v1058
        %1481 = vmatprep.subr.bf16.mxu0 0
        %1482 = vmatpush1.bf16.msra.mxu0 0
        %1483 = vmatprep.subr.bf16.mxu0 0
        %1484 = vmatpush1.bf16.msra.mxu0 0
        %1485 = vmatprep.subr.bf16.mxu0 0
        %1486 = vmatpush1.bf16.msra.mxu0 0
        %1487 = vmatprep.subr.bf16.mxu0 0
        %1488 = vmatpush1.bf16.msra.mxu0 0
        %1489 = vmatprep.subr.bf16.mxu0 0
        %1490 = vmatpush1.bf16.msra.mxu0 0
        %1491 = vmatprep.subr.bf16.mxu0 0
        %1492 = vmatpush1.bf16.msra.mxu0 0
        %1493 = vmatprep.subr.bf16.mxu0 0
        %1494 = vmatpush1.bf16.msra.mxu0 0
        %1495 = vmatprep.subr.bf16.mxu0 0
        %1496 = vmatpush1.bf16.msra.mxu0 0
        %1497 = vmatprep.mubr.bf16.mxu0 0
        %1498 = vmatmul.mubr.bf16.gmra.mrb[0].mxu0 %v1423
        %v1499 = vpop.f32.mrb[0].mxu0
        %v1500 = vadd.f32 0.0, %v1499
        %v1501 = vpop.f32.mrb[0].mxu0
        %v1502 = vpop.f32.mrb[0].mxu0
        %v1503 = vpop.f32.mrb[0].mxu0
        %1504 = vdwg.mxu0
        %v1505 = vadd.f32 %v1420, %v1459
        %v1506 = vadd.f32 %v1421, %v1461
        %v1507 = vxor.u32 %v1505, 2147483648
        %v1508 = vxor.u32 %v1506, 2147483648
        %v1509 = vmul.f32 %v1507, 1.442695
        %v1510 = vpow.pop %v1509
        %v1511 = vmul.f32 %v1508, 1.442695
        %v1512 = vpow.pop %v1511
        %v1513 = vadd.f32 %v1510, 1.0
        %v1514 = vadd.f32 %v1512, 1.0
        %v1515 = vrcp.pop %v1513
        %v1516 = vmul.f32 1.0, %v1515
        %v1517 = vrcp.pop %v1514
        %v1518 = vmul.f32 1.0, %v1517
        %v1519 = vadd.f32 %v1500, %v1182
        %v1520 = vmul.f32 %v1516, %v1519
        %v1521 = vadd.f32 %v1422, %v1520
        %v1522 = vtanh.pop %v1521
        %v1523 = vsub.f32 1.0, %v1518
        %v1524 = vmul.f32 %v1523, %v1522
        %v1525 = vmul.f32 %v1518, %v1414
        %v1526 = vadd.f32 %v1524, %v1525
        %s1527 = scalar_lea.vmem [#allocation5], 24
        %1528 = vst [vmem:[%s1527] sm:$0xff] %v1526
        %s1529 = smul.u32 4, 3
        %s1530 = smul.addr %s1529, 8
        %s1531 = scalar_lea.vmem [#allocation4], %s1530
        %v1532 = vld [vmem:[%s1531] sm:$0xff]
        %v1533 = vld [vmem:[%s1531 + $0x8] sm:$0xff]
        %v1534 = vld [vmem:[%s1531 + $0x10] sm:$0xff]
        %v1535 = vpack.c.bf16 %v1526, %v1526
        %1536 = vmatprep.subr.bf16.mxu0 %v1036
        %1537 = vmatpush1.bf16.msra.mxu0 %v1035
        %1538 = vmatprep.subr.bf16.mxu0 %v1039
        %1539 = vmatpush1.bf16.msra.mxu0 %v1038
        %1540 = vmatprep.subr.bf16.mxu0 %v1042
        %1541 = vmatpush1.bf16.msra.mxu0 %v1041
        %1542 = vmatprep.subr.bf16.mxu0 %v1045
        %1543 = vmatpush1.bf16.msra.mxu0 %v1044
        %1544 = vmatprep.subr.bf16.mxu0 %v1048
        %1545 = vmatpush1.bf16.msra.mxu0 %v1047
        %1546 = vmatprep.subr.bf16.mxu0 %v1051
        %1547 = vmatpush1.bf16.msra.mxu0 %v1050
        %1548 = vmatprep.subr.bf16.mxu0 %v1054
        %1549 = vmatpush1.bf16.msra.mxu0 %v1053
        %1550 = vmatprep.subr.bf16.mxu0 %v1057
        %1551 = vmatpush1.bf16.msra.mxu0 %v1056
        %1552 = vmatprep.subr.bf16.mxu0 0
        %1553 = vmatpush1.bf16.msra.mxu0 0
        %1554 = vmatprep.subr.bf16.mxu0 0
        %1555 = vmatpush1.bf16.msra.mxu0 0
        %1556 = vmatprep.subr.bf16.mxu0 0
        %1557 = vmatpush1.bf16.msra.mxu0 0
        %1558 = vmatprep.subr.bf16.mxu0 0
        %1559 = vmatpush1.bf16.msra.mxu0 0
        %1560 = vmatprep.subr.bf16.mxu0 0
        %1561 = vmatpush1.bf16.msra.mxu0 0
        %1562 = vmatprep.subr.bf16.mxu0 0
        %1563 = vmatpush1.bf16.msra.mxu0 0
        %1564 = vmatprep.subr.bf16.mxu0 0
        %1565 = vmatpush1.bf16.msra.mxu0 0
        %1566 = vmatprep.subr.bf16.mxu0 0
        %1567 = vmatpush1.bf16.msra.mxu0 0
        %1568 = vmatprep.mubr.bf16.mxu0 0
        %1569 = vmatmul.mubr.bf16.gmra.mrb[0].mxu0 %v1535
        %v1570 = vpop.f32.mrb[0].mxu0
        %v1571 = vadd.f32 0.0, %v1570
        %v1572 = vpop.f32.mrb[0].mxu0
        %v1573 = vadd.f32 0.0, %v1572
        %v1574 = vpop.f32.mrb[0].mxu0
        %v1575 = vpop.f32.mrb[0].mxu0
        %1576 = vdwg.mxu0
        %1577 = vmatprep.subr.bf16.mxu0 0
        %1578 = vmatpush1.bf16.msra.mxu0 %v1037
        %1579 = vmatprep.subr.bf16.mxu0 0
        %1580 = vmatpush1.bf16.msra.mxu0 %v1040
        %1581 = vmatprep.subr.bf16.mxu0 0
        %1582 = vmatpush1.bf16.msra.mxu0 %v1043
        %1583 = vmatprep.subr.bf16.mxu0 0
        %1584 = vmatpush1.bf16.msra.mxu0 %v1046
        %1585 = vmatprep.subr.bf16.mxu0 0
        %1586 = vmatpush1.bf16.msra.mxu0 %v1049
        %1587 = vmatprep.subr.bf16.mxu0 0
        %1588 = vmatpush1.bf16.msra.mxu0 %v1052
        %1589 = vmatprep.subr.bf16.mxu0 0
        %1590 = vmatpush1.bf16.msra.mxu0 %v1055
        %1591 = vmatprep.subr.bf16.mxu0 0
        %1592 = vmatpush1.bf16.msra.mxu0 %v1058
        %1593 = vmatprep.subr.bf16.mxu0 0
        %1594 = vmatpush1.bf16.msra.mxu0 0
        %1595 = vmatprep.subr.bf16.mxu0 0
        %1596 = vmatpush1.bf16.msra.mxu0 0
        %1597 = vmatprep.subr.bf16.mxu0 0
        %1598 = vmatpush1.bf16.msra.mxu0 0
        %1599 = vmatprep.subr.bf16.mxu0 0
        %1600 = vmatpush1.bf16.msra.mxu0 0
        %1601 = vmatprep.subr.bf16.mxu0 0
        %1602 = vmatpush1.bf16.msra.mxu0 0
        %1603 = vmatprep.subr.bf16.mxu0 0
        %1604 = vmatpush1.bf16.msra.mxu0 0
        %1605 = vmatprep.subr.bf16.mxu0 0
        %1606 = vmatpush1.bf16.msra.mxu0 0
        %1607 = vmatprep.subr.bf16.mxu0 0
        %1608 = vmatpush1.bf16.msra.mxu0 0
        %1609 = vmatprep.mubr.bf16.mxu0 0
        %1610 = vmatmul.mubr.bf16.gmra.mrb[0].mxu0 %v1535
        %v1611 = vpop.f32.mrb[0].mxu0
        %v1612 = vadd.f32 0.0, %v1611
        %v1613 = vpop.f32.mrb[0].mxu0
        %v1614 = vpop.f32.mrb[0].mxu0
        %v1615 = vpop.f32.mrb[0].mxu0
        %1616 = vdwg.mxu0
        %v1617 = vadd.f32 %v1532, %v1571
        %v1618 = vadd.f32 %v1533, %v1573
        %v1619 = vxor.u32 %v1617, 2147483648
        %v1620 = vxor.u32 %v1618, 2147483648
        %v1621 = vmul.f32 %v1619, 1.442695
        %v1622 = vpow.pop %v1621
        %v1623 = vmul.f32 %v1620, 1.442695
        %v1624 = vpow.pop %v1623
        %v1625 = vadd.f32 %v1622, 1.0
        %v1626 = vadd.f32 %v1624, 1.0
        %v1627 = vrcp.pop %v1625
        %v1628 = vmul.f32 1.0, %v1627
        %v1629 = vrcp.pop %v1626
        %v1630 = vmul.f32 1.0, %v1629
        %v1631 = vadd.f32 %v1612, %v1182
        %v1632 = vmul.f32 %v1628, %v1631
        %v1633 = vadd.f32 %v1534, %v1632
        %v1634 = vtanh.pop %v1633
        %v1635 = vsub.f32 1.0, %v1630
        %v1636 = vmul.f32 %v1635, %v1634
        %v1637 = vmul.f32 %v1630, %v1526
        %v1638 = vadd.f32 %v1636, %v1637
        %s1639 = scalar_lea.vmem [#allocation5], 32
        %1640 = vst [vmem:[%s1639] sm:$0xff] %v1638
        %s1641 = smul.u32 5, 3
        %s1642 = smul.addr %s1641, 8
        %s1643 = scalar_lea.vmem [#allocation4], %s1642
        %v1644 = vld [vmem:[%s1643] sm:$0xff]
        %v1645 = vld [vmem:[%s1643 + $0x8] sm:$0xff]
        %v1646 = vld [vmem:[%s1643 + $0x10] sm:$0xff]
        %v1647 = vpack.c.bf16 %v1638, %v1638
        %1648 = vmatprep.subr.bf16.mxu0 %v1036
        %1649 = vmatpush1.bf16.msra.mxu0 %v1035
        %1650 = vmatprep.subr.bf16.mxu0 %v1039
        %1651 = vmatpush1.bf16.msra.mxu0 %v1038
        %1652 = vmatprep.subr.bf16.mxu0 %v1042
        %1653 = vmatpush1.bf16.msra.mxu0 %v1041
        %1654 = vmatprep.subr.bf16.mxu0 %v1045
        %1655 = vmatpush1.bf16.msra.mxu0 %v1044
        %1656 = vmatprep.subr.bf16.mxu0 %v1048
        %1657 = vmatpush1.bf16.msra.mxu0 %v1047
        %1658 = vmatprep.subr.bf16.mxu0 %v1051
        %1659 = vmatpush1.bf16.msra.mxu0 %v1050
        %1660 = vmatprep.subr.bf16.mxu0 %v1054
        %1661 = vmatpush1.bf16.msra.mxu0 %v1053
        %1662 = vmatprep.subr.bf16.mxu0 %v1057
        %1663 = vmatpush1.bf16.msra.mxu0 %v1056
        %1664 = vmatprep.subr.bf16.mxu0 0
        %1665 = vmatpush1.bf16.msra.mxu0 0
        %1666 = vmatprep.subr.bf16.mxu0 0
        %1667 = vmatpush1.bf16.msra.mxu0 0
        %1668 = vmatprep.subr.bf16.mxu0 0
        %1669 = vmatpush1.bf16.msra.mxu0 0
        %1670 = vmatprep.subr.bf16.mxu0 0
        %1671 = vmatpush1.bf16.msra.mxu0 0
        %1672 = vmatprep.subr.bf16.mxu0 0
        %1673 = vmatpush1.bf16.msra.mxu0 0
        %1674 = vmatprep.subr.bf16.mxu0 0
        %1675 = vmatpush1.bf16.msra.mxu0 0
        %1676 = vmatprep.subr.bf16.mxu0 0
        %1677 = vmatpush1.bf16.msra.mxu0 0
        %1678 = vmatprep.subr.bf16.mxu0 0
        %1679 = vmatpush1.bf16.msra.mxu0 0
        %1680 = vmatprep.mubr.bf16.mxu0 0
        %1681 = vmatmul.mubr.bf16.gmra.mrb[0].mxu0 %v1647
        %v1682 = vpop.f32.mrb[0].mxu0
        %v1683 = vadd.f32 0.0, %v1682
        %v1684 = vpop.f32.mrb[0].mxu0
        %v1685 = vadd.f32 0.0, %v1684
        %v1686 = vpop.f32.mrb[0].mxu0
        %v1687 = vpop.f32.mrb[0].mxu0
        %1688 = vdwg.mxu0
        %1689 = vmatprep.subr.bf16.mxu0 0
        %1690 = vmatpush1.bf16.msra.mxu0 %v1037
        %1691 = vmatprep.subr.bf16.mxu0 0
        %1692 = vmatpush1.bf16.msra.mxu0 %v1040
        %1693 = vmatprep.subr.bf16.mxu0 0
        %1694 = vmatpush1.bf16.msra.mxu0 %v1043
        %1695 = vmatprep.subr.bf16.mxu0 0
        %1696 = vmatpush1.bf16.msra.mxu0 %v1046
        %1697 = vmatprep.subr.bf16.mxu0 0
        %1698 = vmatpush1.bf16.msra.mxu0 %v1049
        %1699 = vmatprep.subr.bf16.mxu0 0
        %1700 = vmatpush1.bf16.msra.mxu0 %v1052
        %1701 = vmatprep.subr.bf16.mxu0 0
        %1702 = vmatpush1.bf16.msra.mxu0 %v1055
        %1703 = vmatprep.subr.bf16.mxu0 0
        %1704 = vmatpush1.bf16.msra.mxu0 %v1058
        %1705 = vmatprep.subr.bf16.mxu0 0
        %1706 = vmatpush1.bf16.msra.mxu0 0
        %1707 = vmatprep.subr.bf16.mxu0 0
        %1708 = vmatpush1.bf16.msra.mxu0 0
        %1709 = vmatprep.subr.bf16.mxu0 0
        %1710 = vmatpush1.bf16.msra.mxu0 0
        %1711 = vmatprep.subr.bf16.mxu0 0
        %1712 = vmatpush1.bf16.msra.mxu0 0
        %1713 = vmatprep.subr.bf16.mxu0 0
        %1714 = vmatpush1.bf16.msra.mxu0 0
        %1715 = vmatprep.subr.bf16.mxu0 0
        %1716 = vmatpush1.bf16.msra.mxu0 0
        %1717 = vmatprep.subr.bf16.mxu0 0
        %1718 = vmatpush1.bf16.msra.mxu0 0
        %1719 = vmatprep.subr.bf16.mxu0 0
        %1720 = vmatpush1.bf16.msra.mxu0 0
        %1721 = vmatprep.mubr.bf16.mxu0 0
        %1722 = vmatmul.mubr.bf16.gmra.mrb[0].mxu0 %v1647
        %v1723 = vpop.f32.mrb[0].mxu0
        %v1724 = vadd.f32 0.0, %v1723
        %v1725 = vpop.f32.mrb[0].mxu0
        %v1726 = vpop.f32.mrb[0].mxu0
        %v1727 = vpop.f32.mrb[0].mxu0
        %1728 = vdwg.mxu0
        %v1729 = vadd.f32 %v1644, %v1683
        %v1730 = vadd.f32 %v1645, %v1685
        %v1731 = vxor.u32 %v1729, 2147483648
        %v1732 = vxor.u32 %v1730, 2147483648
        %v1733 = vmul.f32 %v1731, 1.442695
        %v1734 = vpow.pop %v1733
        %v1735 = vmul.f32 %v1732, 1.442695
        %v1736 = vpow.pop %v1735
        %v1737 = vadd.f32 %v1734, 1.0
        %v1738 = vadd.f32 %v1736, 1.0
        %v1739 = vrcp.pop %v1737
        %v1740 = vmul.f32 1.0, %v1739
        %v1741 = vrcp.pop %v1738
        %v1742 = vmul.f32 1.0, %v1741
        %v1743 = vadd.f32 %v1724, %v1182
        %v1744 = vmul.f32 %v1740, %v1743
        %v1745 = vadd.f32 %v1646, %v1744
        %v1746 = vtanh.pop %v1745
        %v1747 = vsub.f32 1.0, %v1742
        %v1748 = vmul.f32 %v1747, %v1746
        %v1749 = vmul.f32 %v1742, %v1638
        %v1750 = vadd.f32 %v1748, %v1749
        %s1751 = scalar_lea.vmem [#allocation5], 40
        %1752 = vst [vmem:[%s1751] sm:$0xff] %v1750
        %s1753 = smul.u32 6, 3
        %s1754 = smul.addr %s1753, 8
        %s1755 = scalar_lea.vmem [#allocation4], %s1754
        %v1756 = vld [vmem:[%s1755] sm:$0xff]
        %v1757 = vld [vmem:[%s1755 + $0x8] sm:$0xff]
        %v1758 = vld [vmem:[%s1755 + $0x10] sm:$0xff]
        %v1759 = vpack.c.bf16 %v1750, %v1750
        %1760 = vmatprep.subr.bf16.mxu0 %v1036
        %1761 = vmatpush1.bf16.msra.mxu0 %v1035
        %1762 = vmatprep.subr.bf16.mxu0 %v1039
        %1763 = vmatpush1.bf16.msra.mxu0 %v1038
        %1764 = vmatprep.subr.bf16.mxu0 %v1042
        %1765 = vmatpush1.bf16.msra.mxu0 %v1041
        %1766 = vmatprep.subr.bf16.mxu0 %v1045
        %1767 = vmatpush1.bf16.msra.mxu0 %v1044
        %1768 = vmatprep.subr.bf16.mxu0 %v1048
        %1769 = vmatpush1.bf16.msra.mxu0 %v1047
        %1770 = vmatprep.subr.bf16.mxu0 %v1051
        %1771 = vmatpush1.bf16.msra.mxu0 %v1050
        %1772 = vmatprep.subr.bf16.mxu0 %v1054
        %1773 = vmatpush1.bf16.msra.mxu0 %v1053
        %1774 = vmatprep.subr.bf16.mxu0 %v1057
        %1775 = vmatpush1.bf16.msra.mxu0 %v1056
        %1776 = vmatprep.subr.bf16.mxu0 0
        %1777 = vmatpush1.bf16.msra.mxu0 0
        %1778 = vmatprep.subr.bf16.mxu0 0
        %1779 = vmatpush1.bf16.msra.mxu0 0
        %1780 = vmatprep.subr.bf16.mxu0 0
        %1781 = vmatpush1.bf16.msra.mxu0 0
        %1782 = vmatprep.subr.bf16.mxu0 0
        %1783 = vmatpush1.bf16.msra.mxu0 0
        %1784 = vmatprep.subr.bf16.mxu0 0
        %1785 = vmatpush1.bf16.msra.mxu0 0
        %1786 = vmatprep.subr.bf16.mxu0 0
        %1787 = vmatpush1.bf16.msra.mxu0 0
        %1788 = vmatprep.subr.bf16.mxu0 0
        %1789 = vmatpush1.bf16.msra.mxu0 0
        %1790 = vmatprep.subr.bf16.mxu0 0
        %1791 = vmatpush1.bf16.msra.mxu0 0
        %1792 = vmatprep.mubr.bf16.mxu0 0
        %1793 = vmatmul.mubr.bf16.gmra.mrb[0].mxu0 %v1759
        %v1794 = vpop.f32.mrb[0].mxu0
        %v1795 = vadd.f32 0.0, %v1794
        %v1796 = vpop.f32.mrb[0].mxu0
        %v1797 = vadd.f32 0.0, %v1796
        %v1798 = vpop.f32.mrb[0].mxu0
        %v1799 = vpop.f32.mrb[0].mxu0
        %1800 = vdwg.mxu0
        %1801 = vmatprep.subr.bf16.mxu0 0
        %1802 = vmatpush1.bf16.msra.mxu0 %v1037
        %1803 = vmatprep.subr.bf16.mxu0 0
        %1804 = vmatpush1.bf16.msra.mxu0 %v1040
        %1805 = vmatprep.subr.bf16.mxu0 0
        %1806 = vmatpush1.bf16.msra.mxu0 %v1043
        %1807 = vmatprep.subr.bf16.mxu0 0
        %1808 = vmatpush1.bf16.msra.mxu0 %v1046
        %1809 = vmatprep.subr.bf16.mxu0 0
        %1810 = vmatpush1.bf16.msra.mxu0 %v1049
        %1811 = vmatprep.subr.bf16.mxu0 0
        %1812 = vmatpush1.bf16.msra.mxu0 %v1052
        %1813 = vmatprep.subr.bf16.mxu0 0
        %1814 = vmatpush1.bf16.msra.mxu0 %v1055
        %1815 = vmatprep.subr.bf16.mxu0 0
        %1816 = vmatpush1.bf16.msra.mxu0 %v1058
        %1817 = vmatprep.subr.bf16.mxu0 0
        %1818 = vmatpush1.bf16.msra.mxu0 0
        %1819 = vmatprep.subr.bf16.mxu0 0
        %1820 = vmatpush1.bf16.msra.mxu0 0
        %1821 = vmatprep.subr.bf16.mxu0 0
        %1822 = vmatpush1.bf16.msra.mxu0 0
        %1823 = vmatprep.subr.bf16.mxu0 0
        %1824 = vmatpush1.bf16.msra.mxu0 0
        %1825 = vmatprep.subr.bf16.mxu0 0
        %1826 = vmatpush1.bf16.msra.mxu0 0
        %1827 = vmatprep.subr.bf16.mxu0 0
        %1828 = vmatpush1.bf16.msra.mxu0 0
        %1829 = vmatprep.subr.bf16.mxu0 0
        %1830 = vmatpush1.bf16.msra.mxu0 0
        %1831 = vmatprep.subr.bf16.mxu0 0
        %1832 = vmatpush1.bf16.msra.mxu0 0
        %1833 = vmatprep.mubr.bf16.mxu0 0
        %1834 = vmatmul.mubr.bf16.gmra.mrb[0].mxu0 %v1759
        %v1835 = vpop.f32.mrb[0].mxu0
        %v1836 = vadd.f32 0.0, %v1835
        %v1837 = vpop.f32.mrb[0].mxu0
        %v1838 = vpop.f32.mrb[0].mxu0
        %v1839 = vpop.f32.mrb[0].mxu0
        %1840 = vdwg.mxu0
        %v1841 = vadd.f32 %v1756, %v1795
        %v1842 = vadd.f32 %v1757, %v1797
        %v1843 = vxor.u32 %v1841, 2147483648
        %v1844 = vxor.u32 %v1842, 2147483648
        %v1845 = vmul.f32 %v1843, 1.442695
        %v1846 = vpow.pop %v1845
        %v1847 = vmul.f32 %v1844, 1.442695
        %v1848 = vpow.pop %v1847
        %v1849 = vadd.f32 %v1846, 1.0
        %v1850 = vadd.f32 %v1848, 1.0
        %v1851 = vrcp.pop %v1849
        %v1852 = vmul.f32 1.0, %v1851
        %v1853 = vrcp.pop %v1850
        %v1854 = vmul.f32 1.0, %v1853
        %v1855 = vadd.f32 %v1836, %v1182
        %v1856 = vmul.f32 %v1852, %v1855
        %v1857 = vadd.f32 %v1758, %v1856
        %v1858 = vtanh.pop %v1857
        %v1859 = vsub.f32 1.0, %v1854
        %v1860 = vmul.f32 %v1859, %v1858
        %v1861 = vmul.f32 %v1854, %v1750
        %v1862 = vadd.f32 %v1860, %v1861
        %s1863 = scalar_lea.vmem [#allocation5], 48
        %1864 = vst [vmem:[%s1863] sm:$0xff] %v1862
        %s1865 = smul.u32 7, 3
        %s1866 = smul.addr %s1865, 8
        %s1867 = scalar_lea.vmem [#allocation4], %s1866
        %v1868 = vld [vmem:[%s1867] sm:$0xff]
        %v1869 = vld [vmem:[%s1867 + $0x8] sm:$0xff]
        %v1870 = vld [vmem:[%s1867 + $0x10] sm:$0xff]
        %v1871 = vpack.c.bf16 %v1862, %v1862
        %1872 = vmatprep.subr.bf16.mxu0 %v1036
        %1873 = vmatpush1.bf16.msra.mxu0 %v1035
        %1874 = vmatprep.subr.bf16.mxu0 %v1039
        %1875 = vmatpush1.bf16.msra.mxu0 %v1038
        %1876 = vmatprep.subr.bf16.mxu0 %v1042
        %1877 = vmatpush1.bf16.msra.mxu0 %v1041
        %1878 = vmatprep.subr.bf16.mxu0 %v1045
        %1879 = vmatpush1.bf16.msra.mxu0 %v1044
        %1880 = vmatprep.subr.bf16.mxu0 %v1048
        %1881 = vmatpush1.bf16.msra.mxu0 %v1047
        %1882 = vmatprep.subr.bf16.mxu0 %v1051
        %1883 = vmatpush1.bf16.msra.mxu0 %v1050
        %1884 = vmatprep.subr.bf16.mxu0 %v1054
        %1885 = vmatpush1.bf16.msra.mxu0 %v1053
        %1886 = vmatprep.subr.bf16.mxu0 %v1057
        %1887 = vmatpush1.bf16.msra.mxu0 %v1056
        %1888 = vmatprep.subr.bf16.mxu0 0
        %1889 = vmatpush1.bf16.msra.mxu0 0
        %1890 = vmatprep.subr.bf16.mxu0 0
        %1891 = vmatpush1.bf16.msra.mxu0 0
        %1892 = vmatprep.subr.bf16.mxu0 0
        %1893 = vmatpush1.bf16.msra.mxu0 0
        %1894 = vmatprep.subr.bf16.mxu0 0
        %1895 = vmatpush1.bf16.msra.mxu0 0
        %1896 = vmatprep.subr.bf16.mxu0 0
        %1897 = vmatpush1.bf16.msra.mxu0 0
        %1898 = vmatprep.subr.bf16.mxu0 0
        %1899 = vmatpush1.bf16.msra.mxu0 0
        %1900 = vmatprep.subr.bf16.mxu0 0
        %1901 = vmatpush1.bf16.msra.mxu0 0
        %1902 = vmatprep.subr.bf16.mxu0 0
        %1903 = vmatpush1.bf16.msra.mxu0 0
        %1904 = vmatprep.mubr.bf16.mxu0 0
        %1905 = vmatmul.mubr.bf16.gmra.mrb[0].mxu0 %v1871
        %v1906 = vpop.f32.mrb[0].mxu0
        %v1907 = vadd.f32 0.0, %v1906
        %v1908 = vpop.f32.mrb[0].mxu0
        %v1909 = vadd.f32 0.0, %v1908
        %v1910 = vpop.f32.mrb[0].mxu0
        %v1911 = vpop.f32.mrb[0].mxu0
        %1912 = vdwg.mxu0
        %1913 = vmatprep.subr.bf16.mxu0 0
        %1914 = vmatpush1.bf16.msra.mxu0 %v1037
        %1915 = vmatprep.subr.bf16.mxu0 0
        %1916 = vmatpush1.bf16.msra.mxu0 %v1040
        %1917 = vmatprep.subr.bf16.mxu0 0
        %1918 = vmatpush1.bf16.msra.mxu0 %v1043
        %1919 = vmatprep.subr.bf16.mxu0 0
        %1920 = vmatpush1.bf16.msra.mxu0 %v1046
        %1921 = vmatprep.subr.bf16.mxu0 0
        %1922 = vmatpush1.bf16.msra.mxu0 %v1049
        %1923 = vmatprep.subr.bf16.mxu0 0
        %1924 = vmatpush1.bf16.msra.mxu0 %v1052
        %1925 = vmatprep.subr.bf16.mxu0 0
        %1926 = vmatpush1.bf16.msra.mxu0 %v1055
        %1927 = vmatprep.subr.bf16.mxu0 0
        %1928 = vmatpush1.bf16.msra.mxu0 %v1058
        %1929 = vmatprep.subr.bf16.mxu0 0
        %1930 = vmatpush1.bf16.msra.mxu0 0
        %1931 = vmatprep.subr.bf16.mxu0 0
        %1932 = vmatpush1.bf16.msra.mxu0 0
        %1933 = vmatprep.subr.bf16.mxu0 0
        %1934 = vmatpush1.bf16.msra.mxu0 0
        %1935 = vmatprep.subr.bf16.mxu0 0
        %1936 = vmatpush1.bf16.msra.mxu0 0
        %1937 = vmatprep.subr.bf16.mxu0 0
        %1938 = vmatpush1.bf16.msra.mxu0 0
        %1939 = vmatprep.subr.bf16.mxu0 0
        %1940 = vmatpush1.bf16.msra.mxu0 0
        %1941 = vmatprep.subr.bf16.mxu0 0
        %1942 = vmatpush1.bf16.msra.mxu0 0
        %1943 = vmatprep.subr.bf16.mxu0 0
        %1944 = vmatpush1.bf16.msra.mxu0 0
        %1945 = vmatprep.mubr.bf16.mxu0 0
        %1946 = vmatmul.mubr.bf16.gmra.mrb[0].mxu0 %v1871
        %v1947 = vpop.f32.mrb[0].mxu0
        %v1948 = vadd.f32 0.0, %v1947
        %v1949 = vpop.f32.mrb[0].mxu0
        %v1950 = vpop.f32.mrb[0].mxu0
        %v1951 = vpop.f32.mrb[0].mxu0
        %1952 = vdwg.mxu0
        %v1953 = vadd.f32 %v1868, %v1907
        %v1954 = vadd.f32 %v1869, %v1909
        %v1955 = vxor.u32 %v1953, 2147483648
        %v1956 = vxor.u32 %v1954, 2147483648
        %v1957 = vmul.f32 %v1955, 1.442695
        %v1958 = vpow.pop %v1957
        %v1959 = vmul.f32 %v1956, 1.442695
        %v1960 = vpow.pop %v1959
        %v1961 = vadd.f32 %v1958, 1.0
        %v1962 = vadd.f32 %v1960, 1.0
        %v1963 = vrcp.pop %v1961
        %v1964 = vmul.f32 1.0, %v1963
        %v1965 = vrcp.pop %v1962
        %v1966 = vmul.f32 1.0, %v1965
        %v1967 = vadd.f32 %v1948, %v1182
        %v1968 = vmul.f32 %v1964, %v1967
        %v1969 = vadd.f32 %v1870, %v1968
        %v1970 = vtanh.pop %v1969
        %v1971 = vsub.f32 1.0, %v1966
        %v1972 = vmul.f32 %v1971, %v1970
        %v1973 = vmul.f32 %v1966, %v1862
        %v1974 = vadd.f32 %v1972, %v1973
        %s1975 = scalar_lea.vmem [#allocation5], 56
        %1976 = vst [vmem:[%s1975] sm:$0xff] %v1974
        %1977 = vst [vmem:[#allocation2] sm:$0xff] %v1974
        %v1978 = vld [vmem:[#allocation5] sm:$0x1]
        %v1979 = vld [vmem:[#allocation5 + $0x8] sm:$0x1]
        %v1980 = vld [vmem:[#allocation5 + $0x10] sm:$0x1]
        %v1981 = vld [vmem:[#allocation5 + $0x18] sm:$0x1]
        %v1982 = vld [vmem:[#allocation5 + $0x20] sm:$0x1]
        %v1983 = vld [vmem:[#allocation5 + $0x28] sm:$0x1]
        %v1984 = vld [vmem:[#allocation5 + $0x30] sm:$0x1]
        %v1985 = vld [vmem:[#allocation5 + $0x38] sm:$0x1]
        %v1994 = vrot.slane %v1979, 7
        %v1995 = vsel %vm304, %v1994, %v1978
        %v1996 = vrot.slane %v1980, 6
        %v1997 = vsel %vm307, %v1996, %v1995
        %v1998 = vrot.slane %v1981, 5
        %v1999 = vsel %vm310, %v1998, %v1997
        %v2000 = vrot.slane %v1982, 4
        %v2001 = vsel %vm313, %v2000, %v1999
        %v2002 = vrot.slane %v1983, 3
        %v2003 = vsel %vm316, %v2002, %v2001
        %v2004 = vrot.slane %v1984, 2
        %v2005 = vsel %vm319, %v2004, %v2003
        %v2006 = vrot.slane %v1985, 1
        %v2007 = vsel %vm322, %v2006, %v2005
        %2009 = vst [vmem:[%s280] sm:$0xff] %v2007
        %v2010 = vld [vmem:[#allocation5 + $0x1] sm:$0x1]
        %v2011 = vld [vmem:[#allocation5 + $0x9] sm:$0x1]
        %v2012 = vld [vmem:[#allocation5 + $0x11] sm:$0x1]
        %v2013 = vld [vmem:[#allocation5 + $0x19] sm:$0x1]
        %v2014 = vld [vmem:[#allocation5 + $0x21] sm:$0x1]
        %v2015 = vld [vmem:[#allocation5 + $0x29] sm:$0x1]
        %v2016 = vld [vmem:[#allocation5 + $0x31] sm:$0x1]
        %v2017 = vld [vmem:[#allocation5 + $0x39] sm:$0x1]
        %v2026 = vrot.slane %v2011, 7
        %v2027 = vsel %vm304, %v2026, %v2010
        %v2028 = vrot.slane %v2012, 6
        %v2029 = vsel %vm307, %v2028, %v2027
        %v2030 = vrot.slane %v2013, 5
        %v2031 = vsel %vm310, %v2030, %v2029
        %v2032 = vrot.slane %v2014, 4
        %v2033 = vsel %vm313, %v2032, %v2031
        %v2034 = vrot.slane %v2015, 3
        %v2035 = vsel %vm316, %v2034, %v2033
        %v2036 = vrot.slane %v2016, 2
        %v2037 = vsel %vm319, %v2036, %v2035
        %v2038 = vrot.slane %v2017, 1
        %v2039 = vsel %vm322, %v2038, %v2037
        %s2041 = scalar_lea.vmem %s280, 8 [#allocation7]
        %2042 = vst [vmem:[%s2041] sm:$0xff] %v2039
        %v2043 = vld [vmem:[#allocation5 + $0x2] sm:$0x1]
        %v2044 = vld [vmem:[#allocation5 + $0xa] sm:$0x1]
        %v2045 = vld [vmem:[#allocation5 + $0x12] sm:$0x1]
        %v2046 = vld [vmem:[#allocation5 + $0x1a] sm:$0x1]
        %v2047 = vld [vmem:[#allocation5 + $0x22] sm:$0x1]
        %v2048 = vld [vmem:[#allocation5 + $0x2a] sm:$0x1]
        %v2049 = vld [vmem:[#allocation5 + $0x32] sm:$0x1]
        %v2050 = vld [vmem:[#allocation5 + $0x3a] sm:$0x1]
        %v2059 = vrot.slane %v2044, 7
        %v2060 = vsel %vm304, %v2059, %v2043
        %v2061 = vrot.slane %v2045, 6
        %v2062 = vsel %vm307, %v2061, %v2060
        %v2063 = vrot.slane %v2046, 5
        %v2064 = vsel %vm310, %v2063, %v2062
        %v2065 = vrot.slane %v2047, 4
        %v2066 = vsel %vm313, %v2065, %v2064
        %v2067 = vrot.slane %v2048, 3
        %v2068 = vsel %vm316, %v2067, %v2066
        %v2069 = vrot.slane %v2049, 2
        %v2070 = vsel %vm319, %v2069, %v2068
        %v2071 = vrot.slane %v2050, 1
        %v2072 = vsel %vm322, %v2071, %v2070
        %s2074 = scalar_lea.vmem %s280, 16 [#allocation7]
        %2075 = vst [vmem:[%s2074] sm:$0xff] %v2072
        %v2076 = vld [vmem:[#allocation5 + $0x3] sm:$0x1]
        %v2077 = vld [vmem:[#allocation5 + $0xb] sm:$0x1]
        %v2078 = vld [vmem:[#allocation5 + $0x13] sm:$0x1]
        %v2079 = vld [vmem:[#allocation5 + $0x1b] sm:$0x1]
        %v2080 = vld [vmem:[#allocation5 + $0x23] sm:$0x1]
        %v2081 = vld [vmem:[#allocation5 + $0x2b] sm:$0x1]
        %v2082 = vld [vmem:[#allocation5 + $0x33] sm:$0x1]
        %v2083 = vld [vmem:[#allocation5 + $0x3b] sm:$0x1]
        %v2092 = vrot.slane %v2077, 7
        %v2093 = vsel %vm304, %v2092, %v2076
        %v2094 = vrot.slane %v2078, 6
        %v2095 = vsel %vm307, %v2094, %v2093
        %v2096 = vrot.slane %v2079, 5
        %v2097 = vsel %vm310, %v2096, %v2095
        %v2098 = vrot.slane %v2080, 4
        %v2099 = vsel %vm313, %v2098, %v2097
        %v2100 = vrot.slane %v2081, 3
        %v2101 = vsel %vm316, %v2100, %v2099
        %v2102 = vrot.slane %v2082, 2
        %v2103 = vsel %vm319, %v2102, %v2101
        %v2104 = vrot.slane %v2083, 1
        %v2105 = vsel %vm322, %v2104, %v2103
        %s2107 = scalar_lea.vmem %s280, 24 [#allocation7]
        %2108 = vst [vmem:[%s2107] sm:$0xff] %v2105
        %v2109 = vld [vmem:[#allocation5 + $0x4] sm:$0x1]
        %v2110 = vld [vmem:[#allocation5 + $0xc] sm:$0x1]
        %v2111 = vld [vmem:[#allocation5 + $0x14] sm:$0x1]
        %v2112 = vld [vmem:[#allocation5 + $0x1c] sm:$0x1]
        %v2113 = vld [vmem:[#allocation5 + $0x24] sm:$0x1]
        %v2114 = vld [vmem:[#allocation5 + $0x2c] sm:$0x1]
        %v2115 = vld [vmem:[#allocation5 + $0x34] sm:$0x1]
        %v2116 = vld [vmem:[#allocation5 + $0x3c] sm:$0x1]
        %v2125 = vrot.slane %v2110, 7
        %v2126 = vsel %vm304, %v2125, %v2109
        %v2127 = vrot.slane %v2111, 6
        %v2128 = vsel %vm307, %v2127, %v2126
        %v2129 = vrot.slane %v2112, 5
        %v2130 = vsel %vm310, %v2129, %v2128
        %v2131 = vrot.slane %v2113, 4
        %v2132 = vsel %vm313, %v2131, %v2130
        %v2133 = vrot.slane %v2114, 3
        %v2134 = vsel %vm316, %v2133, %v2132
        %v2135 = vrot.slane %v2115, 2
        %v2136 = vsel %vm319, %v2135, %v2134
        %v2137 = vrot.slane %v2116, 1
        %v2138 = vsel %vm322, %v2137, %v2136
        %s2140 = scalar_lea.vmem %s280, 32 [#allocation7]
        %2141 = vst [vmem:[%s2140] sm:$0xff] %v2138
        %v2142 = vld [vmem:[#allocation5 + $0x5] sm:$0x1]
        %v2143 = vld [vmem:[#allocation5 + $0xd] sm:$0x1]
        %v2144 = vld [vmem:[#allocation5 + $0x15] sm:$0x1]
        %v2145 = vld [vmem:[#allocation5 + $0x1d] sm:$0x1]
        %v2146 = vld [vmem:[#allocation5 + $0x25] sm:$0x1]
        %v2147 = vld [vmem:[#allocation5 + $0x2d] sm:$0x1]
        %v2148 = vld [vmem:[#allocation5 + $0x35] sm:$0x1]
        %v2149 = vld [vmem:[#allocation5 + $0x3d] sm:$0x1]
        %v2158 = vrot.slane %v2143, 7
        %v2159 = vsel %vm304, %v2158, %v2142
        %v2160 = vrot.slane %v2144, 6
        %v2161 = vsel %vm307, %v2160, %v2159
        %v2162 = vrot.slane %v2145, 5
        %v2163 = vsel %vm310, %v2162, %v2161
        %v2164 = vrot.slane %v2146, 4
        %v2165 = vsel %vm313, %v2164, %v2163
        %v2166 = vrot.slane %v2147, 3
        %v2167 = vsel %vm316, %v2166, %v2165
        %v2168 = vrot.slane %v2148, 2
        %v2169 = vsel %vm319, %v2168, %v2167
        %v2170 = vrot.slane %v2149, 1
        %v2171 = vsel %vm322, %v2170, %v2169
        %s2173 = scalar_lea.vmem %s280, 40 [#allocation7]
        %2174 = vst [vmem:[%s2173] sm:$0xff] %v2171
        %v2175 = vld [vmem:[#allocation5 + $0x6] sm:$0x1]
        %v2176 = vld [vmem:[#allocation5 + $0xe] sm:$0x1]
        %v2177 = vld [vmem:[#allocation5 + $0x16] sm:$0x1]
        %v2178 = vld [vmem:[#allocation5 + $0x1e] sm:$0x1]
        %v2179 = vld [vmem:[#allocation5 + $0x26] sm:$0x1]
        %v2180 = vld [vmem:[#allocation5 + $0x2e] sm:$0x1]
        %v2181 = vld [vmem:[#allocation5 + $0x36] sm:$0x1]
        %v2182 = vld [vmem:[#allocation5 + $0x3e] sm:$0x1]
        %v2191 = vrot.slane %v2176, 7
        %v2192 = vsel %vm304, %v2191, %v2175
        %v2193 = vrot.slane %v2177, 6
        %v2194 = vsel %vm307, %v2193, %v2192
        %v2195 = vrot.slane %v2178, 5
        %v2196 = vsel %vm310, %v2195, %v2194
        %v2197 = vrot.slane %v2179, 4
        %v2198 = vsel %vm313, %v2197, %v2196
        %v2199 = vrot.slane %v2180, 3
        %v2200 = vsel %vm316, %v2199, %v2198
        %v2201 = vrot.slane %v2181, 2
        %v2202 = vsel %vm319, %v2201, %v2200
        %v2203 = vrot.slane %v2182, 1
        %v2204 = vsel %vm322, %v2203, %v2202
        %s2206 = scalar_lea.vmem %s280, 48 [#allocation7]
        %2207 = vst [vmem:[%s2206] sm:$0xff] %v2204
        %v2208 = vld [vmem:[#allocation5 + $0x7] sm:$0x1]
        %v2209 = vld [vmem:[#allocation5 + $0xf] sm:$0x1]
        %v2210 = vld [vmem:[#allocation5 + $0x17] sm:$0x1]
        %v2211 = vld [vmem:[#allocation5 + $0x1f] sm:$0x1]
        %v2212 = vld [vmem:[#allocation5 + $0x27] sm:$0x1]
        %v2213 = vld [vmem:[#allocation5 + $0x2f] sm:$0x1]
        %v2214 = vld [vmem:[#allocation5 + $0x37] sm:$0x1]
        %v2215 = vld [vmem:[#allocation5 + $0x3f] sm:$0x1]
        %v2224 = vrot.slane %v2209, 7
        %v2225 = vsel %vm304, %v2224, %v2208
        %v2226 = vrot.slane %v2210, 6
        %v2227 = vsel %vm307, %v2226, %v2225
        %v2228 = vrot.slane %v2211, 5
        %v2229 = vsel %vm310, %v2228, %v2227
        %v2230 = vrot.slane %v2212, 4
        %v2231 = vsel %vm313, %v2230, %v2229
        %v2232 = vrot.slane %v2213, 3
        %v2233 = vsel %vm316, %v2232, %v2231
        %v2234 = vrot.slane %v2214, 2
        %v2235 = vsel %vm319, %v2234, %v2233
        %v2236 = vrot.slane %v2215, 1
        %v2237 = vsel %vm322, %v2236, %v2235
        %s2239 = scalar_lea.vmem %s280, 56 [#allocation7]
        %2240 = vst [vmem:[%s2239] sm:$0xff] %v2237
        %s2241 = sand.u32 %s134, 1
        %s2242 = sand.u32 %s134, 1
        %s2243 = smul.addr %s2242, 64
        %s2244 = scalar_lea.vmem [#allocation7], %s2243
        // Predicated region
        $region83: #{encoder_forward.1} parent=73 // pred_check
          %p2245 = pneg %p144
        $region84: #{encoder_forward.1} parent=73 // pred_check_branch
          %2247 = sbr.rel (%p2245) target = $region86
        $region85: #{encoder_forward.1} parent=73 // pred_region
          %s2248 = smul.addr %s16, 8
          %s2249 = scalar_lea.vmem %s5, %s2248
          // Predicated region
          $region87: #{encoder_forward.1} parent=85 // pred_check
            _
          $region88: #{encoder_forward.1} parent=85 // pred_check_branch
            %2251 = sbr.rel (0) target = $region90
          $region89: #{encoder_forward.1} parent=85 // pred_region
            // Predicated region
            $region91: #{encoder_forward.1} parent=89 // pred_check
              _
            $region92: #{encoder_forward.1} parent=89 // pred_check_branch
              %2253 = sbr.rel (0) target = $region94
            $region93: #{encoder_forward.1} parent=89 // pred_region
              // Predicated region
              $region106: #{encoder_forward.1} parent=93 // pred_check
                _
              $region107: #{encoder_forward.1} parent=93 // pred_check_branch
                %2282 = sbr.rel (0) target = $region109
              $region108: #{encoder_forward.1} parent=93 // pred_region
                loop: start=0, step=1, limit=1
                $region110: #{encoder_forward.1} parent=108 // loop_pre_header
                  _
                $region111: #{encoder_forward.1} parent=108 // loop_header
                  %s2284 = sphi 0, %s2288
                  %p2285 = scmp.ge.s32.totalorder %s2284, 1
                  %s2289 = sphi %s2244, %s2244
                  %s2290 = sphi %s2249, %s2249
                $region112: #{encoder_forward.1} parent=108 // loop_header_branch
                  %2287 = sbr.rel (%p2285) target = $region116
                $region113: #{encoder_forward.1} parent=108 // loop_body
                  %v2291 = vld [vmem:[%s2289] sm:$0xff]
                  %2292 = vst [vmem:[%s2290] sm:$0xff] %v2291
                  %v2293 = vld [vmem:[%s2289 + $0x8] sm:$0xff]
                  %2294 = vst [vmem:[%s2290 + $0x18] sm:$0xff] %v2293
                  %v2295 = vld [vmem:[%s2289 + $0x10] sm:$0xff]
                  %2296 = vst [vmem:[%s2290 + $0x30] sm:$0xff] %v2295
                  %v2297 = vld [vmem:[%s2289 + $0x18] sm:$0xff]
                  %2298 = vst [vmem:[%s2290 + $0x48] sm:$0xff] %v2297
                  %v2299 = vld [vmem:[%s2289 + $0x20] sm:$0xff]
                  %2300 = vst [vmem:[%s2290 + $0x60] sm:$0xff] %v2299
                  %v2301 = vld [vmem:[%s2289 + $0x28] sm:$0xff]
                  %2302 = vst [vmem:[%s2290 + $0x78] sm:$0xff] %v2301
                  %v2303 = vld [vmem:[%s2289 + $0x30] sm:$0xff]
                  %2304 = vst [vmem:[%s2290 + $0x90] sm:$0xff] %v2303
                  %v2305 = vld [vmem:[%s2289 + $0x38] sm:$0xff]
                  %2306 = vst [vmem:[%s2290 + $0xa8] sm:$0xff] %v2305
                $region114: #{encoder_forward.1} parent=108 // loop_footer
                  %s2288 = sadd.s32 1, %s2284
                $region115: #{encoder_forward.1} parent=108 // loop_footer_branch
                  %2283 = sbr.rel target = $region111
                $region116: #{encoder_forward.1} parent=108 // loop_exit
                  _
              $region109: #{encoder_forward.1} parent=93 // pred_fallthru
                _
              // Predicated region
              $region117: #{encoder_forward.1} parent=93 // pred_check
                _
              $region118: #{encoder_forward.1} parent=93 // pred_check_branch
                %2308 = sbr.rel target = $region120
              $region119: #{encoder_forward.1} parent=93 // pred_region
                _
              $region120: #{encoder_forward.1} parent=93 // pred_fallthru
                _
            $region94: #{encoder_forward.1} parent=89 // pred_fallthru
              _
            // Predicated region
            $region95: #{encoder_forward.1} parent=89 // pred_check
              _
            $region96: #{encoder_forward.1} parent=89 // pred_check_branch
              %2255 = sbr.rel target = $region98
            $region97: #{encoder_forward.1} parent=89 // pred_region
              loop: start=0, step=1, limit=1
              $region99: #{encoder_forward.1} parent=97 // loop_pre_header
                _
              $region100: #{encoder_forward.1} parent=97 // loop_header
                %s2258 = sphi 0, %s2262
                %p2259 = scmp.ge.s32.totalorder %s2258, 1
                %s2263 = sphi %s2244, %s2244
                %s2264 = sphi %s2249, %s2249
              $region101: #{encoder_forward.1} parent=97 // loop_header_branch
                %2261 = sbr.rel (%p2259) target = $region105
              $region102: #{encoder_forward.1} parent=97 // loop_body
                %v2265 = vld [vmem:[%s2263] sm:$0xff]
                %2266 = vst [vmem:[%s2264] sm:$0xff] %v2265
                %v2267 = vld [vmem:[%s2263 + $0x8] sm:$0xff]
                %2268 = vst [vmem:[%s2264 + $0x18] sm:$0xff] %v2267
                %v2269 = vld [vmem:[%s2263 + $0x10] sm:$0xff]
                %2270 = vst [vmem:[%s2264 + $0x30] sm:$0xff] %v2269
                %v2271 = vld [vmem:[%s2263 + $0x18] sm:$0xff]
                %2272 = vst [vmem:[%s2264 + $0x48] sm:$0xff] %v2271
                %v2273 = vld [vmem:[%s2263 + $0x20] sm:$0xff]
                %2274 = vst [vmem:[%s2264 + $0x60] sm:$0xff] %v2273
                %v2275 = vld [vmem:[%s2263 + $0x28] sm:$0xff]
                %2276 = vst [vmem:[%s2264 + $0x78] sm:$0xff] %v2275
                %v2277 = vld [vmem:[%s2263 + $0x30] sm:$0xff]
                %2278 = vst [vmem:[%s2264 + $0x90] sm:$0xff] %v2277
                %v2279 = vld [vmem:[%s2263 + $0x38] sm:$0xff]
                %2280 = vst [vmem:[%s2264 + $0xa8] sm:$0xff] %v2279
              $region103: #{encoder_forward.1} parent=97 // loop_footer
                %s2262 = sadd.s32 1, %s2258
              $region104: #{encoder_forward.1} parent=97 // loop_footer_branch
                %2257 = sbr.rel target = $region100
              $region105: #{encoder_forward.1} parent=97 // loop_exit
                _
            $region98: #{encoder_forward.1} parent=89 // pred_fallthru
              _
          $region90: #{encoder_forward.1} parent=85 // pred_fallthru
            _
          %2309 = vnop
        $region86: #{encoder_forward.1} parent=73 // pred_fallthru
          _
      $region74: #{encoder_forward.1} parent=5 // pred_fallthru
        _
      %p2310 = scmp.le.s32.totalorder 2, %s11
      // Predicated region
      $region121: #{encoder_forward.1} parent=5 // pred_check
        %p2311 = pneg %p2310
      $region122: #{encoder_forward.1} parent=5 // pred_check_branch
        %2313 = sbr.rel (%p2311) target = $region124
      $region123: #{encoder_forward.1} parent=5 // pred_region
        %s2314 = ssub.s32 %s11, 2
        // Predicated region
        $region125: #{encoder_forward.1} parent=123 // pred_check
          %p2315 = pneg %p150
        $region126: #{encoder_forward.1} parent=123 // pred_check_branch
          %2317 = sbr.rel (%p2315) target = $region128
        $region127: #{encoder_forward.1} parent=123 // pred_region
          %s2318 = sand.u32 %s135, 1
          %s2319 = sand.u32 %s135, 1
          %s2320 = smul.addr %s2319, 64
          %s2321 = scalar_lea.vmem [#allocation7], %s2320
        $region128: #{encoder_forward.1} parent=123 // pred_fallthru
          _
      $region124: #{encoder_forward.1} parent=5 // pred_fallthru
        _
    $region6: #{encoder_forward.1} parent=1 // loop_footer
      %s15 = sadd.s32 1, %s11
    $region7: #{encoder_forward.1} parent=1 // loop_footer_branch
      %10 = sbr.rel target = $region3
    $region8: #{encoder_forward.1} parent=1 // loop_exit
      _

</llo_original>
